<compile_context>
chip_gen: v5e
topology: v5e:2x2
jax: 0.10.0
libtpu: 0.0.40
codegen_flags: <defaults>
</compile_context>

<pallas_src>
import jax
import jax.numpy as jnp
from jax.experimental import pallas as pl
from jax.experimental.pallas import tpu as pltpu


# ----------------------------- Pallas kernel --------------------------------

def lstm1_fused_kernel(x_ref, wih1_ref, whh1_ref, b1_ref,
                       wih2_ref, whh2_ref, b2_ref,
                       wfc_ref, bfc_ref,
                       out_ref,
                       gp_ref, hseq_ref, h_ref, c_ref):
    """Fused 2-layer LSTM + FC head, everything VMEM-resident.

    x_ref    : (T*BP, D)    time-major rows (t*BP + b), batch padded to BP
    wih*_ref : (D|H, 4H)    W_ih^T per layer
    whh*_ref : (H, 4H)      W_hh^T per layer
    b*_ref   : (1, 4H)      b_ih + b_hh per layer
    wfc_ref  : (H, C)       fc.weight^T
    bfc_ref  : (1, C)       fc.bias
    out_ref  : (T*BP, C)    logits, time-major
    gp_ref   : (T*BP, 4H)   scratch: hoisted input-projection gates (reused)
    hseq_ref : (T*BP, H)    scratch: per-layer hidden sequence (reused)
    h_ref/c_ref : (BP, H)   scratch: recurrent state
    """
    BP, H = h_ref.shape
    T = gp_ref.shape[0] // BP

    def run_recurrence(whh_ref):
        # h0 = c0 = 0 for every layer (matches the PyTorch module).
        h_ref[...] = jnp.zeros((BP, H), jnp.float32)
        c_ref[...] = jnp.zeros((BP, H), jnp.float32)

        def step(t, carry):
            row = pl.multiple_of(t * BP, BP)
            # Critical path per step: one (BP,H)@(H,4H) matmul + elementwise.
            gates = gp_ref[pl.ds(row, BP), :] + jnp.dot(
                h_ref[...], whh_ref[...], preferred_element_type=jnp.float32)
            # PyTorch gate order: i, f, g, o (each slice = one full 128-lane vreg).
            i = jax.nn.sigmoid(gates[:, 0 * H:1 * H])
            f = jax.nn.sigmoid(gates[:, 1 * H:2 * H])
            g = jnp.tanh(gates[:, 2 * H:3 * H])
            o = jax.nn.sigmoid(gates[:, 3 * H:4 * H])
            c_new = f * c_ref[...] + i * g
            h_new = o * jnp.tanh(c_new)
            c_ref[...] = c_new
            h_ref[...] = h_new
            hseq_ref[pl.ds(row, BP), :] = h_new
            return carry

        jax.lax.fori_loop(0, T, step, 0, unroll=True)

    # ---- layer 1: hoisted input projection (one big matmul), then recurrence
    gp_ref[...] = jnp.dot(x_ref[...], wih1_ref[...],
                          preferred_element_type=jnp.float32) + b1_ref[...]
    run_recurrence(whh1_ref)

    # ---- layer 2: input projection consumes layer-1 hidden sequence from VMEM
    gp_ref[...] = jnp.dot(hseq_ref[...], wih2_ref[...],
                          preferred_element_type=jnp.float32) + b2_ref[...]
    run_recurrence(whh2_ref)

    # ---- FC head over all timesteps at once
    out_ref[...] = jnp.dot(hseq_ref[...], wfc_ref[...],
                           preferred_element_type=jnp.float32) + bfc_ref[...]


# ------------------------------ Wrappers -------------------------------------

def prepare_params(params):
    """One-time parameter repack: transposes + fused biases (not per forward)."""
    l1, l2 = params["lstm"]
    H = l1["w_hh"].shape[1]
    C = params["fc_w"].shape[0]
    return {
        "wih1_t": l1["w_ih"].T,                                   # (D, 4H)
        "whh1_t": l1["w_hh"].T,                                   # (H, 4H)
        "b1": (l1["b_ih"] + l1["b_hh"]).reshape(1, 4 * H),
        "wih2_t": l2["w_ih"].T,                                   # (H, 4H)
        "whh2_t": l2["w_hh"].T,                                   # (H, 4H)
        "b2": (l2["b_ih"] + l2["b_hh"]).reshape(1, 4 * H),
        "wfc_t": params["fc_w"].T,                                # (H, C)
        "bfc": params["fc_b"].reshape(1, C),
    }


def lstm1_forward(x_btd, prep):
    """Pallas implementation of LSTM1.forward (only_last=False). x: (B, T, D)."""
    B, T, D = x_btd.shape
    H = prep["whh1_t"].shape[0]
    C = prep["wfc_t"].shape[1]
    BP = ((B + 7) // 8) * 8                     # pad batch to full sublane tile

    x_tbd = jnp.transpose(x_btd, (1, 0, 2))                    # (T, B, D)
    x_tbd = jnp.pad(x_tbd, ((0, 0), (0, BP - B), (0, 0)))      # (T, BP, D)
    x2d = x_tbd.reshape(T * BP, D)                             # time-major rows

    out2d = pl.pallas_call(
        lstm1_fused_kernel,
        out_shape=jax.ShapeDtypeStruct((T * BP, C), jnp.float32),
        scratch_shapes=[
            pltpu.VMEM((T * BP, 4 * H), jnp.float32),   # hoisted gate pre-acts
            pltpu.VMEM((T * BP, H), jnp.float32),       # layer hidden sequence
            pltpu.VMEM((BP, H), jnp.float32),           # h state
            pltpu.VMEM((BP, H), jnp.float32),           # c state
        ],
    )(x2d, prep["wih1_t"], prep["whh1_t"], prep["b1"],
      prep["wih2_t"], prep["whh2_t"], prep["b2"],
      prep["wfc_t"], prep["bfc"])

    out = out2d.reshape(T, BP, C)[:, :B, :]                    # (T, B, C)
    # TODO(synk): at production sizes, fold this permute into a lane-dense
    # output layout instead of a separate XLA transpose.
    return jnp.transpose(out, (1, 2, 0))                       # (B, C, T)


# ------------------------ Pure-JAX reference (check) -------------------------

def lstm1_reference(x_btd, params):
    B = x_btd.shape[0]
    h_seq = jnp.transpose(x_btd, (1, 0, 2))                    # (T, B, D)
    for layer in params["lstm"]:
        w_ih, w_hh = layer["w_ih"], layer["w_hh"]
        b_ih, b_hh = layer["b_ih"], layer["b_hh"]
        H = w_hh.shape[1]

        def step(carry, x_t, w_ih=w_ih, w_hh=w_hh, b_ih=b_ih, b_hh=b_hh):
            h, c = carry
            gates = x_t @ w_ih.T + b_ih + h @ w_hh.T + b_hh
            i, f, g, o = jnp.split(gates, 4, axis=-1)
            i = jax.nn.sigmoid(i)
            f = jax.nn.sigmoid(f)
            g = jnp.tanh(g)
            o = jax.nn.sigmoid(o)
            c = f * c + i * g
            h = o * jnp.tanh(c)
            return (h, c), h

        init = (jnp.zeros((B, H), jnp.float32), jnp.zeros((B, H), jnp.float32))
        _, h_seq = jax.lax.scan(step, init, h_seq)
    out = h_seq @ params["fc_w"].T + params["fc_b"]            # (T, B, C)
    return jnp.transpose(out, (1, 2, 0))                       # (B, C, T)


# --------------------------------- Main ---------------------------------------

def init_params(key, input_size, hidden_size, num_layers, num_classes):
    """Deterministic PyTorch-style uniform(-1/sqrt(H), 1/sqrt(H)) init."""
    k = 1.0 / jnp.sqrt(jnp.float32(hidden_size))
    layers = []
    for l in range(num_layers):
        d_in = input_size if l == 0 else hidden_size
        key, k1, k2, k3, k4 = jax.random.split(key, 5)
        layers.append({
            "w_ih": jax.random.uniform(k1, (4 * hidden_size, d_in),
                                       jnp.float32, -k, k),
            "w_hh": jax.random.uniform(k2, (4 * hidden_size, hidden_size),
                                       jnp.float32, -k, k),
            "b_ih": jax.random.uniform(k3, (4 * hidden_size,),
                                       jnp.float32, -k, k),
            "b_hh": jax.random.uniform(k4, (4 * hidden_size,),
                                       jnp.float32, -k, k),
        })
    key, k5, k6 = jax.random.split(key, 3)
    params = {
        "lstm": layers,
        "fc_w": jax.random.uniform(k5, (num_classes, hidden_size),
                                   jnp.float32, -k, k),
        "fc_b": jax.random.uniform(k6, (num_classes,),
                                   jnp.float32, -k, k),
    }
    return params


if __name__ == "__main__":
    B, T, D = 2, 8, 16           # batch, seq_len, input_size
    H, C, L = 128, 4, 2          # hidden_size=128, num_classes=4, num_layers=2

    key = jax.random.PRNGKey(0)
    key, kx, kp = jax.random.split(key, 3)
    x = jax.random.normal(kx, (B, T, D), jnp.float32)
    params = init_params(kp, D, H, L, C)
    prep = prepare_params(params)

    fwd = jax.jit(lstm1_forward)
    out = jax.block_until_ready(fwd(x, prep))
    assert out.shape == (B, C, T), out.shape

    # fp32 reference (kernel uses default MXU precision -> looser tolerance).
    with jax.default_matmul_precision("float32"):
        ref = jax.block_until_ready(lstm1_reference(x, params))
    max_err = float(jnp.max(jnp.abs(out - ref)))
    assert jnp.allclose(out, ref, rtol=3e-2, atol=3e-2), max_err

    print("KERNEL_OK")
</pallas_src>

<mosaic_0001>
module attributes {stable_mosaic.version = 11 : i64} {
  func.func @lstm1_fused_kernel(%arg0: memref<64x16xf32, #tpu.memory_space<vmem>>, %arg1: memref<16x512xf32, #tpu.memory_space<vmem>>, %arg2: memref<128x512xf32, #tpu.memory_space<vmem>>, %arg3: memref<1x512xf32, #tpu.memory_space<vmem>>, %arg4: memref<128x512xf32, #tpu.memory_space<vmem>>, %arg5: memref<128x512xf32, #tpu.memory_space<vmem>>, %arg6: memref<1x512xf32, #tpu.memory_space<vmem>>, %arg7: memref<128x4xf32, #tpu.memory_space<vmem>>, %arg8: memref<1x4xf32, #tpu.memory_space<vmem>>, %arg9: memref<64x4xf32, #tpu.memory_space<vmem>>, %arg10: memref<64x512xf32, #tpu.memory_space<vmem>>, %arg11: memref<64x128xf32, #tpu.memory_space<vmem>>, %arg12: memref<8x128xf32, #tpu.memory_space<vmem>>, %arg13: memref<8x128xf32, #tpu.memory_space<vmem>>) attributes {dimension_semantics = [], scalar_prefetch = 0 : i64, scratch_operands = 4 : i64, tpu.core_type = #tpu.core_type<tc>} {
    %c0 = arith.constant 0 : index
    %c0_0 = arith.constant 0 : index
    %0 = vector.load %arg0[%c0, %c0_0] : memref<64x16xf32, #tpu.memory_space<vmem>>, vector<64x16xf32>
    %c0_1 = arith.constant 0 : index
    %c0_2 = arith.constant 0 : index
    %1 = vector.load %arg1[%c0_1, %c0_2] : memref<16x512xf32, #tpu.memory_space<vmem>>, vector<16x512xf32>
    %cst = arith.constant dense<0.000000e+00> : vector<64x512xf32>
    %2 = tpu.matmul %0, %1, %cst {dimension_numbers = #tpu.dot_dimension_numbers<[1], [0], [0], [1], [0, 0, 1, 1], [], []>} : vector<64x16xf32>, vector<16x512xf32>, vector<64x512xf32> -> vector<64x512xf32>
    %c0_3 = arith.constant 0 : index
    %c0_4 = arith.constant 0 : index
    %3 = vector.load %arg3[%c0_3, %c0_4] : memref<1x512xf32, #tpu.memory_space<vmem>>, vector<1x512xf32>
    %4 = vector.broadcast %3 : vector<1x512xf32> to vector<64x512xf32>
    %5 = arith.addf %2, %4 : vector<64x512xf32>
    %c0_5 = arith.constant 0 : index
    %c0_6 = arith.constant 0 : index
    %6 = vector.load %arg10[%c0_5, %c0_6] : memref<64x512xf32, #tpu.memory_space<vmem>>, vector<64x512xf32>
    tpu.vector_store %arg10[%c0_5, %c0_6], %5 {strides = array<i32>} : memref<64x512xf32, #tpu.memory_space<vmem>>, vector<64x512xf32>,
    %cst_7 = arith.constant 0.000000e+00 : f32
    %7 = vector.broadcast %cst_7 : f32 to vector<8x128xf32>
    %c0_8 = arith.constant 0 : index
    %c0_9 = arith.constant 0 : index
    %8 = vector.load %arg12[%c0_8, %c0_9] : memref<8x128xf32, #tpu.memory_space<vmem>>, vector<8x128xf32>
    tpu.vector_store %arg12[%c0_8, %c0_9], %7 {strides = array<i32>} : memref<8x128xf32, #tpu.memory_space<vmem>>, vector<8x128xf32>,
    %cst_10 = arith.constant 0.000000e+00 : f32
    %9 = vector.broadcast %cst_10 : f32 to vector<8x128xf32>
    %c0_11 = arith.constant 0 : index
    %c0_12 = arith.constant 0 : index
    %10 = vector.load %arg13[%c0_11, %c0_12] : memref<8x128xf32, #tpu.memory_space<vmem>>, vector<8x128xf32>
    tpu.vector_store %arg13[%c0_11, %c0_12], %9 {strides = array<i32>} : memref<8x128xf32, #tpu.memory_space<vmem>>, vector<8x128xf32>,
    %c0_i32 = arith.constant 0 : i32
    %c8_i32 = arith.constant 8 : i32
    %11 = arith.muli %c0_i32, %c8_i32 : i32
    %12 = tpu.assume_multiple %11, 8 : i32
    %13 = arith.index_cast %12 : i32 to index
    %c0_13 = arith.constant 0 : index
    %14 = vector.load %arg10[%13, %c0_13] : memref<64x512xf32, #tpu.memory_space<vmem>>, vector<8x512xf32>
    %c0_14 = arith.constant 0 : index
    %c0_15 = arith.constant 0 : index
    %15 = vector.load %arg12[%c0_14, %c0_15] : memref<8x128xf32, #tpu.memory_space<vmem>>, vector<8x128xf32>
    %c0_16 = arith.constant 0 : index
    %c0_17 = arith.constant 0 : index
    %16 = vector.load %arg2[%c0_16, %c0_17] : memref<128x512xf32, #tpu.memory_space<vmem>>, vector<128x512xf32>
    %cst_18 = arith.constant dense<0.000000e+00> : vector<8x512xf32>
    %17 = tpu.matmul %15, %16, %cst_18 {dimension_numbers = #tpu.dot_dimension_numbers<[1], [0], [0], [1], [0, 0, 1, 1], [], []>} : vector<8x128xf32>, vector<128x512xf32>, vector<8x512xf32> -> vector<8x512xf32>
    %18 = arith.addf %14, %17 : vector<8x512xf32>
    %19 = vector.extract_strided_slice %18 {offsets = [0, 0], sizes = [8, 128], strides = [1, 1]} : vector<8x512xf32> to vector<8x128xf32>
    %20 = arith.negf %19 : vector<8x128xf32>
    %21 = math.exp %20 : vector<8x128xf32>
    %cst_19 = arith.constant 1.000000e+00 : f32
    %22 = vector.broadcast %cst_19 : f32 to vector<8x128xf32>
    %23 = arith.addf %22, %21 : vector<8x128xf32>
    %24 = arith.divf %22, %23 : vector<8x128xf32>
    %25 = vector.extract_strided_slice %18 {offsets = [0, 128], sizes = [8, 128], strides = [1, 1]} : vector<8x512xf32> to vector<8x128xf32>
    %26 = arith.negf %25 : vector<8x128xf32>
    %27 = math.exp %26 : vector<8x128xf32>
    %cst_20 = arith.constant 1.000000e+00 : f32
    %28 = vector.broadcast %cst_20 : f32 to vector<8x128xf32>
    %29 = arith.addf %28, %27 : vector<8x128xf32>
    %30 = arith.divf %28, %29 : vector<8x128xf32>
    %31 = vector.extract_strided_slice %18 {offsets = [0, 256], sizes = [8, 128], strides = [1, 1]} : vector<8x512xf32> to vector<8x128xf32>
    %32 = math.tanh %31 : vector<8x128xf32>
    %33 = vector.extract_strided_slice %18 {offsets = [0, 384], sizes = [8, 128], strides = [1, 1]} : vector<8x512xf32> to vector<8x128xf32>
    %34 = arith.negf %33 : vector<8x128xf32>
    %35 = math.exp %34 : vector<8x128xf32>
    %cst_21 = arith.constant 1.000000e+00 : f32
    %36 = vector.broadcast %cst_21 : f32 to vector<8x128xf32>
    %37 = arith.addf %36, %35 : vector<8x128xf32>
    %38 = arith.divf %36, %37 : vector<8x128xf32>
    %c0_22 = arith.constant 0 : index
    %c0_23 = arith.constant 0 : index
    %39 = vector.load %arg13[%c0_22, %c0_23] : memref<8x128xf32, #tpu.memory_space<vmem>>, vector<8x128xf32>
    %40 = arith.mulf %30, %39 : vector<8x128xf32>
    %41 = arith.mulf %24, %32 : vector<8x128xf32>
    %42 = arith.addf %40, %41 : vector<8x128xf32>
    %43 = math.tanh %42 : vector<8x128xf32>
    %44 = arith.mulf %38, %43 : vector<8x128xf32>
    %c0_24 = arith.constant 0 : index
    %c0_25 = arith.constant 0 : index
    %45 = vector.load %arg13[%c0_24, %c0_25] : memref<8x128xf32, #tpu.memory_space<vmem>>, vector<8x128xf32>
    tpu.vector_store %arg13[%c0_24, %c0_25], %42 {strides = array<i32>} : memref<8x128xf32, #tpu.memory_space<vmem>>, vector<8x128xf32>,
    %c0_26 = arith.constant 0 : index
    %c0_27 = arith.constant 0 : index
    %46 = vector.load %arg12[%c0_26, %c0_27] : memref<8x128xf32, #tpu.memory_space<vmem>>, vector<8x128xf32>
    tpu.vector_store %arg12[%c0_26, %c0_27], %44 {strides = array<i32>} : memref<8x128xf32, #tpu.memory_space<vmem>>, vector<8x128xf32>,
    %47 = arith.index_cast %12 : i32 to index
    %c0_28 = arith.constant 0 : index
    %48 = vector.load %arg11[%47, %c0_28] : memref<64x128xf32, #tpu.memory_space<vmem>>, vector<8x128xf32>
    tpu.vector_store %arg11[%47, %c0_28], %44 {strides = array<i32>} : memref<64x128xf32, #tpu.memory_space<vmem>>, vector<8x128xf32>,
    %c1_i32 = arith.constant 1 : i32
    %c8_i32_29 = arith.constant 8 : i32
    %49 = arith.muli %c1_i32, %c8_i32_29 : i32
    %50 = tpu.assume_multiple %49, 8 : i32
    %51 = arith.index_cast %50 : i32 to index
    %c0_30 = arith.constant 0 : index
    %52 = vector.load %arg10[%51, %c0_30] : memref<64x512xf32, #tpu.memory_space<vmem>>, vector<8x512xf32>
    %c0_31 = arith.constant 0 : index
    %c0_32 = arith.constant 0 : index
    %53 = vector.load %arg12[%c0_31, %c0_32] : memref<8x128xf32, #tpu.memory_space<vmem>>, vector<8x128xf32>
    %c0_33 = arith.constant 0 : index
    %c0_34 = arith.constant 0 : index
    %54 = vector.load %arg2[%c0_33, %c0_34] : memref<128x512xf32, #tpu.memory_space<vmem>>, vector<128x512xf32>
    %cst_35 = arith.constant dense<0.000000e+00> : vector<8x512xf32>
    %55 = tpu.matmul %53, %54, %cst_35 {dimension_numbers = #tpu.dot_dimension_numbers<[1], [0], [0], [1], [0, 0, 1, 1], [], []>} : vector<8x128xf32>, vector<128x512xf32>, vector<8x512xf32> -> vector<8x512xf32>
    %56 = arith.addf %52, %55 : vector<8x512xf32>
    %57 = vector.extract_strided_slice %56 {offsets = [0, 0], sizes = [8, 128], strides = [1, 1]} : vector<8x512xf32> to vector<8x128xf32>
    %58 = arith.negf %57 : vector<8x128xf32>
    %59 = math.exp %58 : vector<8x128xf32>
    %cst_36 = arith.constant 1.000000e+00 : f32
    %60 = vector.broadcast %cst_36 : f32 to vector<8x128xf32>
    %61 = arith.addf %60, %59 : vector<8x128xf32>
    %62 = arith.divf %60, %61 : vector<8x128xf32>
    %63 = vector.extract_strided_slice %56 {offsets = [0, 128], sizes = [8, 128], strides = [1, 1]} : vector<8x512xf32> to vector<8x128xf32>
    %64 = arith.negf %63 : vector<8x128xf32>
    %65 = math.exp %64 : vector<8x128xf32>
    %cst_37 = arith.constant 1.000000e+00 : f32
    %66 = vector.broadcast %cst_37 : f32 to vector<8x128xf32>
    %67 = arith.addf %66, %65 : vector<8x128xf32>
    %68 = arith.divf %66, %67 : vector<8x128xf32>
    %69 = vector.extract_strided_slice %56 {offsets = [0, 256], sizes = [8, 128], strides = [1, 1]} : vector<8x512xf32> to vector<8x128xf32>
    %70 = math.tanh %69 : vector<8x128xf32>
    %71 = vector.extract_strided_slice %56 {offsets = [0, 384], sizes = [8, 128], strides = [1, 1]} : vector<8x512xf32> to vector<8x128xf32>
    %72 = arith.negf %71 : vector<8x128xf32>
    %73 = math.exp %72 : vector<8x128xf32>
    %cst_38 = arith.constant 1.000000e+00 : f32
    %74 = vector.broadcast %cst_38 : f32 to vector<8x128xf32>
    %75 = arith.addf %74, %73 : vector<8x128xf32>
    %76 = arith.divf %74, %75 : vector<8x128xf32>
    %c0_39 = arith.constant 0 : index
    %c0_40 = arith.constant 0 : index
    %77 = vector.load %arg13[%c0_39, %c0_40] : memref<8x128xf32, #tpu.memory_space<vmem>>, vector<8x128xf32>
    %78 = arith.mulf %68, %77 : vector<8x128xf32>
    %79 = arith.mulf %62, %70 : vector<8x128xf32>
    %80 = arith.addf %78, %79 : vector<8x128xf32>
    %81 = math.tanh %80 : vector<8x128xf32>
    %82 = arith.mulf %76, %81 : vector<8x128xf32>
    %c0_41 = arith.constant 0 : index
    %c0_42 = arith.constant 0 : index
    %83 = vector.load %arg13[%c0_41, %c0_42] : memref<8x128xf32, #tpu.memory_space<vmem>>, vector<8x128xf32>
    tpu.vector_store %arg13[%c0_41, %c0_42], %80 {strides = array<i32>} : memref<8x128xf32, #tpu.memory_space<vmem>>, vector<8x128xf32>,
    %c0_43 = arith.constant 0 : index
    %c0_44 = arith.constant 0 : index
    %84 = vector.load %arg12[%c0_43, %c0_44] : memref<8x128xf32, #tpu.memory_space<vmem>>, vector<8x128xf32>
    tpu.vector_store %arg12[%c0_43, %c0_44], %82 {strides = array<i32>} : memref<8x128xf32, #tpu.memory_space<vmem>>, vector<8x128xf32>,
    %85 = arith.index_cast %50 : i32 to index
    %c0_45 = arith.constant 0 : index
    %86 = vector.load %arg11[%85, %c0_45] : memref<64x128xf32, #tpu.memory_space<vmem>>, vector<8x128xf32>
    tpu.vector_store %arg11[%85, %c0_45], %82 {strides = array<i32>} : memref<64x128xf32, #tpu.memory_space<vmem>>, vector<8x128xf32>,
    %c2_i32 = arith.constant 2 : i32
    %c8_i32_46 = arith.constant 8 : i32
    %87 = arith.muli %c2_i32, %c8_i32_46 : i32
    %88 = tpu.assume_multiple %87, 8 : i32
    %89 = arith.index_cast %88 : i32 to index
    %c0_47 = arith.constant 0 : index
    %90 = vector.load %arg10[%89, %c0_47] : memref<64x512xf32, #tpu.memory_space<vmem>>, vector<8x512xf32>
    %c0_48 = arith.constant 0 : index
    %c0_49 = arith.constant 0 : index
    %91 = vector.load %arg12[%c0_48, %c0_49] : memref<8x128xf32, #tpu.memory_space<vmem>>, vector<8x128xf32>
    %c0_50 = arith.constant 0 : index
    %c0_51 = arith.constant 0 : index
    %92 = vector.load %arg2[%c0_50, %c0_51] : memref<128x512xf32, #tpu.memory_space<vmem>>, vector<128x512xf32>
    %cst_52 = arith.constant dense<0.000000e+00> : vector<8x512xf32>
    %93 = tpu.matmul %91, %92, %cst_52 {dimension_numbers = #tpu.dot_dimension_numbers<[1], [0], [0], [1], [0, 0, 1, 1], [], []>} : vector<8x128xf32>, vector<128x512xf32>, vector<8x512xf32> -> vector<8x512xf32>
    %94 = arith.addf %90, %93 : vector<8x512xf32>
    %95 = vector.extract_strided_slice %94 {offsets = [0, 0], sizes = [8, 128], strides = [1, 1]} : vector<8x512xf32> to vector<8x128xf32>
    %96 = arith.negf %95 : vector<8x128xf32>
    %97 = math.exp %96 : vector<8x128xf32>
    %cst_53 = arith.constant 1.000000e+00 : f32
    %98 = vector.broadcast %cst_53 : f32 to vector<8x128xf32>
    %99 = arith.addf %98, %97 : vector<8x128xf32>
    %100 = arith.divf %98, %99 : vector<8x128xf32>
    %101 = vector.extract_strided_slice %94 {offsets = [0, 128], sizes = [8, 128], strides = [1, 1]} : vector<8x512xf32> to vector<8x128xf32>
    %102 = arith.negf %101 : vector<8x128xf32>
    %103 = math.exp %102 : vector<8x128xf32>
    %cst_54 = arith.constant 1.000000e+00 : f32
    %104 = vector.broadcast %cst_54 : f32 to vector<8x128xf32>
    %105 = arith.addf %104, %103 : vector<8x128xf32>
    %106 = arith.divf %104, %105 : vector<8x128xf32>
    %107 = vector.extract_strided_slice %94 {offsets = [0, 256], sizes = [8, 128], strides = [1, 1]} : vector<8x512xf32> to vector<8x128xf32>
    %108 = math.tanh %107 : vector<8x128xf32>
    %109 = vector.extract_strided_slice %94 {offsets = [0, 384], sizes = [8, 128], strides = [1, 1]} : vector<8x512xf32> to vector<8x128xf32>
    %110 = arith.negf %109 : vector<8x128xf32>
    %111 = math.exp %110 : vector<8x128xf32>
    %cst_55 = arith.constant 1.000000e+00 : f32
    %112 = vector.broadcast %cst_55 : f32 to vector<8x128xf32>
    %113 = arith.addf %112, %111 : vector<8x128xf32>
    %114 = arith.divf %112, %113 : vector<8x128xf32>
    %c0_56 = arith.constant 0 : index
    %c0_57 = arith.constant 0 : index
    %115 = vector.load %arg13[%c0_56, %c0_57] : memref<8x128xf32, #tpu.memory_space<vmem>>, vector<8x128xf32>
    %116 = arith.mulf %106, %115 : vector<8x128xf32>
    %117 = arith.mulf %100, %108 : vector<8x128xf32>
    %118 = arith.addf %116, %117 : vector<8x128xf32>
    %119 = math.tanh %118 : vector<8x128xf32>
    %120 = arith.mulf %114, %119 : vector<8x128xf32>
    %c0_58 = arith.constant 0 : index
    %c0_59 = arith.constant 0 : index
    %121 = vector.load %arg13[%c0_58, %c0_59] : memref<8x128xf32, #tpu.memory_space<vmem>>, vector<8x128xf32>
    tpu.vector_store %arg13[%c0_58, %c0_59], %118 {strides = array<i32>} : memref<8x128xf32, #tpu.memory_space<vmem>>, vector<8x128xf32>,
    %c0_60 = arith.constant 0 : index
    %c0_61 = arith.constant 0 : index
    %122 = vector.load %arg12[%c0_60, %c0_61] : memref<8x128xf32, #tpu.memory_space<vmem>>, vector<8x128xf32>
    tpu.vector_store %arg12[%c0_60, %c0_61], %120 {strides = array<i32>} : memref<8x128xf32, #tpu.memory_space<vmem>>, vector<8x128xf32>,
    %123 = arith.index_cast %88 : i32 to index
    %c0_62 = arith.constant 0 : index
    %124 = vector.load %arg11[%123, %c0_62] : memref<64x128xf32, #tpu.memory_space<vmem>>, vector<8x128xf32>
    tpu.vector_store %arg11[%123, %c0_62], %120 {strides = array<i32>} : memref<64x128xf32, #tpu.memory_space<vmem>>, vector<8x128xf32>,
    %c3_i32 = arith.constant 3 : i32
    %c8_i32_63 = arith.constant 8 : i32
    %125 = arith.muli %c3_i32, %c8_i32_63 : i32
    %126 = tpu.assume_multiple %125, 8 : i32
    %127 = arith.index_cast %126 : i32 to index
    %c0_64 = arith.constant 0 : index
    %128 = vector.load %arg10[%127, %c0_64] : memref<64x512xf32, #tpu.memory_space<vmem>>, vector<8x512xf32>
    %c0_65 = arith.constant 0 : index
    %c0_66 = arith.constant 0 : index
    %129 = vector.load %arg12[%c0_65, %c0_66] : memref<8x128xf32, #tpu.memory_space<vmem>>, vector<8x128xf32>
    %c0_67 = arith.constant 0 : index
    %c0_68 = arith.constant 0 : index
    %130 = vector.load %arg2[%c0_67, %c0_68] : memref<128x512xf32, #tpu.memory_space<vmem>>, vector<128x512xf32>
    %cst_69 = arith.constant dense<0.000000e+00> : vector<8x512xf32>
    %131 = tpu.matmul %129, %130, %cst_69 {dimension_numbers = #tpu.dot_dimension_numbers<[1], [0], [0], [1], [0, 0, 1, 1], [], []>} : vector<8x128xf32>, vector<128x512xf32>, vector<8x512xf32> -> vector<8x512xf32>
    %132 = arith.addf %128, %131 : vector<8x512xf32>
    %133 = vector.extract_strided_slice %132 {offsets = [0, 0], sizes = [8, 128], strides = [1, 1]} : vector<8x512xf32> to vector<8x128xf32>
    %134 = arith.negf %133 : vector<8x128xf32>
    %135 = math.exp %134 : vector<8x128xf32>
    %cst_70 = arith.constant 1.000000e+00 : f32
    %136 = vector.broadcast %cst_70 : f32 to vector<8x128xf32>
    %137 = arith.addf %136, %135 : vector<8x128xf32>
    %138 = arith.divf %136, %137 : vector<8x128xf32>
    %139 = vector.extract_strided_slice %132 {offsets = [0, 128], sizes = [8, 128], strides = [1, 1]} : vector<8x512xf32> to vector<8x128xf32>
    %140 = arith.negf %139 : vector<8x128xf32>
    %141 = math.exp %140 : vector<8x128xf32>
    %cst_71 = arith.constant 1.000000e+00 : f32
    %142 = vector.broadcast %cst_71 : f32 to vector<8x128xf32>
    %143 = arith.addf %142, %141 : vector<8x128xf32>
    %144 = arith.divf %142, %143 : vector<8x128xf32>
    %145 = vector.extract_strided_slice %132 {offsets = [0, 256], sizes = [8, 128], strides = [1, 1]} : vector<8x512xf32> to vector<8x128xf32>
    %146 = math.tanh %145 : vector<8x128xf32>
    %147 = vector.extract_strided_slice %132 {offsets = [0, 384], sizes = [8, 128], strides = [1, 1]} : vector<8x512xf32> to vector<8x128xf32>
    %148 = arith.negf %147 : vector<8x128xf32>
    %149 = math.exp %148 : vector<8x128xf32>
    %cst_72 = arith.constant 1.000000e+00 : f32
    %150 = vector.broadcast %cst_72 : f32 to vector<8x128xf32>
    %151 = arith.addf %150, %149 : vector<8x128xf32>
    %152 = arith.divf %150, %151 : vector<8x128xf32>
    %c0_73 = arith.constant 0 : index
    %c0_74 = arith.constant 0 : index
    %153 = vector.load %arg13[%c0_73, %c0_74] : memref<8x128xf32, #tpu.memory_space<vmem>>, vector<8x128xf32>
    %154 = arith.mulf %144, %153 : vector<8x128xf32>
    %155 = arith.mulf %138, %146 : vector<8x128xf32>
    %156 = arith.addf %154, %155 : vector<8x128xf32>
    %157 = math.tanh %156 : vector<8x128xf32>
    %158 = arith.mulf %152, %157 : vector<8x128xf32>
    %c0_75 = arith.constant 0 : index
    %c0_76 = arith.constant 0 : index
    %159 = vector.load %arg13[%c0_75, %c0_76] : memref<8x128xf32, #tpu.memory_space<vmem>>, vector<8x128xf32>
    tpu.vector_store %arg13[%c0_75, %c0_76], %156 {strides = array<i32>} : memref<8x128xf32, #tpu.memory_space<vmem>>, vector<8x128xf32>,
    %c0_77 = arith.constant 0 : index
    %c0_78 = arith.constant 0 : index
    %160 = vector.load %arg12[%c0_77, %c0_78] : memref<8x128xf32, #tpu.memory_space<vmem>>, vector<8x128xf32>
    tpu.vector_store %arg12[%c0_77, %c0_78], %158 {strides = array<i32>} : memref<8x128xf32, #tpu.memory_space<vmem>>, vector<8x128xf32>,
    %161 = arith.index_cast %126 : i32 to index
    %c0_79 = arith.constant 0 : index
    %162 = vector.load %arg11[%161, %c0_79] : memref<64x128xf32, #tpu.memory_space<vmem>>, vector<8x128xf32>
    tpu.vector_store %arg11[%161, %c0_79], %158 {strides = array<i32>} : memref<64x128xf32, #tpu.memory_space<vmem>>, vector<8x128xf32>,
    %c4_i32 = arith.constant 4 : i32
    %c8_i32_80 = arith.constant 8 : i32
    %163 = arith.muli %c4_i32, %c8_i32_80 : i32
    %164 = tpu.assume_multiple %163, 8 : i32
    %165 = arith.index_cast %164 : i32 to index
    %c0_81 = arith.constant 0 : index
    %166 = vector.load %arg10[%165, %c0_81] : memref<64x512xf32, #tpu.memory_space<vmem>>, vector<8x512xf32>
    %c0_82 = arith.constant 0 : index
    %c0_83 = arith.constant 0 : index
    %167 = vector.load %arg12[%c0_82, %c0_83] : memref<8x128xf32, #tpu.memory_space<vmem>>, vector<8x128xf32>
    %c0_84 = arith.constant 0 : index
    %c0_85 = arith.constant 0 : index
    %168 = vector.load %arg2[%c0_84, %c0_85] : memref<128x512xf32, #tpu.memory_space<vmem>>, vector<128x512xf32>
    %cst_86 = arith.constant dense<0.000000e+00> : vector<8x512xf32>
    %169 = tpu.matmul %167, %168, %cst_86 {dimension_numbers = #tpu.dot_dimension_numbers<[1], [0], [0], [1], [0, 0, 1, 1], [], []>} : vector<8x128xf32>, vector<128x512xf32>, vector<8x512xf32> -> vector<8x512xf32>
    %170 = arith.addf %166, %169 : vector<8x512xf32>
    %171 = vector.extract_strided_slice %170 {offsets = [0, 0], sizes = [8, 128], strides = [1, 1]} : vector<8x512xf32> to vector<8x128xf32>
    %172 = arith.negf %171 : vector<8x128xf32>
    %173 = math.exp %172 : vector<8x128xf32>
    %cst_87 = arith.constant 1.000000e+00 : f32
    %174 = vector.broadcast %cst_87 : f32 to vector<8x128xf32>
    %175 = arith.addf %174, %173 : vector<8x128xf32>
    %176 = arith.divf %174, %175 : vector<8x128xf32>
    %177 = vector.extract_strided_slice %170 {offsets = [0, 128], sizes = [8, 128], strides = [1, 1]} : vector<8x512xf32> to vector<8x128xf32>
    %178 = arith.negf %177 : vector<8x128xf32>
    %179 = math.exp %178 : vector<8x128xf32>
    %cst_88 = arith.constant 1.000000e+00 : f32
    %180 = vector.broadcast %cst_88 : f32 to vector<8x128xf32>
    %181 = arith.addf %180, %179 : vector<8x128xf32>
    %182 = arith.divf %180, %181 : vector<8x128xf32>
    %183 = vector.extract_strided_slice %170 {offsets = [0, 256], sizes = [8, 128], strides = [1, 1]} : vector<8x512xf32> to vector<8x128xf32>
    %184 = math.tanh %183 : vector<8x128xf32>
    %185 = vector.extract_strided_slice %170 {offsets = [0, 384], sizes = [8, 128], strides = [1, 1]} : vector<8x512xf32> to vector<8x128xf32>
    %186 = arith.negf %185 : vector<8x128xf32>
    %187 = math.exp %186 : vector<8x128xf32>
    %cst_89 = arith.constant 1.000000e+00 : f32
    %188 = vector.broadcast %cst_89 : f32 to vector<8x128xf32>
    %189 = arith.addf %188, %187 : vector<8x128xf32>
    %190 = arith.divf %188, %189 : vector<8x128xf32>
    %c0_90 = arith.constant 0 : index
    %c0_91 = arith.constant 0 : index
    %191 = vector.load %arg13[%c0_90, %c0_91] : memref<8x128xf32, #tpu.memory_space<vmem>>, vector<8x128xf32>
    %192 = arith.mulf %182, %191 : vector<8x128xf32>
    %193 = arith.mulf %176, %184 : vector<8x128xf32>
    %194 = arith.addf %192, %193 : vector<8x128xf32>
    %195 = math.tanh %194 : vector<8x128xf32>
    %196 = arith.mulf %190, %195 : vector<8x128xf32>
    %c0_92 = arith.constant 0 : index
    %c0_93 = arith.constant 0 : index
    %197 = vector.load %arg13[%c0_92, %c0_93] : memref<8x128xf32, #tpu.memory_space<vmem>>, vector<8x128xf32>
    tpu.vector_store %arg13[%c0_92, %c0_93], %194 {strides = array<i32>} : memref<8x128xf32, #tpu.memory_space<vmem>>, vector<8x128xf32>,
    %c0_94 = arith.constant 0 : index
    %c0_95 = arith.constant 0 : index
    %198 = vector.load %arg12[%c0_94, %c0_95] : memref<8x128xf32, #tpu.memory_space<vmem>>, vector<8x128xf32>
    tpu.vector_store %arg12[%c0_94, %c0_95], %196 {strides = array<i32>} : memref<8x128xf32, #tpu.memory_space<vmem>>, vector<8x128xf32>,
    %199 = arith.index_cast %164 : i32 to index
    %c0_96 = arith.constant 0 : index
    %200 = vector.load %arg11[%199, %c0_96] : memref<64x128xf32, #tpu.memory_space<vmem>>, vector<8x128xf32>
    tpu.vector_store %arg11[%199, %c0_96], %196 {strides = array<i32>} : memref<64x128xf32, #tpu.memory_space<vmem>>, vector<8x128xf32>,
    %c5_i32 = arith.constant 5 : i32
    %c8_i32_97 = arith.constant 8 : i32
    %201 = arith.muli %c5_i32, %c8_i32_97 : i32
    %202 = tpu.assume_multiple %201, 8 : i32
    %203 = arith.index_cast %202 : i32 to index
    %c0_98 = arith.constant 0 : index
    %204 = vector.load %arg10[%203, %c0_98] : memref<64x512xf32, #tpu.memory_space<vmem>>, vector<8x512xf32>
    %c0_99 = arith.constant 0 : index
    %c0_100 = arith.constant 0 : index
    %205 = vector.load %arg12[%c0_99, %c0_100] : memref<8x128xf32, #tpu.memory_space<vmem>>, vector<8x128xf32>
    %c0_101 = arith.constant 0 : index
    %c0_102 = arith.constant 0 : index
    %206 = vector.load %arg2[%c0_101, %c0_102] : memref<128x512xf32, #tpu.memory_space<vmem>>, vector<128x512xf32>
    %cst_103 = arith.constant dense<0.000000e+00> : vector<8x512xf32>
    %207 = tpu.matmul %205, %206, %cst_103 {dimension_numbers = #tpu.dot_dimension_numbers<[1], [0], [0], [1], [0, 0, 1, 1], [], []>} : vector<8x128xf32>, vector<128x512xf32>, vector<8x512xf32> -> vector<8x512xf32>
    %208 = arith.addf %204, %207 : vector<8x512xf32>
    %209 = vector.extract_strided_slice %208 {offsets = [0, 0], sizes = [8, 128], strides = [1, 1]} : vector<8x512xf32> to vector<8x128xf32>
    %210 = arith.negf %209 : vector<8x128xf32>
    %211 = math.exp %210 : vector<8x128xf32>
    %cst_104 = arith.constant 1.000000e+00 : f32
    %212 = vector.broadcast %cst_104 : f32 to vector<8x128xf32>
    %213 = arith.addf %212, %211 : vector<8x128xf32>
    %214 = arith.divf %212, %213 : vector<8x128xf32>
    %215 = vector.extract_strided_slice %208 {offsets = [0, 128], sizes = [8, 128], strides = [1, 1]} : vector<8x512xf32> to vector<8x128xf32>
    %216 = arith.negf %215 : vector<8x128xf32>
    %217 = math.exp %216 : vector<8x128xf32>
    %cst_105 = arith.constant 1.000000e+00 : f32
    %218 = vector.broadcast %cst_105 : f32 to vector<8x128xf32>
    %219 = arith.addf %218, %217 : vector<8x128xf32>
    %220 = arith.divf %218, %219 : vector<8x128xf32>
    %221 = vector.extract_strided_slice %208 {offsets = [0, 256], sizes = [8, 128], strides = [1, 1]} : vector<8x512xf32> to vector<8x128xf32>
    %222 = math.tanh %221 : vector<8x128xf32>
    %223 = vector.extract_strided_slice %208 {offsets = [0, 384], sizes = [8, 128], strides = [1, 1]} : vector<8x512xf32> to vector<8x128xf32>
    %224 = arith.negf %223 : vector<8x128xf32>
    %225 = math.exp %224 : vector<8x128xf32>
    %cst_106 = arith.constant 1.000000e+00 : f32
    %226 = vector.broadcast %cst_106 : f32 to vector<8x128xf32>
    %227 = arith.addf %226, %225 : vector<8x128xf32>
    %228 = arith.divf %226, %227 : vector<8x128xf32>
    %c0_107 = arith.constant 0 : index
    %c0_108 = arith.constant 0 : index
    %229 = vector.load %arg13[%c0_107, %c0_108] : memref<8x128xf32, #tpu.memory_space<vmem>>, vector<8x128xf32>
    %230 = arith.mulf %220, %229 : vector<8x128xf32>
    %231 = arith.mulf %214, %222 : vector<8x128xf32>
    %232 = arith.addf %230, %231 : vector<8x128xf32>
    %233 = math.tanh %232 : vector<8x128xf32>
    %234 = arith.mulf %228, %233 : vector<8x128xf32>
    %c0_109 = arith.constant 0 : index
    %c0_110 = arith.constant 0 : index
    %235 = vector.load %arg13[%c0_109, %c0_110] : memref<8x128xf32, #tpu.memory_space<vmem>>, vector<8x128xf32>
    tpu.vector_store %arg13[%c0_109, %c0_110], %232 {strides = array<i32>} : memref<8x128xf32, #tpu.memory_space<vmem>>, vector<8x128xf32>,
    %c0_111 = arith.constant 0 : index
    %c0_112 = arith.constant 0 : index
    %236 = vector.load %arg12[%c0_111, %c0_112] : memref<8x128xf32, #tpu.memory_space<vmem>>, vector<8x128xf32>
    tpu.vector_store %arg12[%c0_111, %c0_112], %234 {strides = array<i32>} : memref<8x128xf32, #tpu.memory_space<vmem>>, vector<8x128xf32>,
    %237 = arith.index_cast %202 : i32 to index
    %c0_113 = arith.constant 0 : index
    %238 = vector.load %arg11[%237, %c0_113] : memref<64x128xf32, #tpu.memory_space<vmem>>, vector<8x128xf32>
    tpu.vector_store %arg11[%237, %c0_113], %234 {strides = array<i32>} : memref<64x128xf32, #tpu.memory_space<vmem>>, vector<8x128xf32>,
    %c6_i32 = arith.constant 6 : i32
    %c8_i32_114 = arith.constant 8 : i32
    %239 = arith.muli %c6_i32, %c8_i32_114 : i32
    %240 = tpu.assume_multiple %239, 8 : i32
    %241 = arith.index_cast %240 : i32 to index
    %c0_115 = arith.constant 0 : index
    %242 = vector.load %arg10[%241, %c0_115] : memref<64x512xf32, #tpu.memory_space<vmem>>, vector<8x512xf32>
    %c0_116 = arith.constant 0 : index
    %c0_117 = arith.constant 0 : index
    %243 = vector.load %arg12[%c0_116, %c0_117] : memref<8x128xf32, #tpu.memory_space<vmem>>, vector<8x128xf32>
    %c0_118 = arith.constant 0 : index
    %c0_119 = arith.constant 0 : index
    %244 = vector.load %arg2[%c0_118, %c0_119] : memref<128x512xf32, #tpu.memory_space<vmem>>, vector<128x512xf32>
    %cst_120 = arith.constant dense<0.000000e+00> : vector<8x512xf32>
    %245 = tpu.matmul %243, %244, %cst_120 {dimension_numbers = #tpu.dot_dimension_numbers<[1], [0], [0], [1], [0, 0, 1, 1], [], []>} : vector<8x128xf32>, vector<128x512xf32>, vector<8x512xf32> -> vector<8x512xf32>
    %246 = arith.addf %242, %245 : vector<8x512xf32>
    %247 = vector.extract_strided_slice %246 {offsets = [0, 0], sizes = [8, 128], strides = [1, 1]} : vector<8x512xf32> to vector<8x128xf32>
    %248 = arith.negf %247 : vector<8x128xf32>
    %249 = math.exp %248 : vector<8x128xf32>
    %cst_121 = arith.constant 1.000000e+00 : f32
    %250 = vector.broadcast %cst_121 : f32 to vector<8x128xf32>
    %251 = arith.addf %250, %249 : vector<8x128xf32>
    %252 = arith.divf %250, %251 : vector<8x128xf32>
    %253 = vector.extract_strided_slice %246 {offsets = [0, 128], sizes = [8, 128], strides = [1, 1]} : vector<8x512xf32> to vector<8x128xf32>
    %254 = arith.negf %253 : vector<8x128xf32>
    %255 = math.exp %254 : vector<8x128xf32>
    %cst_122 = arith.constant 1.000000e+00 : f32
    %256 = vector.broadcast %cst_122 : f32 to vector<8x128xf32>
    %257 = arith.addf %256, %255 : vector<8x128xf32>
    %258 = arith.divf %256, %257 : vector<8x128xf32>
    %259 = vector.extract_strided_slice %246 {offsets = [0, 256], sizes = [8, 128], strides = [1, 1]} : vector<8x512xf32> to vector<8x128xf32>
    %260 = math.tanh %259 : vector<8x128xf32>
    %261 = vector.extract_strided_slice %246 {offsets = [0, 384], sizes = [8, 128], strides = [1, 1]} : vector<8x512xf32> to vector<8x128xf32>
    %262 = arith.negf %261 : vector<8x128xf32>
    %263 = math.exp %262 : vector<8x128xf32>
    %cst_123 = arith.constant 1.000000e+00 : f32
    %264 = vector.broadcast %cst_123 : f32 to vector<8x128xf32>
    %265 = arith.addf %264, %263 : vector<8x128xf32>
    %266 = arith.divf %264, %265 : vector<8x128xf32>
    %c0_124 = arith.constant 0 : index
    %c0_125 = arith.constant 0 : index
    %267 = vector.load %arg13[%c0_124, %c0_125] : memref<8x128xf32, #tpu.memory_space<vmem>>, vector<8x128xf32>
    %268 = arith.mulf %258, %267 : vector<8x128xf32>
    %269 = arith.mulf %252, %260 : vector<8x128xf32>
    %270 = arith.addf %268, %269 : vector<8x128xf32>
    %271 = math.tanh %270 : vector<8x128xf32>
    %272 = arith.mulf %266, %271 : vector<8x128xf32>
    %c0_126 = arith.constant 0 : index
    %c0_127 = arith.constant 0 : index
    %273 = vector.load %arg13[%c0_126, %c0_127] : memref<8x128xf32, #tpu.memory_space<vmem>>, vector<8x128xf32>
    tpu.vector_store %arg13[%c0_126, %c0_127], %270 {strides = array<i32>} : memref<8x128xf32, #tpu.memory_space<vmem>>, vector<8x128xf32>,
    %c0_128 = arith.constant 0 : index
    %c0_129 = arith.constant 0 : index
    %274 = vector.load %arg12[%c0_128, %c0_129] : memref<8x128xf32, #tpu.memory_space<vmem>>, vector<8x128xf32>
    tpu.vector_store %arg12[%c0_128, %c0_129], %272 {strides = array<i32>} : memref<8x128xf32, #tpu.memory_space<vmem>>, vector<8x128xf32>,
    %275 = arith.index_cast %240 : i32 to index
    %c0_130 = arith.constant 0 : index
    %276 = vector.load %arg11[%275, %c0_130] : memref<64x128xf32, #tpu.memory_space<vmem>>, vector<8x128xf32>
    tpu.vector_store %arg11[%275, %c0_130], %272 {strides = array<i32>} : memref<64x128xf32, #tpu.memory_space<vmem>>, vector<8x128xf32>,
    %c7_i32 = arith.constant 7 : i32
    %c8_i32_131 = arith.constant 8 : i32
    %277 = arith.muli %c7_i32, %c8_i32_131 : i32
    %278 = tpu.assume_multiple %277, 8 : i32
    %279 = arith.index_cast %278 : i32 to index
    %c0_132 = arith.constant 0 : index
    %280 = vector.load %arg10[%279, %c0_132] : memref<64x512xf32, #tpu.memory_space<vmem>>, vector<8x512xf32>
    %c0_133 = arith.constant 0 : index
    %c0_134 = arith.constant 0 : index
    %281 = vector.load %arg12[%c0_133, %c0_134] : memref<8x128xf32, #tpu.memory_space<vmem>>, vector<8x128xf32>
    %c0_135 = arith.constant 0 : index
    %c0_136 = arith.constant 0 : index
    %282 = vector.load %arg2[%c0_135, %c0_136] : memref<128x512xf32, #tpu.memory_space<vmem>>, vector<128x512xf32>
    %cst_137 = arith.constant dense<0.000000e+00> : vector<8x512xf32>
    %283 = tpu.matmul %281, %282, %cst_137 {dimension_numbers = #tpu.dot_dimension_numbers<[1], [0], [0], [1], [0, 0, 1, 1], [], []>} : vector<8x128xf32>, vector<128x512xf32>, vector<8x512xf32> -> vector<8x512xf32>
    %284 = arith.addf %280, %283 : vector<8x512xf32>
    %285 = vector.extract_strided_slice %284 {offsets = [0, 0], sizes = [8, 128], strides = [1, 1]} : vector<8x512xf32> to vector<8x128xf32>
    %286 = arith.negf %285 : vector<8x128xf32>
    %287 = math.exp %286 : vector<8x128xf32>
    %cst_138 = arith.constant 1.000000e+00 : f32
    %288 = vector.broadcast %cst_138 : f32 to vector<8x128xf32>
    %289 = arith.addf %288, %287 : vector<8x128xf32>
    %290 = arith.divf %288, %289 : vector<8x128xf32>
    %291 = vector.extract_strided_slice %284 {offsets = [0, 128], sizes = [8, 128], strides = [1, 1]} : vector<8x512xf32> to vector<8x128xf32>
    %292 = arith.negf %291 : vector<8x128xf32>
    %293 = math.exp %292 : vector<8x128xf32>
    %cst_139 = arith.constant 1.000000e+00 : f32
    %294 = vector.broadcast %cst_139 : f32 to vector<8x128xf32>
    %295 = arith.addf %294, %293 : vector<8x128xf32>
    %296 = arith.divf %294, %295 : vector<8x128xf32>
    %297 = vector.extract_strided_slice %284 {offsets = [0, 256], sizes = [8, 128], strides = [1, 1]} : vector<8x512xf32> to vector<8x128xf32>
    %298 = math.tanh %297 : vector<8x128xf32>
    %299 = vector.extract_strided_slice %284 {offsets = [0, 384], sizes = [8, 128], strides = [1, 1]} : vector<8x512xf32> to vector<8x128xf32>
    %300 = arith.negf %299 : vector<8x128xf32>
    %301 = math.exp %300 : vector<8x128xf32>
    %cst_140 = arith.constant 1.000000e+00 : f32
    %302 = vector.broadcast %cst_140 : f32 to vector<8x128xf32>
    %303 = arith.addf %302, %301 : vector<8x128xf32>
    %304 = arith.divf %302, %303 : vector<8x128xf32>
    %c0_141 = arith.constant 0 : index
    %c0_142 = arith.constant 0 : index
    %305 = vector.load %arg13[%c0_141, %c0_142] : memref<8x128xf32, #tpu.memory_space<vmem>>, vector<8x128xf32>
    %306 = arith.mulf %296, %305 : vector<8x128xf32>
    %307 = arith.mulf %290, %298 : vector<8x128xf32>
    %308 = arith.addf %306, %307 : vector<8x128xf32>
    %309 = math.tanh %308 : vector<8x128xf32>
    %310 = arith.mulf %304, %309 : vector<8x128xf32>
    %c0_143 = arith.constant 0 : index
    %c0_144 = arith.constant 0 : index
    %311 = vector.load %arg13[%c0_143, %c0_144] : memref<8x128xf32, #tpu.memory_space<vmem>>, vector<8x128xf32>
    tpu.vector_store %arg13[%c0_143, %c0_144], %308 {strides = array<i32>} : memref<8x128xf32, #tpu.memory_space<vmem>>, vector<8x128xf32>,
    %c0_145 = arith.constant 0 : index
    %c0_146 = arith.constant 0 : index
    %312 = vector.load %arg12[%c0_145, %c0_146] : memref<8x128xf32, #tpu.memory_space<vmem>>, vector<8x128xf32>
    tpu.vector_store %arg12[%c0_145, %c0_146], %310 {strides = array<i32>} : memref<8x128xf32, #tpu.memory_space<vmem>>, vector<8x128xf32>,
    %313 = arith.index_cast %278 : i32 to index
    %c0_147 = arith.constant 0 : index
    %314 = vector.load %arg11[%313, %c0_147] : memref<64x128xf32, #tpu.memory_space<vmem>>, vector<8x128xf32>
    tpu.vector_store %arg11[%313, %c0_147], %310 {strides = array<i32>} : memref<64x128xf32, #tpu.memory_space<vmem>>, vector<8x128xf32>,
    %c8_i32_148 = arith.constant 8 : i32
    %c0_149 = arith.constant 0 : index
    %c0_150 = arith.constant 0 : index
    %315 = vector.load %arg11[%c0_149, %c0_150] : memref<64x128xf32, #tpu.memory_space<vmem>>, vector<64x128xf32>
    %c0_151 = arith.constant 0 : index
    %c0_152 = arith.constant 0 : index
    %316 = vector.load %arg4[%c0_151, %c0_152] : memref<128x512xf32, #tpu.memory_space<vmem>>, vector<128x512xf32>
    %cst_153 = arith.constant dense<0.000000e+00> : vector<64x512xf32>
    %317 = tpu.matmul %315, %316, %cst_153 {dimension_numbers = #tpu.dot_dimension_numbers<[1], [0], [0], [1], [0, 0, 1, 1], [], []>} : vector<64x128xf32>, vector<128x512xf32>, vector<64x512xf32> -> vector<64x512xf32>
    %c0_154 = arith.constant 0 : index
    %c0_155 = arith.constant 0 : index
    %318 = vector.load %arg6[%c0_154, %c0_155] : memref<1x512xf32, #tpu.memory_space<vmem>>, vector<1x512xf32>
    %319 = vector.broadcast %318 : vector<1x512xf32> to vector<64x512xf32>
    %320 = arith.addf %317, %319 : vector<64x512xf32>
    %c0_156 = arith.constant 0 : index
    %c0_157 = arith.constant 0 : index
    %321 = vector.load %arg10[%c0_156, %c0_157] : memref<64x512xf32, #tpu.memory_space<vmem>>, vector<64x512xf32>
    tpu.vector_store %arg10[%c0_156, %c0_157], %320 {strides = array<i32>} : memref<64x512xf32, #tpu.memory_space<vmem>>, vector<64x512xf32>,
    %cst_158 = arith.constant 0.000000e+00 : f32
    %322 = vector.broadcast %cst_158 : f32 to vector<8x128xf32>
    %c0_159 = arith.constant 0 : index
    %c0_160 = arith.constant 0 : index
    %323 = vector.load %arg12[%c0_159, %c0_160] : memref<8x128xf32, #tpu.memory_space<vmem>>, vector<8x128xf32>
    tpu.vector_store %arg12[%c0_159, %c0_160], %322 {strides = array<i32>} : memref<8x128xf32, #tpu.memory_space<vmem>>, vector<8x128xf32>,
    %cst_161 = arith.constant 0.000000e+00 : f32
    %324 = vector.broadcast %cst_161 : f32 to vector<8x128xf32>
    %c0_162 = arith.constant 0 : index
    %c0_163 = arith.constant 0 : index
    %325 = vector.load %arg13[%c0_162, %c0_163] : memref<8x128xf32, #tpu.memory_space<vmem>>, vector<8x128xf32>
    tpu.vector_store %arg13[%c0_162, %c0_163], %324 {strides = array<i32>} : memref<8x128xf32, #tpu.memory_space<vmem>>, vector<8x128xf32>,
    %c0_i32_164 = arith.constant 0 : i32
    %c8_i32_165 = arith.constant 8 : i32
    %326 = arith.muli %c0_i32_164, %c8_i32_165 : i32
    %327 = tpu.assume_multiple %326, 8 : i32
    %328 = arith.index_cast %327 : i32 to index
    %c0_166 = arith.constant 0 : index
    %329 = vector.load %arg10[%328, %c0_166] : memref<64x512xf32, #tpu.memory_space<vmem>>, vector<8x512xf32>
    %c0_167 = arith.constant 0 : index
    %c0_168 = arith.constant 0 : index
    %330 = vector.load %arg12[%c0_167, %c0_168] : memref<8x128xf32, #tpu.memory_space<vmem>>, vector<8x128xf32>
    %c0_169 = arith.constant 0 : index
    %c0_170 = arith.constant 0 : index
    %331 = vector.load %arg5[%c0_169, %c0_170] : memref<128x512xf32, #tpu.memory_space<vmem>>, vector<128x512xf32>
    %cst_171 = arith.constant dense<0.000000e+00> : vector<8x512xf32>
    %332 = tpu.matmul %330, %331, %cst_171 {dimension_numbers = #tpu.dot_dimension_numbers<[1], [0], [0], [1], [0, 0, 1, 1], [], []>} : vector<8x128xf32>, vector<128x512xf32>, vector<8x512xf32> -> vector<8x512xf32>
    %333 = arith.addf %329, %332 : vector<8x512xf32>
    %334 = vector.extract_strided_slice %333 {offsets = [0, 0], sizes = [8, 128], strides = [1, 1]} : vector<8x512xf32> to vector<8x128xf32>
    %335 = arith.negf %334 : vector<8x128xf32>
    %336 = math.exp %335 : vector<8x128xf32>
    %cst_172 = arith.constant 1.000000e+00 : f32
    %337 = vector.broadcast %cst_172 : f32 to vector<8x128xf32>
    %338 = arith.addf %337, %336 : vector<8x128xf32>
    %339 = arith.divf %337, %338 : vector<8x128xf32>
    %340 = vector.extract_strided_slice %333 {offsets = [0, 128], sizes = [8, 128], strides = [1, 1]} : vector<8x512xf32> to vector<8x128xf32>
    %341 = arith.negf %340 : vector<8x128xf32>
    %342 = math.exp %341 : vector<8x128xf32>
    %cst_173 = arith.constant 1.000000e+00 : f32
    %343 = vector.broadcast %cst_173 : f32 to vector<8x128xf32>
    %344 = arith.addf %343, %342 : vector<8x128xf32>
    %345 = arith.divf %343, %344 : vector<8x128xf32>
    %346 = vector.extract_strided_slice %333 {offsets = [0, 256], sizes = [8, 128], strides = [1, 1]} : vector<8x512xf32> to vector<8x128xf32>
    %347 = math.tanh %346 : vector<8x128xf32>
    %348 = vector.extract_strided_slice %333 {offsets = [0, 384], sizes = [8, 128], strides = [1, 1]} : vector<8x512xf32> to vector<8x128xf32>
    %349 = arith.negf %348 : vector<8x128xf32>
    %350 = math.exp %349 : vector<8x128xf32>
    %cst_174 = arith.constant 1.000000e+00 : f32
    %351 = vector.broadcast %cst_174 : f32 to vector<8x128xf32>
    %352 = arith.addf %351, %350 : vector<8x128xf32>
    %353 = arith.divf %351, %352 : vector<8x128xf32>
    %c0_175 = arith.constant 0 : index
    %c0_176 = arith.constant 0 : index
    %354 = vector.load %arg13[%c0_175, %c0_176] : memref<8x128xf32, #tpu.memory_space<vmem>>, vector<8x128xf32>
    %355 = arith.mulf %345, %354 : vector<8x128xf32>
    %356 = arith.mulf %339, %347 : vector<8x128xf32>
    %357 = arith.addf %355, %356 : vector<8x128xf32>
    %358 = math.tanh %357 : vector<8x128xf32>
    %359 = arith.mulf %353, %358 : vector<8x128xf32>
    %c0_177 = arith.constant 0 : index
    %c0_178 = arith.constant 0 : index
    %360 = vector.load %arg13[%c0_177, %c0_178] : memref<8x128xf32, #tpu.memory_space<vmem>>, vector<8x128xf32>
    tpu.vector_store %arg13[%c0_177, %c0_178], %357 {strides = array<i32>} : memref<8x128xf32, #tpu.memory_space<vmem>>, vector<8x128xf32>,
    %c0_179 = arith.constant 0 : index
    %c0_180 = arith.constant 0 : index
    %361 = vector.load %arg12[%c0_179, %c0_180] : memref<8x128xf32, #tpu.memory_space<vmem>>, vector<8x128xf32>
    tpu.vector_store %arg12[%c0_179, %c0_180], %359 {strides = array<i32>} : memref<8x128xf32, #tpu.memory_space<vmem>>, vector<8x128xf32>,
    %362 = arith.index_cast %327 : i32 to index
    %c0_181 = arith.constant 0 : index
    %363 = vector.load %arg11[%362, %c0_181] : memref<64x128xf32, #tpu.memory_space<vmem>>, vector<8x128xf32>
    tpu.vector_store %arg11[%362, %c0_181], %359 {strides = array<i32>} : memref<64x128xf32, #tpu.memory_space<vmem>>, vector<8x128xf32>,
    %c1_i32_182 = arith.constant 1 : i32
    %c8_i32_183 = arith.constant 8 : i32
    %364 = arith.muli %c1_i32_182, %c8_i32_183 : i32
    %365 = tpu.assume_multiple %364, 8 : i32
    %366 = arith.index_cast %365 : i32 to index
    %c0_184 = arith.constant 0 : index
    %367 = vector.load %arg10[%366, %c0_184] : memref<64x512xf32, #tpu.memory_space<vmem>>, vector<8x512xf32>
    %c0_185 = arith.constant 0 : index
    %c0_186 = arith.constant 0 : index
    %368 = vector.load %arg12[%c0_185, %c0_186] : memref<8x128xf32, #tpu.memory_space<vmem>>, vector<8x128xf32>
    %c0_187 = arith.constant 0 : index
    %c0_188 = arith.constant 0 : index
    %369 = vector.load %arg5[%c0_187, %c0_188] : memref<128x512xf32, #tpu.memory_space<vmem>>, vector<128x512xf32>
    %cst_189 = arith.constant dense<0.000000e+00> : vector<8x512xf32>
    %370 = tpu.matmul %368, %369, %cst_189 {dimension_numbers = #tpu.dot_dimension_numbers<[1], [0], [0], [1], [0, 0, 1, 1], [], []>} : vector<8x128xf32>, vector<128x512xf32>, vector<8x512xf32> -> vector<8x512xf32>
    %371 = arith.addf %367, %370 : vector<8x512xf32>
    %372 = vector.extract_strided_slice %371 {offsets = [0, 0], sizes = [8, 128], strides = [1, 1]} : vector<8x512xf32> to vector<8x128xf32>
    %373 = arith.negf %372 : vector<8x128xf32>
    %374 = math.exp %373 : vector<8x128xf32>
    %cst_190 = arith.constant 1.000000e+00 : f32
    %375 = vector.broadcast %cst_190 : f32 to vector<8x128xf32>
    %376 = arith.addf %375, %374 : vector<8x128xf32>
    %377 = arith.divf %375, %376 : vector<8x128xf32>
    %378 = vector.extract_strided_slice %371 {offsets = [0, 128], sizes = [8, 128], strides = [1, 1]} : vector<8x512xf32> to vector<8x128xf32>
    %379 = arith.negf %378 : vector<8x128xf32>
    %380 = math.exp %379 : vector<8x128xf32>
    %cst_191 = arith.constant 1.000000e+00 : f32
    %381 = vector.broadcast %cst_191 : f32 to vector<8x128xf32>
    %382 = arith.addf %381, %380 : vector<8x128xf32>
    %383 = arith.divf %381, %382 : vector<8x128xf32>
    %384 = vector.extract_strided_slice %371 {offsets = [0, 256], sizes = [8, 128], strides = [1, 1]} : vector<8x512xf32> to vector<8x128xf32>
    %385 = math.tanh %384 : vector<8x128xf32>
    %386 = vector.extract_strided_slice %371 {offsets = [0, 384], sizes = [8, 128], strides = [1, 1]} : vector<8x512xf32> to vector<8x128xf32>
    %387 = arith.negf %386 : vector<8x128xf32>
    %388 = math.exp %387 : vector<8x128xf32>
    %cst_192 = arith.constant 1.000000e+00 : f32
    %389 = vector.broadcast %cst_192 : f32 to vector<8x128xf32>
    %390 = arith.addf %389, %388 : vector<8x128xf32>
    %391 = arith.divf %389, %390 : vector<8x128xf32>
    %c0_193 = arith.constant 0 : index
    %c0_194 = arith.constant 0 : index
    %392 = vector.load %arg13[%c0_193, %c0_194] : memref<8x128xf32, #tpu.memory_space<vmem>>, vector<8x128xf32>
    %393 = arith.mulf %383, %392 : vector<8x128xf32>
    %394 = arith.mulf %377, %385 : vector<8x128xf32>
    %395 = arith.addf %393, %394 : vector<8x128xf32>
    %396 = math.tanh %395 : vector<8x128xf32>
    %397 = arith.mulf %391, %396 : vector<8x128xf32>
    %c0_195 = arith.constant 0 : index
    %c0_196 = arith.constant 0 : index
    %398 = vector.load %arg13[%c0_195, %c0_196] : memref<8x128xf32, #tpu.memory_space<vmem>>, vector<8x128xf32>
    tpu.vector_store %arg13[%c0_195, %c0_196], %395 {strides = array<i32>} : memref<8x128xf32, #tpu.memory_space<vmem>>, vector<8x128xf32>,
    %c0_197 = arith.constant 0 : index
    %c0_198 = arith.constant 0 : index
    %399 = vector.load %arg12[%c0_197, %c0_198] : memref<8x128xf32, #tpu.memory_space<vmem>>, vector<8x128xf32>
    tpu.vector_store %arg12[%c0_197, %c0_198], %397 {strides = array<i32>} : memref<8x128xf32, #tpu.memory_space<vmem>>, vector<8x128xf32>,
    %400 = arith.index_cast %365 : i32 to index
    %c0_199 = arith.constant 0 : index
    %401 = vector.load %arg11[%400, %c0_199] : memref<64x128xf32, #tpu.memory_space<vmem>>, vector<8x128xf32>
    tpu.vector_store %arg11[%400, %c0_199], %397 {strides = array<i32>} : memref<64x128xf32, #tpu.memory_space<vmem>>, vector<8x128xf32>,
    %c2_i32_200 = arith.constant 2 : i32
    %c8_i32_201 = arith.constant 8 : i32
    %402 = arith.muli %c2_i32_200, %c8_i32_201 : i32
    %403 = tpu.assume_multiple %402, 8 : i32
    %404 = arith.index_cast %403 : i32 to index
    %c0_202 = arith.constant 0 : index
    %405 = vector.load %arg10[%404, %c0_202] : memref<64x512xf32, #tpu.memory_space<vmem>>, vector<8x512xf32>
    %c0_203 = arith.constant 0 : index
    %c0_204 = arith.constant 0 : index
    %406 = vector.load %arg12[%c0_203, %c0_204] : memref<8x128xf32, #tpu.memory_space<vmem>>, vector<8x128xf32>
    %c0_205 = arith.constant 0 : index
    %c0_206 = arith.constant 0 : index
    %407 = vector.load %arg5[%c0_205, %c0_206] : memref<128x512xf32, #tpu.memory_space<vmem>>, vector<128x512xf32>
    %cst_207 = arith.constant dense<0.000000e+00> : vector<8x512xf32>
    %408 = tpu.matmul %406, %407, %cst_207 {dimension_numbers = #tpu.dot_dimension_numbers<[1], [0], [0], [1], [0, 0, 1, 1], [], []>} : vector<8x128xf32>, vector<128x512xf32>, vector<8x512xf32> -> vector<8x512xf32>
    %409 = arith.addf %405, %408 : vector<8x512xf32>
    %410 = vector.extract_strided_slice %409 {offsets = [0, 0], sizes = [8, 128], strides = [1, 1]} : vector<8x512xf32> to vector<8x128xf32>
    %411 = arith.negf %410 : vector<8x128xf32>
    %412 = math.exp %411 : vector<8x128xf32>
    %cst_208 = arith.constant 1.000000e+00 : f32
    %413 = vector.broadcast %cst_208 : f32 to vector<8x128xf32>
    %414 = arith.addf %413, %412 : vector<8x128xf32>
    %415 = arith.divf %413, %414 : vector<8x128xf32>
    %416 = vector.extract_strided_slice %409 {offsets = [0, 128], sizes = [8, 128], strides = [1, 1]} : vector<8x512xf32> to vector<8x128xf32>
    %417 = arith.negf %416 : vector<8x128xf32>
    %418 = math.exp %417 : vector<8x128xf32>
    %cst_209 = arith.constant 1.000000e+00 : f32
    %419 = vector.broadcast %cst_209 : f32 to vector<8x128xf32>
    %420 = arith.addf %419, %418 : vector<8x128xf32>
    %421 = arith.divf %419, %420 : vector<8x128xf32>
    %422 = vector.extract_strided_slice %409 {offsets = [0, 256], sizes = [8, 128], strides = [1, 1]} : vector<8x512xf32> to vector<8x128xf32>
    %423 = math.tanh %422 : vector<8x128xf32>
    %424 = vector.extract_strided_slice %409 {offsets = [0, 384], sizes = [8, 128], strides = [1, 1]} : vector<8x512xf32> to vector<8x128xf32>
    %425 = arith.negf %424 : vector<8x128xf32>
    %426 = math.exp %425 : vector<8x128xf32>
    %cst_210 = arith.constant 1.000000e+00 : f32
    %427 = vector.broadcast %cst_210 : f32 to vector<8x128xf32>
    %428 = arith.addf %427, %426 : vector<8x128xf32>
    %429 = arith.divf %427, %428 : vector<8x128xf32>
    %c0_211 = arith.constant 0 : index
    %c0_212 = arith.constant 0 : index
    %430 = vector.load %arg13[%c0_211, %c0_212] : memref<8x128xf32, #tpu.memory_space<vmem>>, vector<8x128xf32>
    %431 = arith.mulf %421, %430 : vector<8x128xf32>
    %432 = arith.mulf %415, %423 : vector<8x128xf32>
    %433 = arith.addf %431, %432 : vector<8x128xf32>
    %434 = math.tanh %433 : vector<8x128xf32>
    %435 = arith.mulf %429, %434 : vector<8x128xf32>
    %c0_213 = arith.constant 0 : index
    %c0_214 = arith.constant 0 : index
    %436 = vector.load %arg13[%c0_213, %c0_214] : memref<8x128xf32, #tpu.memory_space<vmem>>, vector<8x128xf32>
    tpu.vector_store %arg13[%c0_213, %c0_214], %433 {strides = array<i32>} : memref<8x128xf32, #tpu.memory_space<vmem>>, vector<8x128xf32>,
    %c0_215 = arith.constant 0 : index
    %c0_216 = arith.constant 0 : index
    %437 = vector.load %arg12[%c0_215, %c0_216] : memref<8x128xf32, #tpu.memory_space<vmem>>, vector<8x128xf32>
    tpu.vector_store %arg12[%c0_215, %c0_216], %435 {strides = array<i32>} : memref<8x128xf32, #tpu.memory_space<vmem>>, vector<8x128xf32>,
    %438 = arith.index_cast %403 : i32 to index
    %c0_217 = arith.constant 0 : index
    %439 = vector.load %arg11[%438, %c0_217] : memref<64x128xf32, #tpu.memory_space<vmem>>, vector<8x128xf32>
    tpu.vector_store %arg11[%438, %c0_217], %435 {strides = array<i32>} : memref<64x128xf32, #tpu.memory_space<vmem>>, vector<8x128xf32>,
    %c3_i32_218 = arith.constant 3 : i32
    %c8_i32_219 = arith.constant 8 : i32
    %440 = arith.muli %c3_i32_218, %c8_i32_219 : i32
    %441 = tpu.assume_multiple %440, 8 : i32
    %442 = arith.index_cast %441 : i32 to index
    %c0_220 = arith.constant 0 : index
    %443 = vector.load %arg10[%442, %c0_220] : memref<64x512xf32, #tpu.memory_space<vmem>>, vector<8x512xf32>
    %c0_221 = arith.constant 0 : index
    %c0_222 = arith.constant 0 : index
    %444 = vector.load %arg12[%c0_221, %c0_222] : memref<8x128xf32, #tpu.memory_space<vmem>>, vector<8x128xf32>
    %c0_223 = arith.constant 0 : index
    %c0_224 = arith.constant 0 : index
    %445 = vector.load %arg5[%c0_223, %c0_224] : memref<128x512xf32, #tpu.memory_space<vmem>>, vector<128x512xf32>
    %cst_225 = arith.constant dense<0.000000e+00> : vector<8x512xf32>
    %446 = tpu.matmul %444, %445, %cst_225 {dimension_numbers = #tpu.dot_dimension_numbers<[1], [0], [0], [1], [0, 0, 1, 1], [], []>} : vector<8x128xf32>, vector<128x512xf32>, vector<8x512xf32> -> vector<8x512xf32>
    %447 = arith.addf %443, %446 : vector<8x512xf32>
    %448 = vector.extract_strided_slice %447 {offsets = [0, 0], sizes = [8, 128], strides = [1, 1]} : vector<8x512xf32> to vector<8x128xf32>
    %449 = arith.negf %448 : vector<8x128xf32>
    %450 = math.exp %449 : vector<8x128xf32>
    %cst_226 = arith.constant 1.000000e+00 : f32
    %451 = vector.broadcast %cst_226 : f32 to vector<8x128xf32>
    %452 = arith.addf %451, %450 : vector<8x128xf32>
    %453 = arith.divf %451, %452 : vector<8x128xf32>
    %454 = vector.extract_strided_slice %447 {offsets = [0, 128], sizes = [8, 128], strides = [1, 1]} : vector<8x512xf32> to vector<8x128xf32>
    %455 = arith.negf %454 : vector<8x128xf32>
    %456 = math.exp %455 : vector<8x128xf32>
    %cst_227 = arith.constant 1.000000e+00 : f32
    %457 = vector.broadcast %cst_227 : f32 to vector<8x128xf32>
    %458 = arith.addf %457, %456 : vector<8x128xf32>
    %459 = arith.divf %457, %458 : vector<8x128xf32>
    %460 = vector.extract_strided_slice %447 {offsets = [0, 256], sizes = [8, 128], strides = [1, 1]} : vector<8x512xf32> to vector<8x128xf32>
    %461 = math.tanh %460 : vector<8x128xf32>
    %462 = vector.extract_strided_slice %447 {offsets = [0, 384], sizes = [8, 128], strides = [1, 1]} : vector<8x512xf32> to vector<8x128xf32>
    %463 = arith.negf %462 : vector<8x128xf32>
    %464 = math.exp %463 : vector<8x128xf32>
    %cst_228 = arith.constant 1.000000e+00 : f32
    %465 = vector.broadcast %cst_228 : f32 to vector<8x128xf32>
    %466 = arith.addf %465, %464 : vector<8x128xf32>
    %467 = arith.divf %465, %466 : vector<8x128xf32>
    %c0_229 = arith.constant 0 : index
    %c0_230 = arith.constant 0 : index
    %468 = vector.load %arg13[%c0_229, %c0_230] : memref<8x128xf32, #tpu.memory_space<vmem>>, vector<8x128xf32>
    %469 = arith.mulf %459, %468 : vector<8x128xf32>
    %470 = arith.mulf %453, %461 : vector<8x128xf32>
    %471 = arith.addf %469, %470 : vector<8x128xf32>
    %472 = math.tanh %471 : vector<8x128xf32>
    %473 = arith.mulf %467, %472 : vector<8x128xf32>
    %c0_231 = arith.constant 0 : index
    %c0_232 = arith.constant 0 : index
    %474 = vector.load %arg13[%c0_231, %c0_232] : memref<8x128xf32, #tpu.memory_space<vmem>>, vector<8x128xf32>
    tpu.vector_store %arg13[%c0_231, %c0_232], %471 {strides = array<i32>} : memref<8x128xf32, #tpu.memory_space<vmem>>, vector<8x128xf32>,
    %c0_233 = arith.constant 0 : index
    %c0_234 = arith.constant 0 : index
    %475 = vector.load %arg12[%c0_233, %c0_234] : memref<8x128xf32, #tpu.memory_space<vmem>>, vector<8x128xf32>
    tpu.vector_store %arg12[%c0_233, %c0_234], %473 {strides = array<i32>} : memref<8x128xf32, #tpu.memory_space<vmem>>, vector<8x128xf32>,
    %476 = arith.index_cast %441 : i32 to index
    %c0_235 = arith.constant 0 : index
    %477 = vector.load %arg11[%476, %c0_235] : memref<64x128xf32, #tpu.memory_space<vmem>>, vector<8x128xf32>
    tpu.vector_store %arg11[%476, %c0_235], %473 {strides = array<i32>} : memref<64x128xf32, #tpu.memory_space<vmem>>, vector<8x128xf32>,
    %c4_i32_236 = arith.constant 4 : i32
    %c8_i32_237 = arith.constant 8 : i32
    %478 = arith.muli %c4_i32_236, %c8_i32_237 : i32
    %479 = tpu.assume_multiple %478, 8 : i32
    %480 = arith.index_cast %479 : i32 to index
    %c0_238 = arith.constant 0 : index
    %481 = vector.load %arg10[%480, %c0_238] : memref<64x512xf32, #tpu.memory_space<vmem>>, vector<8x512xf32>
    %c0_239 = arith.constant 0 : index
    %c0_240 = arith.constant 0 : index
    %482 = vector.load %arg12[%c0_239, %c0_240] : memref<8x128xf32, #tpu.memory_space<vmem>>, vector<8x128xf32>
    %c0_241 = arith.constant 0 : index
    %c0_242 = arith.constant 0 : index
    %483 = vector.load %arg5[%c0_241, %c0_242] : memref<128x512xf32, #tpu.memory_space<vmem>>, vector<128x512xf32>
    %cst_243 = arith.constant dense<0.000000e+00> : vector<8x512xf32>
    %484 = tpu.matmul %482, %483, %cst_243 {dimension_numbers = #tpu.dot_dimension_numbers<[1], [0], [0], [1], [0, 0, 1, 1], [], []>} : vector<8x128xf32>, vector<128x512xf32>, vector<8x512xf32> -> vector<8x512xf32>
    %485 = arith.addf %481, %484 : vector<8x512xf32>
    %486 = vector.extract_strided_slice %485 {offsets = [0, 0], sizes = [8, 128], strides = [1, 1]} : vector<8x512xf32> to vector<8x128xf32>
    %487 = arith.negf %486 : vector<8x128xf32>
    %488 = math.exp %487 : vector<8x128xf32>
    %cst_244 = arith.constant 1.000000e+00 : f32
    %489 = vector.broadcast %cst_244 : f32 to vector<8x128xf32>
    %490 = arith.addf %489, %488 : vector<8x128xf32>
    %491 = arith.divf %489, %490 : vector<8x128xf32>
    %492 = vector.extract_strided_slice %485 {offsets = [0, 128], sizes = [8, 128], strides = [1, 1]} : vector<8x512xf32> to vector<8x128xf32>
    %493 = arith.negf %492 : vector<8x128xf32>
    %494 = math.exp %493 : vector<8x128xf32>
    %cst_245 = arith.constant 1.000000e+00 : f32
    %495 = vector.broadcast %cst_245 : f32 to vector<8x128xf32>
    %496 = arith.addf %495, %494 : vector<8x128xf32>
    %497 = arith.divf %495, %496 : vector<8x128xf32>
    %498 = vector.extract_strided_slice %485 {offsets = [0, 256], sizes = [8, 128], strides = [1, 1]} : vector<8x512xf32> to vector<8x128xf32>
    %499 = math.tanh %498 : vector<8x128xf32>
    %500 = vector.extract_strided_slice %485 {offsets = [0, 384], sizes = [8, 128], strides = [1, 1]} : vector<8x512xf32> to vector<8x128xf32>
    %501 = arith.negf %500 : vector<8x128xf32>
    %502 = math.exp %501 : vector<8x128xf32>
    %cst_246 = arith.constant 1.000000e+00 : f32
    %503 = vector.broadcast %cst_246 : f32 to vector<8x128xf32>
    %504 = arith.addf %503, %502 : vector<8x128xf32>
    %505 = arith.divf %503, %504 : vector<8x128xf32>
    %c0_247 = arith.constant 0 : index
    %c0_248 = arith.constant 0 : index
    %506 = vector.load %arg13[%c0_247, %c0_248] : memref<8x128xf32, #tpu.memory_space<vmem>>, vector<8x128xf32>
    %507 = arith.mulf %497, %506 : vector<8x128xf32>
    %508 = arith.mulf %491, %499 : vector<8x128xf32>
    %509 = arith.addf %507, %508 : vector<8x128xf32>
    %510 = math.tanh %509 : vector<8x128xf32>
    %511 = arith.mulf %505, %510 : vector<8x128xf32>
    %c0_249 = arith.constant 0 : index
    %c0_250 = arith.constant 0 : index
    %512 = vector.load %arg13[%c0_249, %c0_250] : memref<8x128xf32, #tpu.memory_space<vmem>>, vector<8x128xf32>
    tpu.vector_store %arg13[%c0_249, %c0_250], %509 {strides = array<i32>} : memref<8x128xf32, #tpu.memory_space<vmem>>, vector<8x128xf32>,
    %c0_251 = arith.constant 0 : index
    %c0_252 = arith.constant 0 : index
    %513 = vector.load %arg12[%c0_251, %c0_252] : memref<8x128xf32, #tpu.memory_space<vmem>>, vector<8x128xf32>
    tpu.vector_store %arg12[%c0_251, %c0_252], %511 {strides = array<i32>} : memref<8x128xf32, #tpu.memory_space<vmem>>, vector<8x128xf32>,
    %514 = arith.index_cast %479 : i32 to index
    %c0_253 = arith.constant 0 : index
    %515 = vector.load %arg11[%514, %c0_253] : memref<64x128xf32, #tpu.memory_space<vmem>>, vector<8x128xf32>
    tpu.vector_store %arg11[%514, %c0_253], %511 {strides = array<i32>} : memref<64x128xf32, #tpu.memory_space<vmem>>, vector<8x128xf32>,
    %c5_i32_254 = arith.constant 5 : i32
    %c8_i32_255 = arith.constant 8 : i32
    %516 = arith.muli %c5_i32_254, %c8_i32_255 : i32
    %517 = tpu.assume_multiple %516, 8 : i32
    %518 = arith.index_cast %517 : i32 to index
    %c0_256 = arith.constant 0 : index
    %519 = vector.load %arg10[%518, %c0_256] : memref<64x512xf32, #tpu.memory_space<vmem>>, vector<8x512xf32>
    %c0_257 = arith.constant 0 : index
    %c0_258 = arith.constant 0 : index
    %520 = vector.load %arg12[%c0_257, %c0_258] : memref<8x128xf32, #tpu.memory_space<vmem>>, vector<8x128xf32>
    %c0_259 = arith.constant 0 : index
    %c0_260 = arith.constant 0 : index
    %521 = vector.load %arg5[%c0_259, %c0_260] : memref<128x512xf32, #tpu.memory_space<vmem>>, vector<128x512xf32>
    %cst_261 = arith.constant dense<0.000000e+00> : vector<8x512xf32>
    %522 = tpu.matmul %520, %521, %cst_261 {dimension_numbers = #tpu.dot_dimension_numbers<[1], [0], [0], [1], [0, 0, 1, 1], [], []>} : vector<8x128xf32>, vector<128x512xf32>, vector<8x512xf32> -> vector<8x512xf32>
    %523 = arith.addf %519, %522 : vector<8x512xf32>
    %524 = vector.extract_strided_slice %523 {offsets = [0, 0], sizes = [8, 128], strides = [1, 1]} : vector<8x512xf32> to vector<8x128xf32>
    %525 = arith.negf %524 : vector<8x128xf32>
    %526 = math.exp %525 : vector<8x128xf32>
    %cst_262 = arith.constant 1.000000e+00 : f32
    %527 = vector.broadcast %cst_262 : f32 to vector<8x128xf32>
    %528 = arith.addf %527, %526 : vector<8x128xf32>
    %529 = arith.divf %527, %528 : vector<8x128xf32>
    %530 = vector.extract_strided_slice %523 {offsets = [0, 128], sizes = [8, 128], strides = [1, 1]} : vector<8x512xf32> to vector<8x128xf32>
    %531 = arith.negf %530 : vector<8x128xf32>
    %532 = math.exp %531 : vector<8x128xf32>
    %cst_263 = arith.constant 1.000000e+00 : f32
    %533 = vector.broadcast %cst_263 : f32 to vector<8x128xf32>
    %534 = arith.addf %533, %532 : vector<8x128xf32>
    %535 = arith.divf %533, %534 : vector<8x128xf32>
    %536 = vector.extract_strided_slice %523 {offsets = [0, 256], sizes = [8, 128], strides = [1, 1]} : vector<8x512xf32> to vector<8x128xf32>
    %537 = math.tanh %536 : vector<8x128xf32>
    %538 = vector.extract_strided_slice %523 {offsets = [0, 384], sizes = [8, 128], strides = [1, 1]} : vector<8x512xf32> to vector<8x128xf32>
    %539 = arith.negf %538 : vector<8x128xf32>
    %540 = math.exp %539 : vector<8x128xf32>
    %cst_264 = arith.constant 1.000000e+00 : f32
    %541 = vector.broadcast %cst_264 : f32 to vector<8x128xf32>
    %542 = arith.addf %541, %540 : vector<8x128xf32>
    %543 = arith.divf %541, %542 : vector<8x128xf32>
    %c0_265 = arith.constant 0 : index
    %c0_266 = arith.constant 0 : index
    %544 = vector.load %arg13[%c0_265, %c0_266] : memref<8x128xf32, #tpu.memory_space<vmem>>, vector<8x128xf32>
    %545 = arith.mulf %535, %544 : vector<8x128xf32>
    %546 = arith.mulf %529, %537 : vector<8x128xf32>
    %547 = arith.addf %545, %546 : vector<8x128xf32>
    %548 = math.tanh %547 : vector<8x128xf32>
    %549 = arith.mulf %543, %548 : vector<8x128xf32>
    %c0_267 = arith.constant 0 : index
    %c0_268 = arith.constant 0 : index
    %550 = vector.load %arg13[%c0_267, %c0_268] : memref<8x128xf32, #tpu.memory_space<vmem>>, vector<8x128xf32>
    tpu.vector_store %arg13[%c0_267, %c0_268], %547 {strides = array<i32>} : memref<8x128xf32, #tpu.memory_space<vmem>>, vector<8x128xf32>,
    %c0_269 = arith.constant 0 : index
    %c0_270 = arith.constant 0 : index
    %551 = vector.load %arg12[%c0_269, %c0_270] : memref<8x128xf32, #tpu.memory_space<vmem>>, vector<8x128xf32>
    tpu.vector_store %arg12[%c0_269, %c0_270], %549 {strides = array<i32>} : memref<8x128xf32, #tpu.memory_space<vmem>>, vector<8x128xf32>,
    %552 = arith.index_cast %517 : i32 to index
    %c0_271 = arith.constant 0 : index
    %553 = vector.load %arg11[%552, %c0_271] : memref<64x128xf32, #tpu.memory_space<vmem>>, vector<8x128xf32>
    tpu.vector_store %arg11[%552, %c0_271], %549 {strides = array<i32>} : memref<64x128xf32, #tpu.memory_space<vmem>>, vector<8x128xf32>,
    %c6_i32_272 = arith.constant 6 : i32
    %c8_i32_273 = arith.constant 8 : i32
    %554 = arith.muli %c6_i32_272, %c8_i32_273 : i32
    %555 = tpu.assume_multiple %554, 8 : i32
    %556 = arith.index_cast %555 : i32 to index
    %c0_274 = arith.constant 0 : index
    %557 = vector.load %arg10[%556, %c0_274] : memref<64x512xf32, #tpu.memory_space<vmem>>, vector<8x512xf32>
    %c0_275 = arith.constant 0 : index
    %c0_276 = arith.constant 0 : index
    %558 = vector.load %arg12[%c0_275, %c0_276] : memref<8x128xf32, #tpu.memory_space<vmem>>, vector<8x128xf32>
    %c0_277 = arith.constant 0 : index
    %c0_278 = arith.constant 0 : index
    %559 = vector.load %arg5[%c0_277, %c0_278] : memref<128x512xf32, #tpu.memory_space<vmem>>, vector<128x512xf32>
    %cst_279 = arith.constant dense<0.000000e+00> : vector<8x512xf32>
    %560 = tpu.matmul %558, %559, %cst_279 {dimension_numbers = #tpu.dot_dimension_numbers<[1], [0], [0], [1], [0, 0, 1, 1], [], []>} : vector<8x128xf32>, vector<128x512xf32>, vector<8x512xf32> -> vector<8x512xf32>
    %561 = arith.addf %557, %560 : vector<8x512xf32>
    %562 = vector.extract_strided_slice %561 {offsets = [0, 0], sizes = [8, 128], strides = [1, 1]} : vector<8x512xf32> to vector<8x128xf32>
    %563 = arith.negf %562 : vector<8x128xf32>
    %564 = math.exp %563 : vector<8x128xf32>
    %cst_280 = arith.constant 1.000000e+00 : f32
    %565 = vector.broadcast %cst_280 : f32 to vector<8x128xf32>
    %566 = arith.addf %565, %564 : vector<8x128xf32>
    %567 = arith.divf %565, %566 : vector<8x128xf32>
    %568 = vector.extract_strided_slice %561 {offsets = [0, 128], sizes = [8, 128], strides = [1, 1]} : vector<8x512xf32> to vector<8x128xf32>
    %569 = arith.negf %568 : vector<8x128xf32>
    %570 = math.exp %569 : vector<8x128xf32>
    %cst_281 = arith.constant 1.000000e+00 : f32
    %571 = vector.broadcast %cst_281 : f32 to vector<8x128xf32>
    %572 = arith.addf %571, %570 : vector<8x128xf32>
    %573 = arith.divf %571, %572 : vector<8x128xf32>
    %574 = vector.extract_strided_slice %561 {offsets = [0, 256], sizes = [8, 128], strides = [1, 1]} : vector<8x512xf32> to vector<8x128xf32>
    %575 = math.tanh %574 : vector<8x128xf32>
    %576 = vector.extract_strided_slice %561 {offsets = [0, 384], sizes = [8, 128], strides = [1, 1]} : vector<8x512xf32> to vector<8x128xf32>
    %577 = arith.negf %576 : vector<8x128xf32>
    %578 = math.exp %577 : vector<8x128xf32>
    %cst_282 = arith.constant 1.000000e+00 : f32
    %579 = vector.broadcast %cst_282 : f32 to vector<8x128xf32>
    %580 = arith.addf %579, %578 : vector<8x128xf32>
    %581 = arith.divf %579, %580 : vector<8x128xf32>
    %c0_283 = arith.constant 0 : index
    %c0_284 = arith.constant 0 : index
    %582 = vector.load %arg13[%c0_283, %c0_284] : memref<8x128xf32, #tpu.memory_space<vmem>>, vector<8x128xf32>
    %583 = arith.mulf %573, %582 : vector<8x128xf32>
    %584 = arith.mulf %567, %575 : vector<8x128xf32>
    %585 = arith.addf %583, %584 : vector<8x128xf32>
    %586 = math.tanh %585 : vector<8x128xf32>
    %587 = arith.mulf %581, %586 : vector<8x128xf32>
    %c0_285 = arith.constant 0 : index
    %c0_286 = arith.constant 0 : index
    %588 = vector.load %arg13[%c0_285, %c0_286] : memref<8x128xf32, #tpu.memory_space<vmem>>, vector<8x128xf32>
    tpu.vector_store %arg13[%c0_285, %c0_286], %585 {strides = array<i32>} : memref<8x128xf32, #tpu.memory_space<vmem>>, vector<8x128xf32>,
    %c0_287 = arith.constant 0 : index
    %c0_288 = arith.constant 0 : index
    %589 = vector.load %arg12[%c0_287, %c0_288] : memref<8x128xf32, #tpu.memory_space<vmem>>, vector<8x128xf32>
    tpu.vector_store %arg12[%c0_287, %c0_288], %587 {strides = array<i32>} : memref<8x128xf32, #tpu.memory_space<vmem>>, vector<8x128xf32>,
    %590 = arith.index_cast %555 : i32 to index
    %c0_289 = arith.constant 0 : index
    %591 = vector.load %arg11[%590, %c0_289] : memref<64x128xf32, #tpu.memory_space<vmem>>, vector<8x128xf32>
    tpu.vector_store %arg11[%590, %c0_289], %587 {strides = array<i32>} : memref<64x128xf32, #tpu.memory_space<vmem>>, vector<8x128xf32>,
    %c7_i32_290 = arith.constant 7 : i32
    %c8_i32_291 = arith.constant 8 : i32
    %592 = arith.muli %c7_i32_290, %c8_i32_291 : i32
    %593 = tpu.assume_multiple %592, 8 : i32
    %594 = arith.index_cast %593 : i32 to index
    %c0_292 = arith.constant 0 : index
    %595 = vector.load %arg10[%594, %c0_292] : memref<64x512xf32, #tpu.memory_space<vmem>>, vector<8x512xf32>
    %c0_293 = arith.constant 0 : index
    %c0_294 = arith.constant 0 : index
    %596 = vector.load %arg12[%c0_293, %c0_294] : memref<8x128xf32, #tpu.memory_space<vmem>>, vector<8x128xf32>
    %c0_295 = arith.constant 0 : index
    %c0_296 = arith.constant 0 : index
    %597 = vector.load %arg5[%c0_295, %c0_296] : memref<128x512xf32, #tpu.memory_space<vmem>>, vector<128x512xf32>
    %cst_297 = arith.constant dense<0.000000e+00> : vector<8x512xf32>
    %598 = tpu.matmul %596, %597, %cst_297 {dimension_numbers = #tpu.dot_dimension_numbers<[1], [0], [0], [1], [0, 0, 1, 1], [], []>} : vector<8x128xf32>, vector<128x512xf32>, vector<8x512xf32> -> vector<8x512xf32>
    %599 = arith.addf %595, %598 : vector<8x512xf32>
    %600 = vector.extract_strided_slice %599 {offsets = [0, 0], sizes = [8, 128], strides = [1, 1]} : vector<8x512xf32> to vector<8x128xf32>
    %601 = arith.negf %600 : vector<8x128xf32>
    %602 = math.exp %601 : vector<8x128xf32>
    %cst_298 = arith.constant 1.000000e+00 : f32
    %603 = vector.broadcast %cst_298 : f32 to vector<8x128xf32>
    %604 = arith.addf %603, %602 : vector<8x128xf32>
    %605 = arith.divf %603, %604 : vector<8x128xf32>
    %606 = vector.extract_strided_slice %599 {offsets = [0, 128], sizes = [8, 128], strides = [1, 1]} : vector<8x512xf32> to vector<8x128xf32>
    %607 = arith.negf %606 : vector<8x128xf32>
    %608 = math.exp %607 : vector<8x128xf32>
    %cst_299 = arith.constant 1.000000e+00 : f32
    %609 = vector.broadcast %cst_299 : f32 to vector<8x128xf32>
    %610 = arith.addf %609, %608 : vector<8x128xf32>
    %611 = arith.divf %609, %610 : vector<8x128xf32>
    %612 = vector.extract_strided_slice %599 {offsets = [0, 256], sizes = [8, 128], strides = [1, 1]} : vector<8x512xf32> to vector<8x128xf32>
    %613 = math.tanh %612 : vector<8x128xf32>
    %614 = vector.extract_strided_slice %599 {offsets = [0, 384], sizes = [8, 128], strides = [1, 1]} : vector<8x512xf32> to vector<8x128xf32>
    %615 = arith.negf %614 : vector<8x128xf32>
    %616 = math.exp %615 : vector<8x128xf32>
    %cst_300 = arith.constant 1.000000e+00 : f32
    %617 = vector.broadcast %cst_300 : f32 to vector<8x128xf32>
    %618 = arith.addf %617, %616 : vector<8x128xf32>
    %619 = arith.divf %617, %618 : vector<8x128xf32>
    %c0_301 = arith.constant 0 : index
    %c0_302 = arith.constant 0 : index
    %620 = vector.load %arg13[%c0_301, %c0_302] : memref<8x128xf32, #tpu.memory_space<vmem>>, vector<8x128xf32>
    %621 = arith.mulf %611, %620 : vector<8x128xf32>
    %622 = arith.mulf %605, %613 : vector<8x128xf32>
    %623 = arith.addf %621, %622 : vector<8x128xf32>
    %624 = math.tanh %623 : vector<8x128xf32>
    %625 = arith.mulf %619, %624 : vector<8x128xf32>
    %c0_303 = arith.constant 0 : index
    %c0_304 = arith.constant 0 : index
    %626 = vector.load %arg13[%c0_303, %c0_304] : memref<8x128xf32, #tpu.memory_space<vmem>>, vector<8x128xf32>
    tpu.vector_store %arg13[%c0_303, %c0_304], %623 {strides = array<i32>} : memref<8x128xf32, #tpu.memory_space<vmem>>, vector<8x128xf32>,
    %c0_305 = arith.constant 0 : index
    %c0_306 = arith.constant 0 : index
    %627 = vector.load %arg12[%c0_305, %c0_306] : memref<8x128xf32, #tpu.memory_space<vmem>>, vector<8x128xf32>
    tpu.vector_store %arg12[%c0_305, %c0_306], %625 {strides = array<i32>} : memref<8x128xf32, #tpu.memory_space<vmem>>, vector<8x128xf32>,
    %628 = arith.index_cast %593 : i32 to index
    %c0_307 = arith.constant 0 : index
    %629 = vector.load %arg11[%628, %c0_307] : memref<64x128xf32, #tpu.memory_space<vmem>>, vector<8x128xf32>
    tpu.vector_store %arg11[%628, %c0_307], %625 {strides = array<i32>} : memref<64x128xf32, #tpu.memory_space<vmem>>, vector<8x128xf32>,
    %c8_i32_308 = arith.constant 8 : i32
    %c0_309 = arith.constant 0 : index
    %c0_310 = arith.constant 0 : index
    %630 = vector.load %arg11[%c0_309, %c0_310] : memref<64x128xf32, #tpu.memory_space<vmem>>, vector<64x128xf32>
    %c0_311 = arith.constant 0 : index
    %c0_312 = arith.constant 0 : index
    %631 = vector.load %arg7[%c0_311, %c0_312] : memref<128x4xf32, #tpu.memory_space<vmem>>, vector<128x4xf32>
    %cst_313 = arith.constant dense<0.000000e+00> : vector<64x4xf32>
    %632 = tpu.matmul %630, %631, %cst_313 {dimension_numbers = #tpu.dot_dimension_numbers<[1], [0], [0], [1], [0, 0, 1, 1], [], []>} : vector<64x128xf32>, vector<128x4xf32>, vector<64x4xf32> -> vector<64x4xf32>
    %c0_314 = arith.constant 0 : index
    %c0_315 = arith.constant 0 : index
    %633 = vector.load %arg8[%c0_314, %c0_315] : memref<1x4xf32, #tpu.memory_space<vmem>>, vector<1x4xf32>
    %634 = vector.broadcast %633 : vector<1x4xf32> to vector<64x4xf32>
    %635 = arith.addf %632, %634 : vector<64x4xf32>
    %c0_316 = arith.constant 0 : index
    %c0_317 = arith.constant 0 : index
    %636 = vector.load %arg9[%c0_316, %c0_317] : memref<64x4xf32, #tpu.memory_space<vmem>>, vector<64x4xf32>
    tpu.vector_store %arg9[%c0_316, %c0_317], %635 {strides = array<i32>} : memref<64x4xf32, #tpu.memory_space<vmem>>, vector<64x4xf32>,
    return
  }
}

</mosaic_0001>

<llo_original>
// kernel: lstm1_forward.1
$region0: #{lstm1_forward.1}
  #allocation0 [shape = 'u32[]', space=smem, size = 0x4, offset = 0x4, fixed_abs, tag = 'smem constant byte address 0x4 - core index']
  #allocation1 [shape = 'u32[72,128]{1,0:T(1,128)}', space=vmem, size = 0x9000, scoped, tag = 'internal scratch']
  #allocation2 [shape = 'f32[64,512]{1,0:T(8,128)}', space=vmem, size = 0x20000, scoped, tag = 'scratch operand']
  #allocation3 [shape = 'f32[64,128]{1,0:T(8,128)}', space=vmem, size = 0x8000, scoped, tag = 'scratch operand']
  #allocation4 [shape = 'f32[8,128]{1,0:T(8,128)}', space=vmem, size = 0x1000, scoped, tag = 'scratch operand']
  #allocation5 [shape = 'f32[8,128]{1,0:T(8,128)}', space=vmem, size = 0x1000, scoped, tag = 'scratch operand']
  %s0 = inlined_call_operand.vmem [shape: f32[64,16], index: 0, kind: input, shape index: {}]
  %s1 = inlined_call_operand.vmem [shape: f32[16,512], index: 1, kind: input, shape index: {}]
  %s2 = inlined_call_operand.hbm [shape: f32[128,512], index: 2, kind: input, shape index: {}]
  %s3 = inlined_call_operand.vmem [shape: f32[1,512], index: 3, kind: input, shape index: {}]
  %s4 = inlined_call_operand.hbm [shape: f32[128,512], index: 4, kind: input, shape index: {}]
  %s5 = inlined_call_operand.hbm [shape: f32[128,512], index: 5, kind: input, shape index: {}]
  %s6 = inlined_call_operand.vmem [shape: f32[1,512], index: 6, kind: input, shape index: {}]
  %s7 = inlined_call_operand.vmem [shape: f32[128,4], index: 7, kind: input, shape index: {}]
  %s8 = inlined_call_operand.vmem [shape: f32[1,4], index: 8, kind: input, shape index: {}]
  %s9 = inlined_call_operand.vmem [shape: f32[64,4], index: 9, kind: output, shape index: {}]
  %s10 = sld [smem:[#allocation0]]
  $region58: #{lstm1_forward.1} parent=0
    _
  %s12 = ssub.s32 1, %s10
  %s13 = scalar_select 0, %s12, %s10
  $region1: #{lstm1_forward.1} parent=0
    #allocation6 [shape = 'u8[262144]{0}', space=vmem, size = 0x40000, scoped, tag = 'input window, operand 2, single buffered']
    #allocation7 [shape = 's32[1]{0}', space=sflag, size = 0x4, scoped, tag = 'scoped memory for lstm1_forward.1']
    #allocation8 [shape = 'u8[262144]{0}', space=vmem, size = 0x40000, scoped, tag = 'input window, operand 4, single buffered']
    #allocation9 [shape = 's32[1]{0}', space=sflag, size = 0x4, scoped, tag = 'scoped memory for lstm1_forward.1']
    #allocation10 [shape = 'u8[262144]{0}', space=vmem, size = 0x40000, scoped, tag = 'input window, operand 5, single buffered']
    %14 = vsyncpa [#allocation7], 0
    %15 = vsyncpa [#allocation9], 0
    // Predicated region
    $region2: #{lstm1_forward.1} parent=1 // pred_check
      _
    $region3: #{lstm1_forward.1} parent=1 // pred_check_branch
      %17 = sbr.rel (0) target = $region5
    $region4: #{lstm1_forward.1} parent=1 // pred_region
      _
    $region5: #{lstm1_forward.1} parent=1 // pred_fallthru
      _
    // Predicated region
    $region6: #{lstm1_forward.1} parent=1 // pred_check
      _
    $region7: #{lstm1_forward.1} parent=1 // pred_check_branch
      %19 = sbr.rel (0) target = $region9
    $region8: #{lstm1_forward.1} parent=1 // pred_region
      _
    $region9: #{lstm1_forward.1} parent=1 // pred_fallthru
      _
    // Predicated region
    $region10: #{lstm1_forward.1} parent=1 // pred_check
      _
    $region11: #{lstm1_forward.1} parent=1 // pred_check_branch
      %21 = sbr.rel (0) target = $region13
    $region12: #{lstm1_forward.1} parent=1 // pred_region
      %23 = vsyncadd [#allocation7], 0
      %s24 = sshll.u32 %s2, 4
      %s25 = int_to_ptr.hbm [resolvable:$true] %s24
      %s26 = sshll.u32 [#allocation6], 4
      %s27 = int_to_ptr.vmem [resolvable:$true] %s26
      %32 = dma.hbm_to_vmem [thread:$0]  %s25, 8192, %s27, [#allocation7], 512, 512, 32
    $region13: #{lstm1_forward.1} parent=1 // pred_fallthru
      _
    // Predicated region
    $region14: #{lstm1_forward.1} parent=1 // pred_check
      _
    $region15: #{lstm1_forward.1} parent=1 // pred_check_branch
      %34 = sbr.rel (0) target = $region17
    $region16: #{lstm1_forward.1} parent=1 // pred_region
      _
    $region17: #{lstm1_forward.1} parent=1 // pred_fallthru
      _
    // Predicated region
    $region18: #{lstm1_forward.1} parent=1 // pred_check
      _
    $region19: #{lstm1_forward.1} parent=1 // pred_check_branch
      %36 = sbr.rel (0) target = $region21
    $region20: #{lstm1_forward.1} parent=1 // pred_region
      %38 = vsyncadd [#allocation9], 0
      %s39 = sshll.u32 %s4, 4
      %s40 = int_to_ptr.hbm [resolvable:$true] %s39
      %s41 = sshll.u32 [#allocation8], 4
      %s42 = int_to_ptr.vmem [resolvable:$true] %s41
      %47 = dma.hbm_to_vmem [thread:$0]  %s40, 8192, %s42, [#allocation9], 512, 512, 32
    $region21: #{lstm1_forward.1} parent=1 // pred_fallthru
      _
    // Predicated region
    $region22: #{lstm1_forward.1} parent=1 // pred_check
      _
    $region23: #{lstm1_forward.1} parent=1 // pred_check_branch
      %49 = sbr.rel (0) target = $region25
    $region24: #{lstm1_forward.1} parent=1 // pred_region
      %51 = vsyncadd [#allocation9], 0
      %s52 = sshll.u32 %s5, 4
      %s53 = int_to_ptr.hbm [resolvable:$true] %s52
      %s54 = sshll.u32 [#allocation10], 4
      %s55 = int_to_ptr.vmem [resolvable:$true] %s54
      %60 = dma.hbm_to_vmem [thread:$0]  %s53, 8192, %s55, [#allocation9], 512, 512, 32
    $region25: #{lstm1_forward.1} parent=1 // pred_fallthru
      _
    // Predicated region
    $region26: #{lstm1_forward.1} parent=1 // pred_check
      _
    $region27: #{lstm1_forward.1} parent=1 // pred_check_branch
      %62 = sbr.rel (0) target = $region29
    $region28: #{lstm1_forward.1} parent=1 // pred_region
      _
    $region29: #{lstm1_forward.1} parent=1 // pred_fallthru
      _
    // Predicated region
    $region30: #{lstm1_forward.1} parent=1 // pred_check
      _
    $region31: #{lstm1_forward.1} parent=1 // pred_check_branch
      %64 = sbr.rel (0) target = $region33
    $region32: #{lstm1_forward.1} parent=1 // pred_region
      _
    $region33: #{lstm1_forward.1} parent=1 // pred_fallthru
      _
    // Predicated region
    $region34: #{lstm1_forward.1} parent=1 // pred_check
      _
    $region35: #{lstm1_forward.1} parent=1 // pred_check_branch
      %66 = sbr.rel (0) target = $region37
    $region36: #{lstm1_forward.1} parent=1 // pred_region
      _
    $region37: #{lstm1_forward.1} parent=1 // pred_fallthru
      _
    // Predicated region
    $region38: #{lstm1_forward.1} parent=1 // pred_check
      _
    $region39: #{lstm1_forward.1} parent=1 // pred_check_branch
      %68 = sbr.rel (0) target = $region41
    $region40: #{lstm1_forward.1} parent=1 // pred_region
      %70 = dma.done [#allocation7], 8192
    $region41: #{lstm1_forward.1} parent=1 // pred_fallthru
      _
    // Predicated region
    $region42: #{lstm1_forward.1} parent=1 // pred_check
      _
    $region43: #{lstm1_forward.1} parent=1 // pred_check_branch
      %72 = sbr.rel (0) target = $region45
    $region44: #{lstm1_forward.1} parent=1 // pred_region
      %74 = dma.done [#allocation9], 8192
    $region45: #{lstm1_forward.1} parent=1 // pred_fallthru
      _
    // Predicated region
    $region46: #{lstm1_forward.1} parent=1 // pred_check
      _
    $region47: #{lstm1_forward.1} parent=1 // pred_check_branch
      %76 = sbr.rel (0) target = $region49
    $region48: #{lstm1_forward.1} parent=1 // pred_region
      %78 = dma.done [#allocation9], 8192
    $region49: #{lstm1_forward.1} parent=1 // pred_fallthru
      _
    %v79 = vld [vmem:[%s0] sm:$0xff]
    %v80 = vld [vmem:[%s0 + $0x8] sm:$0xff]
    %v81 = vld [vmem:[%s0 + $0x10] sm:$0xff]
    %v82 = vld [vmem:[%s0 + $0x18] sm:$0xff]
    %v83 = vld [vmem:[%s0 + $0x20] sm:$0xff]
    %v84 = vld [vmem:[%s0 + $0x28] sm:$0xff]
    %v85 = vld [vmem:[%s0 + $0x30] sm:$0xff]
    %v86 = vld [vmem:[%s0 + $0x38] sm:$0xff]
    %v87 = vld [vmem:[%s1] sm:$0xff]
    %v88 = vld [vmem:[%s1 + $0x8] sm:$0xff]
    %v89 = vld [vmem:[%s1 + $0x10] sm:$0xff]
    %v90 = vld [vmem:[%s1 + $0x18] sm:$0xff]
    %v91 = vld [vmem:[%s1 + $0x20] sm:$0xff]
    %v92 = vld [vmem:[%s1 + $0x28] sm:$0xff]
    %v93 = vld [vmem:[%s1 + $0x30] sm:$0xff]
    %v94 = vld [vmem:[%s1 + $0x38] sm:$0xff]
    %v95 = vld [vmem:[%s3] sm:$0xf]
    %v97 = vperm.slane %v95, 0
    %v98 = vperm.slane %v95, 1
    %v99 = vperm.slane %v95, 2
    %v100 = vperm.slane %v95, 3
    %vm105 = vcmask 130048
    %v107 = vsel %vm105, %v79, 0
    %v110 = vsel %vm105, %v80, 0
    %v113 = vsel %vm105, %v81, 0
    %v116 = vsel %vm105, %v82, 0
    %v119 = vsel %vm105, %v83, 0
    %v122 = vsel %vm105, %v84, 0
    %v125 = vsel %vm105, %v85, 0
    %v128 = vsel %vm105, %v86, 0
    %130 = vmatpush.msra.mxu0 0.0
    %131 = vmatpush.msra.mxu0 0.0
    %132 = vmatpush.msra.mxu0 0.0
    %133 = vmatpush.msra.mxu0 0.0
    %134 = vmatpush.msra.mxu0 0.0
    %135 = vmatpush.msra.mxu0 0.0
    %136 = vmatpush.msra.mxu0 0.0
    %137 = vmatpush.msra.mxu0 0.0
    %138 = vmatpush.msra.mxu0 0.0
    %139 = vmatpush.msra.mxu0 0.0
    %140 = vmatpush.msra.mxu0 0.0
    %141 = vmatpush.msra.mxu0 0.0
    %142 = vmatpush.msra.mxu0 0.0
    %143 = vmatpush.msra.mxu0 0.0
    %144 = vmatpush.msra.mxu0 %v91
    %145 = vmatpush.msra.mxu0 %v87
    %146 = vmatmul.f32.gmra.mxu0 %v107
    %v147 = vpop.f32.mrf.mxu0
    %v148 = vadd.f32 %v97, %v147
    %149 = vmatmul.f32.gmra.mxu0 %v110
    %v150 = vpop.f32.mrf.mxu0
    %v151 = vadd.f32 %v97, %v150
    %152 = vmatmul.f32.gmra.mxu0 %v113
    %v153 = vpop.f32.mrf.mxu0
    %v154 = vadd.f32 %v97, %v153
    %155 = vmatmul.f32.gmra.mxu0 %v116
    %v156 = vpop.f32.mrf.mxu0
    %v157 = vadd.f32 %v97, %v156
    %158 = vmatmul.f32.gmra.mxu0 %v119
    %v159 = vpop.f32.mrf.mxu0
    %v160 = vadd.f32 %v97, %v159
    %161 = vmatmul.f32.gmra.mxu0 %v122
    %v162 = vpop.f32.mrf.mxu0
    %v163 = vadd.f32 %v97, %v162
    %164 = vmatmul.f32.gmra.mxu0 %v125
    %v165 = vpop.f32.mrf.mxu0
    %v166 = vadd.f32 %v97, %v165
    %167 = vmatmul.f32.gmra.mxu0 %v128
    %v168 = vpop.f32.mrf.mxu0
    %v169 = vadd.f32 %v97, %v168
    %170 = vdwg.mxu0
    %171 = vmatpush.msra.mxu0 0.0
    %172 = vmatpush.msra.mxu0 0.0
    %173 = vmatpush.msra.mxu0 0.0
    %174 = vmatpush.msra.mxu0 0.0
    %175 = vmatpush.msra.mxu0 0.0
    %176 = vmatpush.msra.mxu0 0.0
    %177 = vmatpush.msra.mxu0 0.0
    %178 = vmatpush.msra.mxu0 0.0
    %179 = vmatpush.msra.mxu0 0.0
    %180 = vmatpush.msra.mxu0 0.0
    %181 = vmatpush.msra.mxu0 0.0
    %182 = vmatpush.msra.mxu0 0.0
    %183 = vmatpush.msra.mxu0 0.0
    %184 = vmatpush.msra.mxu0 0.0
    %185 = vmatpush.msra.mxu0 %v92
    %186 = vmatpush.msra.mxu0 %v88
    %187 = vmatmul.f32.gmra.mxu0 %v107
    %v188 = vpop.f32.mrf.mxu0
    %v189 = vadd.f32 %v98, %v188
    %190 = vmatmul.f32.gmra.mxu0 %v110
    %v191 = vpop.f32.mrf.mxu0
    %v192 = vadd.f32 %v98, %v191
    %193 = vmatmul.f32.gmra.mxu0 %v113
    %v194 = vpop.f32.mrf.mxu0
    %v195 = vadd.f32 %v98, %v194
    %196 = vmatmul.f32.gmra.mxu0 %v116
    %v197 = vpop.f32.mrf.mxu0
    %v198 = vadd.f32 %v98, %v197
    %199 = vmatmul.f32.gmra.mxu0 %v119
    %v200 = vpop.f32.mrf.mxu0
    %v201 = vadd.f32 %v98, %v200
    %202 = vmatmul.f32.gmra.mxu0 %v122
    %v203 = vpop.f32.mrf.mxu0
    %v204 = vadd.f32 %v98, %v203
    %205 = vmatmul.f32.gmra.mxu0 %v125
    %v206 = vpop.f32.mrf.mxu0
    %v207 = vadd.f32 %v98, %v206
    %208 = vmatmul.f32.gmra.mxu0 %v128
    %v209 = vpop.f32.mrf.mxu0
    %v210 = vadd.f32 %v98, %v209
    %211 = vdwg.mxu0
    %212 = vmatpush.msra.mxu0 0.0
    %213 = vmatpush.msra.mxu0 0.0
    %214 = vmatpush.msra.mxu0 0.0
    %215 = vmatpush.msra.mxu0 0.0
    %216 = vmatpush.msra.mxu0 0.0
    %217 = vmatpush.msra.mxu0 0.0
    %218 = vmatpush.msra.mxu0 0.0
    %219 = vmatpush.msra.mxu0 0.0
    %220 = vmatpush.msra.mxu0 0.0
    %221 = vmatpush.msra.mxu0 0.0
    %222 = vmatpush.msra.mxu0 0.0
    %223 = vmatpush.msra.mxu0 0.0
    %224 = vmatpush.msra.mxu0 0.0
    %225 = vmatpush.msra.mxu0 0.0
    %226 = vmatpush.msra.mxu0 %v93
    %227 = vmatpush.msra.mxu0 %v89
    %228 = vmatmul.f32.gmra.mxu0 %v107
    %v229 = vpop.f32.mrf.mxu0
    %v230 = vadd.f32 %v99, %v229
    %231 = vmatmul.f32.gmra.mxu0 %v110
    %v232 = vpop.f32.mrf.mxu0
    %v233 = vadd.f32 %v99, %v232
    %234 = vmatmul.f32.gmra.mxu0 %v113
    %v235 = vpop.f32.mrf.mxu0
    %v236 = vadd.f32 %v99, %v235
    %237 = vmatmul.f32.gmra.mxu0 %v116
    %v238 = vpop.f32.mrf.mxu0
    %v239 = vadd.f32 %v99, %v238
    %240 = vmatmul.f32.gmra.mxu0 %v119
    %v241 = vpop.f32.mrf.mxu0
    %v242 = vadd.f32 %v99, %v241
    %243 = vmatmul.f32.gmra.mxu0 %v122
    %v244 = vpop.f32.mrf.mxu0
    %v245 = vadd.f32 %v99, %v244
    %246 = vmatmul.f32.gmra.mxu0 %v125
    %v247 = vpop.f32.mrf.mxu0
    %v248 = vadd.f32 %v99, %v247
    %249 = vmatmul.f32.gmra.mxu0 %v128
    %v250 = vpop.f32.mrf.mxu0
    %v251 = vadd.f32 %v99, %v250
    %252 = vdwg.mxu0
    %253 = vmatpush.msra.mxu0 0.0
    %254 = vmatpush.msra.mxu0 0.0
    %255 = vmatpush.msra.mxu0 0.0
    %256 = vmatpush.msra.mxu0 0.0
    %257 = vmatpush.msra.mxu0 0.0
    %258 = vmatpush.msra.mxu0 0.0
    %259 = vmatpush.msra.mxu0 0.0
    %260 = vmatpush.msra.mxu0 0.0
    %261 = vmatpush.msra.mxu0 0.0
    %262 = vmatpush.msra.mxu0 0.0
    %263 = vmatpush.msra.mxu0 0.0
    %264 = vmatpush.msra.mxu0 0.0
    %265 = vmatpush.msra.mxu0 0.0
    %266 = vmatpush.msra.mxu0 0.0
    %267 = vmatpush.msra.mxu0 %v94
    %268 = vmatpush.msra.mxu0 %v90
    %269 = vmatmul.f32.gmra.mxu0 %v107
    %v270 = vpop.f32.mrf.mxu0
    %v271 = vadd.f32 %v100, %v270
    %272 = vmatmul.f32.gmra.mxu0 %v110
    %v273 = vpop.f32.mrf.mxu0
    %v274 = vadd.f32 %v100, %v273
    %275 = vmatmul.f32.gmra.mxu0 %v113
    %v276 = vpop.f32.mrf.mxu0
    %v277 = vadd.f32 %v100, %v276
    %278 = vmatmul.f32.gmra.mxu0 %v116
    %v279 = vpop.f32.mrf.mxu0
    %v280 = vadd.f32 %v100, %v279
    %281 = vmatmul.f32.gmra.mxu0 %v119
    %v282 = vpop.f32.mrf.mxu0
    %v283 = vadd.f32 %v100, %v282
    %284 = vmatmul.f32.gmra.mxu0 %v122
    %v285 = vpop.f32.mrf.mxu0
    %v286 = vadd.f32 %v100, %v285
    %287 = vmatmul.f32.gmra.mxu0 %v125
    %v288 = vpop.f32.mrf.mxu0
    %v289 = vadd.f32 %v100, %v288
    %290 = vmatmul.f32.gmra.mxu0 %v128
    %v291 = vpop.f32.mrf.mxu0
    %v292 = vadd.f32 %v100, %v291
    %293 = vdwg.mxu0
    %294 = vst [vmem:[#allocation2] sm:$0xff] %v148
    %295 = vst [vmem:[#allocation2 + $0x8] sm:$0xff] %v189
    %296 = vst [vmem:[#allocation2 + $0x10] sm:$0xff] %v230
    %297 = vst [vmem:[#allocation2 + $0x18] sm:$0xff] %v271
    %298 = vst [vmem:[#allocation2 + $0x20] sm:$0xff] %v151
    %299 = vst [vmem:[#allocation2 + $0x28] sm:$0xff] %v192
    %300 = vst [vmem:[#allocation2 + $0x30] sm:$0xff] %v233
    %301 = vst [vmem:[#allocation2 + $0x38] sm:$0xff] %v274
    %302 = vst [vmem:[#allocation2 + $0x40] sm:$0xff] %v154
    %303 = vst [vmem:[#allocation2 + $0x48] sm:$0xff] %v195
    %304 = vst [vmem:[#allocation2 + $0x50] sm:$0xff] %v236
    %305 = vst [vmem:[#allocation2 + $0x58] sm:$0xff] %v277
    %306 = vst [vmem:[#allocation2 + $0x60] sm:$0xff] %v157
    %307 = vst [vmem:[#allocation2 + $0x68] sm:$0xff] %v198
    %308 = vst [vmem:[#allocation2 + $0x70] sm:$0xff] %v239
    %309 = vst [vmem:[#allocation2 + $0x78] sm:$0xff] %v280
    %310 = vst [vmem:[#allocation2 + $0x80] sm:$0xff] %v160
    %311 = vst [vmem:[#allocation2 + $0x88] sm:$0xff] %v201
    %312 = vst [vmem:[#allocation2 + $0x90] sm:$0xff] %v242
    %313 = vst [vmem:[#allocation2 + $0x98] sm:$0xff] %v283
    %314 = vst [vmem:[#allocation2 + $0xa0] sm:$0xff] %v163
    %315 = vst [vmem:[#allocation2 + $0xa8] sm:$0xff] %v204
    %316 = vst [vmem:[#allocation2 + $0xb0] sm:$0xff] %v245
    %317 = vst [vmem:[#allocation2 + $0xb8] sm:$0xff] %v286
    %318 = vst [vmem:[#allocation2 + $0xc0] sm:$0xff] %v166
    %319 = vst [vmem:[#allocation2 + $0xc8] sm:$0xff] %v207
    %320 = vst [vmem:[#allocation2 + $0xd0] sm:$0xff] %v248
    %321 = vst [vmem:[#allocation2 + $0xd8] sm:$0xff] %v289
    %322 = vst [vmem:[#allocation2 + $0xe0] sm:$0xff] %v169
    %323 = vst [vmem:[#allocation2 + $0xe8] sm:$0xff] %v210
    %324 = vst [vmem:[#allocation2 + $0xf0] sm:$0xff] %v251
    %325 = vst [vmem:[#allocation2 + $0xf8] sm:$0xff] %v292
    %326 = vst [vmem:[#allocation4] sm:$0xff] 0.0
    %327 = vst [vmem:[#allocation5] sm:$0xff] 0.0
    %s328 = smul.u32 0, 4
    %s329 = smul.addr %s328, 8
    %s330 = scalar_lea.vmem [#allocation2], %s329
    %v331 = vld [vmem:[%s330] sm:$0xff]
    %v332 = vld [vmem:[%s330 + $0x8] sm:$0xff]
    %v333 = vld [vmem:[%s330 + $0x10] sm:$0xff]
    %v334 = vld [vmem:[%s330 + $0x18] sm:$0xff]
    %v335 = vld [vmem:[#allocation4] sm:$0xff]
    %v336 = vld [vmem:[#allocation6] sm:$0xff]
    %v337 = vld [vmem:[#allocation6 + $0x8] sm:$0xff]
    %v338 = vld [vmem:[#allocation6 + $0x10] sm:$0xff]
    %v339 = vld [vmem:[#allocation6 + $0x18] sm:$0xff]
    %v340 = vld [vmem:[#allocation6 + $0x20] sm:$0xff]
    %v341 = vld [vmem:[#allocation6 + $0x28] sm:$0xff]
    %v342 = vld [vmem:[#allocation6 + $0x30] sm:$0xff]
    %v343 = vld [vmem:[#allocation6 + $0x38] sm:$0xff]
    %v344 = vld [vmem:[#allocation6 + $0x40] sm:$0xff]
    %v345 = vld [vmem:[#allocation6 + $0x48] sm:$0xff]
    %v346 = vld [vmem:[#allocation6 + $0x50] sm:$0xff]
    %v347 = vld [vmem:[#allocation6 + $0x58] sm:$0xff]
    %v348 = vld [vmem:[#allocation6 + $0x60] sm:$0xff]
    %v349 = vld [vmem:[#allocation6 + $0x68] sm:$0xff]
    %v350 = vld [vmem:[#allocation6 + $0x70] sm:$0xff]
    %v351 = vld [vmem:[#allocation6 + $0x78] sm:$0xff]
    %v352 = vld [vmem:[#allocation6 + $0x80] sm:$0xff]
    %v353 = vld [vmem:[#allocation6 + $0x88] sm:$0xff]
    %v354 = vld [vmem:[#allocation6 + $0x90] sm:$0xff]
    %v355 = vld [vmem:[#allocation6 + $0x98] sm:$0xff]
    %v356 = vld [vmem:[#allocation6 + $0xa0] sm:$0xff]
    %v357 = vld [vmem:[#allocation6 + $0xa8] sm:$0xff]
    %v358 = vld [vmem:[#allocation6 + $0xb0] sm:$0xff]
    %v359 = vld [vmem:[#allocation6 + $0xb8] sm:$0xff]
    %v360 = vld [vmem:[#allocation6 + $0xc0] sm:$0xff]
    %v361 = vld [vmem:[#allocation6 + $0xc8] sm:$0xff]
    %v362 = vld [vmem:[#allocation6 + $0xd0] sm:$0xff]
    %v363 = vld [vmem:[#allocation6 + $0xd8] sm:$0xff]
    %v364 = vld [vmem:[#allocation6 + $0xe0] sm:$0xff]
    %v365 = vld [vmem:[#allocation6 + $0xe8] sm:$0xff]
    %v366 = vld [vmem:[#allocation6 + $0xf0] sm:$0xff]
    %v367 = vld [vmem:[#allocation6 + $0xf8] sm:$0xff]
    %v368 = vld [vmem:[#allocation6 + $0x100] sm:$0xff]
    %v369 = vld [vmem:[#allocation6 + $0x108] sm:$0xff]
    %v370 = vld [vmem:[#allocation6 + $0x110] sm:$0xff]
    %v371 = vld [vmem:[#allocation6 + $0x118] sm:$0xff]
    %v372 = vld [vmem:[#allocation6 + $0x120] sm:$0xff]
    %v373 = vld [vmem:[#allocation6 + $0x128] sm:$0xff]
    %v374 = vld [vmem:[#allocation6 + $0x130] sm:$0xff]
    %v375 = vld [vmem:[#allocation6 + $0x138] sm:$0xff]
    %v376 = vld [vmem:[#allocation6 + $0x140] sm:$0xff]
    %v377 = vld [vmem:[#allocation6 + $0x148] sm:$0xff]
    %v378 = vld [vmem:[#allocation6 + $0x150] sm:$0xff]
    %v379 = vld [vmem:[#allocation6 + $0x158] sm:$0xff]
    %v380 = vld [vmem:[#allocation6 + $0x160] sm:$0xff]
    %v381 = vld [vmem:[#allocation6 + $0x168] sm:$0xff]
    %v382 = vld [vmem:[#allocation6 + $0x170] sm:$0xff]
    %v383 = vld [vmem:[#allocation6 + $0x178] sm:$0xff]
    %v384 = vld [vmem:[#allocation6 + $0x180] sm:$0xff]
    %v385 = vld [vmem:[#allocation6 + $0x188] sm:$0xff]
    %v386 = vld [vmem:[#allocation6 + $0x190] sm:$0xff]
    %v387 = vld [vmem:[#allocation6 + $0x198] sm:$0xff]
    %v388 = vld [vmem:[#allocation6 + $0x1a0] sm:$0xff]
    %v389 = vld [vmem:[#allocation6 + $0x1a8] sm:$0xff]
    %v390 = vld [vmem:[#allocation6 + $0x1b0] sm:$0xff]
    %v391 = vld [vmem:[#allocation6 + $0x1b8] sm:$0xff]
    %v392 = vld [vmem:[#allocation6 + $0x1c0] sm:$0xff]
    %v393 = vld [vmem:[#allocation6 + $0x1c8] sm:$0xff]
    %v394 = vld [vmem:[#allocation6 + $0x1d0] sm:$0xff]
    %v395 = vld [vmem:[#allocation6 + $0x1d8] sm:$0xff]
    %v396 = vld [vmem:[#allocation6 + $0x1e0] sm:$0xff]
    %v397 = vld [vmem:[#allocation6 + $0x1e8] sm:$0xff]
    %v398 = vld [vmem:[#allocation6 + $0x1f0] sm:$0xff]
    %v399 = vld [vmem:[#allocation6 + $0x1f8] sm:$0xff]
    %400 = vmatpush.msra.mxu0 %v396
    %401 = vmatpush.msra.mxu0 %v392
    %402 = vmatpush.msra.mxu0 %v388
    %403 = vmatpush.msra.mxu0 %v384
    %404 = vmatpush.msra.mxu0 %v380
    %405 = vmatpush.msra.mxu0 %v376
    %406 = vmatpush.msra.mxu0 %v372
    %407 = vmatpush.msra.mxu0 %v368
    %408 = vmatpush.msra.mxu0 %v364
    %409 = vmatpush.msra.mxu0 %v360
    %410 = vmatpush.msra.mxu0 %v356
    %411 = vmatpush.msra.mxu0 %v352
    %412 = vmatpush.msra.mxu0 %v348
    %413 = vmatpush.msra.mxu0 %v344
    %414 = vmatpush.msra.mxu0 %v340
    %415 = vmatpush.msra.mxu0 %v336
    %416 = vmatmul.f32.gmra.mxu0 %v335
    %v417 = vpop.f32.mrf.mxu0
    %v418 = vadd.f32 0.0, %v417
    %419 = vdwg.mxu0
    %420 = vmatpush.msra.mxu0 %v397
    %421 = vmatpush.msra.mxu0 %v393
    %422 = vmatpush.msra.mxu0 %v389
    %423 = vmatpush.msra.mxu0 %v385
    %424 = vmatpush.msra.mxu0 %v381
    %425 = vmatpush.msra.mxu0 %v377
    %426 = vmatpush.msra.mxu0 %v373
    %427 = vmatpush.msra.mxu0 %v369
    %428 = vmatpush.msra.mxu0 %v365
    %429 = vmatpush.msra.mxu0 %v361
    %430 = vmatpush.msra.mxu0 %v357
    %431 = vmatpush.msra.mxu0 %v353
    %432 = vmatpush.msra.mxu0 %v349
    %433 = vmatpush.msra.mxu0 %v345
    %434 = vmatpush.msra.mxu0 %v341
    %435 = vmatpush.msra.mxu0 %v337
    %436 = vmatmul.f32.gmra.mxu0 %v335
    %v437 = vpop.f32.mrf.mxu0
    %v438 = vadd.f32 0.0, %v437
    %439 = vdwg.mxu0
    %440 = vmatpush.msra.mxu0 %v398
    %441 = vmatpush.msra.mxu0 %v394
    %442 = vmatpush.msra.mxu0 %v390
    %443 = vmatpush.msra.mxu0 %v386
    %444 = vmatpush.msra.mxu0 %v382
    %445 = vmatpush.msra.mxu0 %v378
    %446 = vmatpush.msra.mxu0 %v374
    %447 = vmatpush.msra.mxu0 %v370
    %448 = vmatpush.msra.mxu0 %v366
    %449 = vmatpush.msra.mxu0 %v362
    %450 = vmatpush.msra.mxu0 %v358
    %451 = vmatpush.msra.mxu0 %v354
    %452 = vmatpush.msra.mxu0 %v350
    %453 = vmatpush.msra.mxu0 %v346
    %454 = vmatpush.msra.mxu0 %v342
    %455 = vmatpush.msra.mxu0 %v338
    %456 = vmatmul.f32.gmra.mxu0 %v335
    %v457 = vpop.f32.mrf.mxu0
    %v458 = vadd.f32 0.0, %v457
    %459 = vdwg.mxu0
    %460 = vmatpush.msra.mxu0 %v399
    %461 = vmatpush.msra.mxu0 %v395
    %462 = vmatpush.msra.mxu0 %v391
    %463 = vmatpush.msra.mxu0 %v387
    %464 = vmatpush.msra.mxu0 %v383
    %465 = vmatpush.msra.mxu0 %v379
    %466 = vmatpush.msra.mxu0 %v375
    %467 = vmatpush.msra.mxu0 %v371
    %468 = vmatpush.msra.mxu0 %v367
    %469 = vmatpush.msra.mxu0 %v363
    %470 = vmatpush.msra.mxu0 %v359
    %471 = vmatpush.msra.mxu0 %v355
    %472 = vmatpush.msra.mxu0 %v351
    %473 = vmatpush.msra.mxu0 %v347
    %474 = vmatpush.msra.mxu0 %v343
    %475 = vmatpush.msra.mxu0 %v339
    %476 = vmatmul.f32.gmra.mxu0 %v335
    %v477 = vpop.f32.mrf.mxu0
    %v478 = vadd.f32 0.0, %v477
    %479 = vdwg.mxu0
    %v480 = vadd.f32 %v331, %v418
    %v481 = vadd.f32 %v332, %v438
    %v482 = vadd.f32 %v333, %v458
    %v483 = vadd.f32 %v334, %v478
    %v484 = vxor.u32 %v480, 2147483648
    %v485 = vmul.f32 %v484, 1.442695
    %v486 = vpow.pop %v485
    %v487 = vadd.f32 %v486, 1.0
    %v488 = vrcp.pop %v487
    %v489 = vmul.f32 %v487, %v488
    %v490 = vsub.f32 1.0, %v489
    %v491 = vmul.f32 %v488, %v490
    %v492 = vadd.f32 %v488, %v491
    %vm493 = vweird.f32 %v487
    %vm494 = vweird.f32 %v488
    %vm495 = vmor %vm493, %vm494
    %v496 = vsel %vm495, %v488, %v492
    %v497 = vand.u32 2147483647, %v487
    %vm498 = vcmp.eq.f32.partialorder %v497, 8.507059e+37
    %v499 = vand.u32 %v487, 2147483648
    %v500 = vor.u32 1.1754944e-38, %v499
    %v501 = vsel %vm498, %v500, %v496
    %v502 = vmul.f32 1.0, %v501
    %v503 = vxor.u32 %v481, 2147483648
    %v504 = vmul.f32 %v503, 1.442695
    %v505 = vpow.pop %v504
    %v506 = vadd.f32 %v505, 1.0
    %v507 = vrcp.pop %v506
    %v508 = vmul.f32 %v506, %v507
    %v509 = vsub.f32 1.0, %v508
    %v510 = vmul.f32 %v507, %v509
    %v511 = vadd.f32 %v507, %v510
    %vm512 = vweird.f32 %v506
    %vm513 = vweird.f32 %v507
    %vm514 = vmor %vm512, %vm513
    %v515 = vsel %vm514, %v507, %v511
    %v516 = vand.u32 2147483647, %v506
    %vm517 = vcmp.eq.f32.partialorder %v516, 8.507059e+37
    %v518 = vand.u32 %v506, 2147483648
    %v519 = vor.u32 1.1754944e-38, %v518
    %v520 = vsel %vm517, %v519, %v515
    %v521 = vmul.f32 1.0, %v520
    %v522 = vtanh.pop %v482
    %v523 = vxor.u32 %v483, 2147483648
    %v524 = vmul.f32 %v523, 1.442695
    %v525 = vpow.pop %v524
    %v526 = vadd.f32 %v525, 1.0
    %v527 = vrcp.pop %v526
    %v528 = vmul.f32 %v526, %v527
    %v529 = vsub.f32 1.0, %v528
    %v530 = vmul.f32 %v527, %v529
    %v531 = vadd.f32 %v527, %v530
    %vm532 = vweird.f32 %v526
    %vm533 = vweird.f32 %v527
    %vm534 = vmor %vm532, %vm533
    %v535 = vsel %vm534, %v527, %v531
    %v536 = vand.u32 2147483647, %v526
    %vm537 = vcmp.eq.f32.partialorder %v536, 8.507059e+37
    %v538 = vand.u32 %v526, 2147483648
    %v539 = vor.u32 1.1754944e-38, %v538
    %v540 = vsel %vm537, %v539, %v535
    %v541 = vmul.f32 1.0, %v540
    %v542 = vld [vmem:[#allocation5] sm:$0xff]
    %v543 = vmul.f32 %v521, %v542
    %v544 = vmul.f32 %v502, %v522
    %v545 = vadd.f32 %v543, %v544
    %v546 = vtanh.pop %v545
    %v547 = vmul.f32 %v541, %v546
    %548 = vst [vmem:[#allocation5] sm:$0xff] %v545
    %549 = vst [vmem:[#allocation4] sm:$0xff] %v547
    %550 = vst [vmem:[#allocation3] sm:$0xff] %v547
    %s551 = smul.u32 1, 4
    %s552 = smul.addr %s551, 8
    %s553 = scalar_lea.vmem [#allocation2], %s552
    %v554 = vld [vmem:[%s553] sm:$0xff]
    %v555 = vld [vmem:[%s553 + $0x8] sm:$0xff]
    %v556 = vld [vmem:[%s553 + $0x10] sm:$0xff]
    %v557 = vld [vmem:[%s553 + $0x18] sm:$0xff]
    %v558 = vld [vmem:[#allocation4] sm:$0xff]
    %v559 = vld [vmem:[#allocation6] sm:$0xff]
    %v560 = vld [vmem:[#allocation6 + $0x8] sm:$0xff]
    %v561 = vld [vmem:[#allocation6 + $0x10] sm:$0xff]
    %v562 = vld [vmem:[#allocation6 + $0x18] sm:$0xff]
    %v563 = vld [vmem:[#allocation6 + $0x20] sm:$0xff]
    %v564 = vld [vmem:[#allocation6 + $0x28] sm:$0xff]
    %v565 = vld [vmem:[#allocation6 + $0x30] sm:$0xff]
    %v566 = vld [vmem:[#allocation6 + $0x38] sm:$0xff]
    %v567 = vld [vmem:[#allocation6 + $0x40] sm:$0xff]
    %v568 = vld [vmem:[#allocation6 + $0x48] sm:$0xff]
    %v569 = vld [vmem:[#allocation6 + $0x50] sm:$0xff]
    %v570 = vld [vmem:[#allocation6 + $0x58] sm:$0xff]
    %v571 = vld [vmem:[#allocation6 + $0x60] sm:$0xff]
    %v572 = vld [vmem:[#allocation6 + $0x68] sm:$0xff]
    %v573 = vld [vmem:[#allocation6 + $0x70] sm:$0xff]
    %v574 = vld [vmem:[#allocation6 + $0x78] sm:$0xff]
    %v575 = vld [vmem:[#allocation6 + $0x80] sm:$0xff]
    %v576 = vld [vmem:[#allocation6 + $0x88] sm:$0xff]
    %v577 = vld [vmem:[#allocation6 + $0x90] sm:$0xff]
    %v578 = vld [vmem:[#allocation6 + $0x98] sm:$0xff]
    %v579 = vld [vmem:[#allocation6 + $0xa0] sm:$0xff]
    %v580 = vld [vmem:[#allocation6 + $0xa8] sm:$0xff]
    %v581 = vld [vmem:[#allocation6 + $0xb0] sm:$0xff]
    %v582 = vld [vmem:[#allocation6 + $0xb8] sm:$0xff]
    %v583 = vld [vmem:[#allocation6 + $0xc0] sm:$0xff]
    %v584 = vld [vmem:[#allocation6 + $0xc8] sm:$0xff]
    %v585 = vld [vmem:[#allocation6 + $0xd0] sm:$0xff]
    %v586 = vld [vmem:[#allocation6 + $0xd8] sm:$0xff]
    %v587 = vld [vmem:[#allocation6 + $0xe0] sm:$0xff]
    %v588 = vld [vmem:[#allocation6 + $0xe8] sm:$0xff]
    %v589 = vld [vmem:[#allocation6 + $0xf0] sm:$0xff]
    %v590 = vld [vmem:[#allocation6 + $0xf8] sm:$0xff]
    %v591 = vld [vmem:[#allocation6 + $0x100] sm:$0xff]
    %v592 = vld [vmem:[#allocation6 + $0x108] sm:$0xff]
    %v593 = vld [vmem:[#allocation6 + $0x110] sm:$0xff]
    %v594 = vld [vmem:[#allocation6 + $0x118] sm:$0xff]
    %v595 = vld [vmem:[#allocation6 + $0x120] sm:$0xff]
    %v596 = vld [vmem:[#allocation6 + $0x128] sm:$0xff]
    %v597 = vld [vmem:[#allocation6 + $0x130] sm:$0xff]
    %v598 = vld [vmem:[#allocation6 + $0x138] sm:$0xff]
    %v599 = vld [vmem:[#allocation6 + $0x140] sm:$0xff]
    %v600 = vld [vmem:[#allocation6 + $0x148] sm:$0xff]
    %v601 = vld [vmem:[#allocation6 + $0x150] sm:$0xff]
    %v602 = vld [vmem:[#allocation6 + $0x158] sm:$0xff]
    %v603 = vld [vmem:[#allocation6 + $0x160] sm:$0xff]
    %v604 = vld [vmem:[#allocation6 + $0x168] sm:$0xff]
    %v605 = vld [vmem:[#allocation6 + $0x170] sm:$0xff]
    %v606 = vld [vmem:[#allocation6 + $0x178] sm:$0xff]
    %v607 = vld [vmem:[#allocation6 + $0x180] sm:$0xff]
    %v608 = vld [vmem:[#allocation6 + $0x188] sm:$0xff]
    %v609 = vld [vmem:[#allocation6 + $0x190] sm:$0xff]
    %v610 = vld [vmem:[#allocation6 + $0x198] sm:$0xff]
    %v611 = vld [vmem:[#allocation6 + $0x1a0] sm:$0xff]
    %v612 = vld [vmem:[#allocation6 + $0x1a8] sm:$0xff]
    %v613 = vld [vmem:[#allocation6 + $0x1b0] sm:$0xff]
    %v614 = vld [vmem:[#allocation6 + $0x1b8] sm:$0xff]
    %v615 = vld [vmem:[#allocation6 + $0x1c0] sm:$0xff]
    %v616 = vld [vmem:[#allocation6 + $0x1c8] sm:$0xff]
    %v617 = vld [vmem:[#allocation6 + $0x1d0] sm:$0xff]
    %v618 = vld [vmem:[#allocation6 + $0x1d8] sm:$0xff]
    %v619 = vld [vmem:[#allocation6 + $0x1e0] sm:$0xff]
    %v620 = vld [vmem:[#allocation6 + $0x1e8] sm:$0xff]
    %v621 = vld [vmem:[#allocation6 + $0x1f0] sm:$0xff]
    %v622 = vld [vmem:[#allocation6 + $0x1f8] sm:$0xff]
    %623 = vmatpush.msra.mxu0 %v619
    %624 = vmatpush.msra.mxu0 %v615
    %625 = vmatpush.msra.mxu0 %v611
    %626 = vmatpush.msra.mxu0 %v607
    %627 = vmatpush.msra.mxu0 %v603
    %628 = vmatpush.msra.mxu0 %v599
    %629 = vmatpush.msra.mxu0 %v595
    %630 = vmatpush.msra.mxu0 %v591
    %631 = vmatpush.msra.mxu0 %v587
    %632 = vmatpush.msra.mxu0 %v583
    %633 = vmatpush.msra.mxu0 %v579
    %634 = vmatpush.msra.mxu0 %v575
    %635 = vmatpush.msra.mxu0 %v571
    %636 = vmatpush.msra.mxu0 %v567
    %637 = vmatpush.msra.mxu0 %v563
    %638 = vmatpush.msra.mxu0 %v559
    %639 = vmatmul.f32.gmra.mxu0 %v558
    %v640 = vpop.f32.mrf.mxu0
    %v641 = vadd.f32 0.0, %v640
    %642 = vdwg.mxu0
    %643 = vmatpush.msra.mxu0 %v620
    %644 = vmatpush.msra.mxu0 %v616
    %645 = vmatpush.msra.mxu0 %v612
    %646 = vmatpush.msra.mxu0 %v608
    %647 = vmatpush.msra.mxu0 %v604
    %648 = vmatpush.msra.mxu0 %v600
    %649 = vmatpush.msra.mxu0 %v596
    %650 = vmatpush.msra.mxu0 %v592
    %651 = vmatpush.msra.mxu0 %v588
    %652 = vmatpush.msra.mxu0 %v584
    %653 = vmatpush.msra.mxu0 %v580
    %654 = vmatpush.msra.mxu0 %v576
    %655 = vmatpush.msra.mxu0 %v572
    %656 = vmatpush.msra.mxu0 %v568
    %657 = vmatpush.msra.mxu0 %v564
    %658 = vmatpush.msra.mxu0 %v560
    %659 = vmatmul.f32.gmra.mxu0 %v558
    %v660 = vpop.f32.mrf.mxu0
    %v661 = vadd.f32 0.0, %v660
    %662 = vdwg.mxu0
    %663 = vmatpush.msra.mxu0 %v621
    %664 = vmatpush.msra.mxu0 %v617
    %665 = vmatpush.msra.mxu0 %v613
    %666 = vmatpush.msra.mxu0 %v609
    %667 = vmatpush.msra.mxu0 %v605
    %668 = vmatpush.msra.mxu0 %v601
    %669 = vmatpush.msra.mxu0 %v597
    %670 = vmatpush.msra.mxu0 %v593
    %671 = vmatpush.msra.mxu0 %v589
    %672 = vmatpush.msra.mxu0 %v585
    %673 = vmatpush.msra.mxu0 %v581
    %674 = vmatpush.msra.mxu0 %v577
    %675 = vmatpush.msra.mxu0 %v573
    %676 = vmatpush.msra.mxu0 %v569
    %677 = vmatpush.msra.mxu0 %v565
    %678 = vmatpush.msra.mxu0 %v561
    %679 = vmatmul.f32.gmra.mxu0 %v558
    %v680 = vpop.f32.mrf.mxu0
    %v681 = vadd.f32 0.0, %v680
    %682 = vdwg.mxu0
    %683 = vmatpush.msra.mxu0 %v622
    %684 = vmatpush.msra.mxu0 %v618
    %685 = vmatpush.msra.mxu0 %v614
    %686 = vmatpush.msra.mxu0 %v610
    %687 = vmatpush.msra.mxu0 %v606
    %688 = vmatpush.msra.mxu0 %v602
    %689 = vmatpush.msra.mxu0 %v598
    %690 = vmatpush.msra.mxu0 %v594
    %691 = vmatpush.msra.mxu0 %v590
    %692 = vmatpush.msra.mxu0 %v586
    %693 = vmatpush.msra.mxu0 %v582
    %694 = vmatpush.msra.mxu0 %v578
    %695 = vmatpush.msra.mxu0 %v574
    %696 = vmatpush.msra.mxu0 %v570
    %697 = vmatpush.msra.mxu0 %v566
    %698 = vmatpush.msra.mxu0 %v562
    %699 = vmatmul.f32.gmra.mxu0 %v558
    %v700 = vpop.f32.mrf.mxu0
    %v701 = vadd.f32 0.0, %v700
    %702 = vdwg.mxu0
    %v703 = vadd.f32 %v554, %v641
    %v704 = vadd.f32 %v555, %v661
    %v705 = vadd.f32 %v556, %v681
    %v706 = vadd.f32 %v557, %v701
    %v707 = vxor.u32 %v703, 2147483648
    %v708 = vmul.f32 %v707, 1.442695
    %v709 = vpow.pop %v708
    %v710 = vadd.f32 %v709, 1.0
    %v711 = vrcp.pop %v710
    %v712 = vmul.f32 %v710, %v711
    %v713 = vsub.f32 1.0, %v712
    %v714 = vmul.f32 %v711, %v713
    %v715 = vadd.f32 %v711, %v714
    %vm716 = vweird.f32 %v710
    %vm717 = vweird.f32 %v711
    %vm718 = vmor %vm716, %vm717
    %v719 = vsel %vm718, %v711, %v715
    %v720 = vand.u32 2147483647, %v710
    %vm721 = vcmp.eq.f32.partialorder %v720, 8.507059e+37
    %v722 = vand.u32 %v710, 2147483648
    %v723 = vor.u32 1.1754944e-38, %v722
    %v724 = vsel %vm721, %v723, %v719
    %v725 = vmul.f32 1.0, %v724
    %v726 = vxor.u32 %v704, 2147483648
    %v727 = vmul.f32 %v726, 1.442695
    %v728 = vpow.pop %v727
    %v729 = vadd.f32 %v728, 1.0
    %v730 = vrcp.pop %v729
    %v731 = vmul.f32 %v729, %v730
    %v732 = vsub.f32 1.0, %v731
    %v733 = vmul.f32 %v730, %v732
    %v734 = vadd.f32 %v730, %v733
    %vm735 = vweird.f32 %v729
    %vm736 = vweird.f32 %v730
    %vm737 = vmor %vm735, %vm736
    %v738 = vsel %vm737, %v730, %v734
    %v739 = vand.u32 2147483647, %v729
    %vm740 = vcmp.eq.f32.partialorder %v739, 8.507059e+37
    %v741 = vand.u32 %v729, 2147483648
    %v742 = vor.u32 1.1754944e-38, %v741
    %v743 = vsel %vm740, %v742, %v738
    %v744 = vmul.f32 1.0, %v743
    %v745 = vtanh.pop %v705
    %v746 = vxor.u32 %v706, 2147483648
    %v747 = vmul.f32 %v746, 1.442695
    %v748 = vpow.pop %v747
    %v749 = vadd.f32 %v748, 1.0
    %v750 = vrcp.pop %v749
    %v751 = vmul.f32 %v749, %v750
    %v752 = vsub.f32 1.0, %v751
    %v753 = vmul.f32 %v750, %v752
    %v754 = vadd.f32 %v750, %v753
    %vm755 = vweird.f32 %v749
    %vm756 = vweird.f32 %v750
    %vm757 = vmor %vm755, %vm756
    %v758 = vsel %vm757, %v750, %v754
    %v759 = vand.u32 2147483647, %v749
    %vm760 = vcmp.eq.f32.partialorder %v759, 8.507059e+37
    %v761 = vand.u32 %v749, 2147483648
    %v762 = vor.u32 1.1754944e-38, %v761
    %v763 = vsel %vm760, %v762, %v758
    %v764 = vmul.f32 1.0, %v763
    %v765 = vld [vmem:[#allocation5] sm:$0xff]
    %v766 = vmul.f32 %v744, %v765
    %v767 = vmul.f32 %v725, %v745
    %v768 = vadd.f32 %v766, %v767
    %v769 = vtanh.pop %v768
    %v770 = vmul.f32 %v764, %v769
    %771 = vst [vmem:[#allocation5] sm:$0xff] %v768
    %772 = vst [vmem:[#allocation4] sm:$0xff] %v770
    %s773 = scalar_lea.vmem [#allocation3], 8
    %774 = vst [vmem:[%s773] sm:$0xff] %v770
    %s775 = smul.u32 2, 4
    %s776 = smul.addr %s775, 8
    %s777 = scalar_lea.vmem [#allocation2], %s776
    %v778 = vld [vmem:[%s777] sm:$0xff]
    %v779 = vld [vmem:[%s777 + $0x8] sm:$0xff]
    %v780 = vld [vmem:[%s777 + $0x10] sm:$0xff]
    %v781 = vld [vmem:[%s777 + $0x18] sm:$0xff]
    %v782 = vld [vmem:[#allocation4] sm:$0xff]
    %v783 = vld [vmem:[#allocation6] sm:$0xff]
    %v784 = vld [vmem:[#allocation6 + $0x8] sm:$0xff]
    %v785 = vld [vmem:[#allocation6 + $0x10] sm:$0xff]
    %v786 = vld [vmem:[#allocation6 + $0x18] sm:$0xff]
    %v787 = vld [vmem:[#allocation6 + $0x20] sm:$0xff]
    %v788 = vld [vmem:[#allocation6 + $0x28] sm:$0xff]
    %v789 = vld [vmem:[#allocation6 + $0x30] sm:$0xff]
    %v790 = vld [vmem:[#allocation6 + $0x38] sm:$0xff]
    %v791 = vld [vmem:[#allocation6 + $0x40] sm:$0xff]
    %v792 = vld [vmem:[#allocation6 + $0x48] sm:$0xff]
    %v793 = vld [vmem:[#allocation6 + $0x50] sm:$0xff]
    %v794 = vld [vmem:[#allocation6 + $0x58] sm:$0xff]
    %v795 = vld [vmem:[#allocation6 + $0x60] sm:$0xff]
    %v796 = vld [vmem:[#allocation6 + $0x68] sm:$0xff]
    %v797 = vld [vmem:[#allocation6 + $0x70] sm:$0xff]
    %v798 = vld [vmem:[#allocation6 + $0x78] sm:$0xff]
    %v799 = vld [vmem:[#allocation6 + $0x80] sm:$0xff]
    %v800 = vld [vmem:[#allocation6 + $0x88] sm:$0xff]
    %v801 = vld [vmem:[#allocation6 + $0x90] sm:$0xff]
    %v802 = vld [vmem:[#allocation6 + $0x98] sm:$0xff]
    %v803 = vld [vmem:[#allocation6 + $0xa0] sm:$0xff]
    %v804 = vld [vmem:[#allocation6 + $0xa8] sm:$0xff]
    %v805 = vld [vmem:[#allocation6 + $0xb0] sm:$0xff]
    %v806 = vld [vmem:[#allocation6 + $0xb8] sm:$0xff]
    %v807 = vld [vmem:[#allocation6 + $0xc0] sm:$0xff]
    %v808 = vld [vmem:[#allocation6 + $0xc8] sm:$0xff]
    %v809 = vld [vmem:[#allocation6 + $0xd0] sm:$0xff]
    %v810 = vld [vmem:[#allocation6 + $0xd8] sm:$0xff]
    %v811 = vld [vmem:[#allocation6 + $0xe0] sm:$0xff]
    %v812 = vld [vmem:[#allocation6 + $0xe8] sm:$0xff]
    %v813 = vld [vmem:[#allocation6 + $0xf0] sm:$0xff]
    %v814 = vld [vmem:[#allocation6 + $0xf8] sm:$0xff]
    %v815 = vld [vmem:[#allocation6 + $0x100] sm:$0xff]
    %v816 = vld [vmem:[#allocation6 + $0x108] sm:$0xff]
    %v817 = vld [vmem:[#allocation6 + $0x110] sm:$0xff]
    %v818 = vld [vmem:[#allocation6 + $0x118] sm:$0xff]
    %v819 = vld [vmem:[#allocation6 + $0x120] sm:$0xff]
    %v820 = vld [vmem:[#allocation6 + $0x128] sm:$0xff]
    %v821 = vld [vmem:[#allocation6 + $0x130] sm:$0xff]
    %v822 = vld [vmem:[#allocation6 + $0x138] sm:$0xff]
    %v823 = vld [vmem:[#allocation6 + $0x140] sm:$0xff]
    %v824 = vld [vmem:[#allocation6 + $0x148] sm:$0xff]
    %v825 = vld [vmem:[#allocation6 + $0x150] sm:$0xff]
    %v826 = vld [vmem:[#allocation6 + $0x158] sm:$0xff]
    %v827 = vld [vmem:[#allocation6 + $0x160] sm:$0xff]
    %v828 = vld [vmem:[#allocation6 + $0x168] sm:$0xff]
    %v829 = vld [vmem:[#allocation6 + $0x170] sm:$0xff]
    %v830 = vld [vmem:[#allocation6 + $0x178] sm:$0xff]
    %v831 = vld [vmem:[#allocation6 + $0x180] sm:$0xff]
    %v832 = vld [vmem:[#allocation6 + $0x188] sm:$0xff]
    %v833 = vld [vmem:[#allocation6 + $0x190] sm:$0xff]
    %v834 = vld [vmem:[#allocation6 + $0x198] sm:$0xff]
    %v835 = vld [vmem:[#allocation6 + $0x1a0] sm:$0xff]
    %v836 = vld [vmem:[#allocation6 + $0x1a8] sm:$0xff]
    %v837 = vld [vmem:[#allocation6 + $0x1b0] sm:$0xff]
    %v838 = vld [vmem:[#allocation6 + $0x1b8] sm:$0xff]
    %v839 = vld [vmem:[#allocation6 + $0x1c0] sm:$0xff]
    %v840 = vld [vmem:[#allocation6 + $0x1c8] sm:$0xff]
    %v841 = vld [vmem:[#allocation6 + $0x1d0] sm:$0xff]
    %v842 = vld [vmem:[#allocation6 + $0x1d8] sm:$0xff]
    %v843 = vld [vmem:[#allocation6 + $0x1e0] sm:$0xff]
    %v844 = vld [vmem:[#allocation6 + $0x1e8] sm:$0xff]
    %v845 = vld [vmem:[#allocation6 + $0x1f0] sm:$0xff]
    %v846 = vld [vmem:[#allocation6 + $0x1f8] sm:$0xff]
    %847 = vmatpush.msra.mxu0 %v843
    %848 = vmatpush.msra.mxu0 %v839
    %849 = vmatpush.msra.mxu0 %v835
    %850 = vmatpush.msra.mxu0 %v831
    %851 = vmatpush.msra.mxu0 %v827
    %852 = vmatpush.msra.mxu0 %v823
    %853 = vmatpush.msra.mxu0 %v819
    %854 = vmatpush.msra.mxu0 %v815
    %855 = vmatpush.msra.mxu0 %v811
    %856 = vmatpush.msra.mxu0 %v807
    %857 = vmatpush.msra.mxu0 %v803
    %858 = vmatpush.msra.mxu0 %v799
    %859 = vmatpush.msra.mxu0 %v795
    %860 = vmatpush.msra.mxu0 %v791
    %861 = vmatpush.msra.mxu0 %v787
    %862 = vmatpush.msra.mxu0 %v783
    %863 = vmatmul.f32.gmra.mxu0 %v782
    %v864 = vpop.f32.mrf.mxu0
    %v865 = vadd.f32 0.0, %v864
    %866 = vdwg.mxu0
    %867 = vmatpush.msra.mxu0 %v844
    %868 = vmatpush.msra.mxu0 %v840
    %869 = vmatpush.msra.mxu0 %v836
    %870 = vmatpush.msra.mxu0 %v832
    %871 = vmatpush.msra.mxu0 %v828
    %872 = vmatpush.msra.mxu0 %v824
    %873 = vmatpush.msra.mxu0 %v820
    %874 = vmatpush.msra.mxu0 %v816
    %875 = vmatpush.msra.mxu0 %v812
    %876 = vmatpush.msra.mxu0 %v808
    %877 = vmatpush.msra.mxu0 %v804
    %878 = vmatpush.msra.mxu0 %v800
    %879 = vmatpush.msra.mxu0 %v796
    %880 = vmatpush.msra.mxu0 %v792
    %881 = vmatpush.msra.mxu0 %v788
    %882 = vmatpush.msra.mxu0 %v784
    %883 = vmatmul.f32.gmra.mxu0 %v782
    %v884 = vpop.f32.mrf.mxu0
    %v885 = vadd.f32 0.0, %v884
    %886 = vdwg.mxu0
    %887 = vmatpush.msra.mxu0 %v845
    %888 = vmatpush.msra.mxu0 %v841
    %889 = vmatpush.msra.mxu0 %v837
    %890 = vmatpush.msra.mxu0 %v833
    %891 = vmatpush.msra.mxu0 %v829
    %892 = vmatpush.msra.mxu0 %v825
    %893 = vmatpush.msra.mxu0 %v821
    %894 = vmatpush.msra.mxu0 %v817
    %895 = vmatpush.msra.mxu0 %v813
    %896 = vmatpush.msra.mxu0 %v809
    %897 = vmatpush.msra.mxu0 %v805
    %898 = vmatpush.msra.mxu0 %v801
    %899 = vmatpush.msra.mxu0 %v797
    %900 = vmatpush.msra.mxu0 %v793
    %901 = vmatpush.msra.mxu0 %v789
    %902 = vmatpush.msra.mxu0 %v785
    %903 = vmatmul.f32.gmra.mxu0 %v782
    %v904 = vpop.f32.mrf.mxu0
    %v905 = vadd.f32 0.0, %v904
    %906 = vdwg.mxu0
    %907 = vmatpush.msra.mxu0 %v846
    %908 = vmatpush.msra.mxu0 %v842
    %909 = vmatpush.msra.mxu0 %v838
    %910 = vmatpush.msra.mxu0 %v834
    %911 = vmatpush.msra.mxu0 %v830
    %912 = vmatpush.msra.mxu0 %v826
    %913 = vmatpush.msra.mxu0 %v822
    %914 = vmatpush.msra.mxu0 %v818
    %915 = vmatpush.msra.mxu0 %v814
    %916 = vmatpush.msra.mxu0 %v810
    %917 = vmatpush.msra.mxu0 %v806
    %918 = vmatpush.msra.mxu0 %v802
    %919 = vmatpush.msra.mxu0 %v798
    %920 = vmatpush.msra.mxu0 %v794
    %921 = vmatpush.msra.mxu0 %v790
    %922 = vmatpush.msra.mxu0 %v786
    %923 = vmatmul.f32.gmra.mxu0 %v782
    %v924 = vpop.f32.mrf.mxu0
    %v925 = vadd.f32 0.0, %v924
    %926 = vdwg.mxu0
    %v927 = vadd.f32 %v778, %v865
    %v928 = vadd.f32 %v779, %v885
    %v929 = vadd.f32 %v780, %v905
    %v930 = vadd.f32 %v781, %v925
    %v931 = vxor.u32 %v927, 2147483648
    %v932 = vmul.f32 %v931, 1.442695
    %v933 = vpow.pop %v932
    %v934 = vadd.f32 %v933, 1.0
    %v935 = vrcp.pop %v934
    %v936 = vmul.f32 %v934, %v935
    %v937 = vsub.f32 1.0, %v936
    %v938 = vmul.f32 %v935, %v937
    %v939 = vadd.f32 %v935, %v938
    %vm940 = vweird.f32 %v934
    %vm941 = vweird.f32 %v935
    %vm942 = vmor %vm940, %vm941
    %v943 = vsel %vm942, %v935, %v939
    %v944 = vand.u32 2147483647, %v934
    %vm945 = vcmp.eq.f32.partialorder %v944, 8.507059e+37
    %v946 = vand.u32 %v934, 2147483648
    %v947 = vor.u32 1.1754944e-38, %v946
    %v948 = vsel %vm945, %v947, %v943
    %v949 = vmul.f32 1.0, %v948
    %v950 = vxor.u32 %v928, 2147483648
    %v951 = vmul.f32 %v950, 1.442695
    %v952 = vpow.pop %v951
    %v953 = vadd.f32 %v952, 1.0
    %v954 = vrcp.pop %v953
    %v955 = vmul.f32 %v953, %v954
    %v956 = vsub.f32 1.0, %v955
    %v957 = vmul.f32 %v954, %v956
    %v958 = vadd.f32 %v954, %v957
    %vm959 = vweird.f32 %v953
    %vm960 = vweird.f32 %v954
    %vm961 = vmor %vm959, %vm960
    %v962 = vsel %vm961, %v954, %v958
    %v963 = vand.u32 2147483647, %v953
    %vm964 = vcmp.eq.f32.partialorder %v963, 8.507059e+37
    %v965 = vand.u32 %v953, 2147483648
    %v966 = vor.u32 1.1754944e-38, %v965
    %v967 = vsel %vm964, %v966, %v962
    %v968 = vmul.f32 1.0, %v967
    %v969 = vtanh.pop %v929
    %v970 = vxor.u32 %v930, 2147483648
    %v971 = vmul.f32 %v970, 1.442695
    %v972 = vpow.pop %v971
    %v973 = vadd.f32 %v972, 1.0
    %v974 = vrcp.pop %v973
    %v975 = vmul.f32 %v973, %v974
    %v976 = vsub.f32 1.0, %v975
    %v977 = vmul.f32 %v974, %v976
    %v978 = vadd.f32 %v974, %v977
    %vm979 = vweird.f32 %v973
    %vm980 = vweird.f32 %v974
    %vm981 = vmor %vm979, %vm980
    %v982 = vsel %vm981, %v974, %v978
    %v983 = vand.u32 2147483647, %v973
    %vm984 = vcmp.eq.f32.partialorder %v983, 8.507059e+37
    %v985 = vand.u32 %v973, 2147483648
    %v986 = vor.u32 1.1754944e-38, %v985
    %v987 = vsel %vm984, %v986, %v982
    %v988 = vmul.f32 1.0, %v987
    %v989 = vld [vmem:[#allocation5] sm:$0xff]
    %v990 = vmul.f32 %v968, %v989
    %v991 = vmul.f32 %v949, %v969
    %v992 = vadd.f32 %v990, %v991
    %v993 = vtanh.pop %v992
    %v994 = vmul.f32 %v988, %v993
    %995 = vst [vmem:[#allocation5] sm:$0xff] %v992
    %996 = vst [vmem:[#allocation4] sm:$0xff] %v994
    %s997 = scalar_lea.vmem [#allocation3], 16
    %998 = vst [vmem:[%s997] sm:$0xff] %v994
    %s999 = smul.u32 3, 4
    %s1000 = smul.addr %s999, 8
    %s1001 = scalar_lea.vmem [#allocation2], %s1000
    %v1002 = vld [vmem:[%s1001] sm:$0xff]
    %v1003 = vld [vmem:[%s1001 + $0x8] sm:$0xff]
    %v1004 = vld [vmem:[%s1001 + $0x10] sm:$0xff]
    %v1005 = vld [vmem:[%s1001 + $0x18] sm:$0xff]
    %v1006 = vld [vmem:[#allocation4] sm:$0xff]
    %v1007 = vld [vmem:[#allocation6] sm:$0xff]
    %v1008 = vld [vmem:[#allocation6 + $0x8] sm:$0xff]
    %v1009 = vld [vmem:[#allocation6 + $0x10] sm:$0xff]
    %v1010 = vld [vmem:[#allocation6 + $0x18] sm:$0xff]
    %v1011 = vld [vmem:[#allocation6 + $0x20] sm:$0xff]
    %v1012 = vld [vmem:[#allocation6 + $0x28] sm:$0xff]
    %v1013 = vld [vmem:[#allocation6 + $0x30] sm:$0xff]
    %v1014 = vld [vmem:[#allocation6 + $0x38] sm:$0xff]
    %v1015 = vld [vmem:[#allocation6 + $0x40] sm:$0xff]
    %v1016 = vld [vmem:[#allocation6 + $0x48] sm:$0xff]
    %v1017 = vld [vmem:[#allocation6 + $0x50] sm:$0xff]
    %v1018 = vld [vmem:[#allocation6 + $0x58] sm:$0xff]
    %v1019 = vld [vmem:[#allocation6 + $0x60] sm:$0xff]
    %v1020 = vld [vmem:[#allocation6 + $0x68] sm:$0xff]
    %v1021 = vld [vmem:[#allocation6 + $0x70] sm:$0xff]
    %v1022 = vld [vmem:[#allocation6 + $0x78] sm:$0xff]
    %v1023 = vld [vmem:[#allocation6 + $0x80] sm:$0xff]
    %v1024 = vld [vmem:[#allocation6 + $0x88] sm:$0xff]
    %v1025 = vld [vmem:[#allocation6 + $0x90] sm:$0xff]
    %v1026 = vld [vmem:[#allocation6 + $0x98] sm:$0xff]
    %v1027 = vld [vmem:[#allocation6 + $0xa0] sm:$0xff]
    %v1028 = vld [vmem:[#allocation6 + $0xa8] sm:$0xff]
    %v1029 = vld [vmem:[#allocation6 + $0xb0] sm:$0xff]
    %v1030 = vld [vmem:[#allocation6 + $0xb8] sm:$0xff]
    %v1031 = vld [vmem:[#allocation6 + $0xc0] sm:$0xff]
    %v1032 = vld [vmem:[#allocation6 + $0xc8] sm:$0xff]
    %v1033 = vld [vmem:[#allocation6 + $0xd0] sm:$0xff]
    %v1034 = vld [vmem:[#allocation6 + $0xd8] sm:$0xff]
    %v1035 = vld [vmem:[#allocation6 + $0xe0] sm:$0xff]
    %v1036 = vld [vmem:[#allocation6 + $0xe8] sm:$0xff]
    %v1037 = vld [vmem:[#allocation6 + $0xf0] sm:$0xff]
    %v1038 = vld [vmem:[#allocation6 + $0xf8] sm:$0xff]
    %v1039 = vld [vmem:[#allocation6 + $0x100] sm:$0xff]
    %v1040 = vld [vmem:[#allocation6 + $0x108] sm:$0xff]
    %v1041 = vld [vmem:[#allocation6 + $0x110] sm:$0xff]
    %v1042 = vld [vmem:[#allocation6 + $0x118] sm:$0xff]
    %v1043 = vld [vmem:[#allocation6 + $0x120] sm:$0xff]
    %v1044 = vld [vmem:[#allocation6 + $0x128] sm:$0xff]
    %v1045 = vld [vmem:[#allocation6 + $0x130] sm:$0xff]
    %v1046 = vld [vmem:[#allocation6 + $0x138] sm:$0xff]
    %v1047 = vld [vmem:[#allocation6 + $0x140] sm:$0xff]
    %v1048 = vld [vmem:[#allocation6 + $0x148] sm:$0xff]
    %v1049 = vld [vmem:[#allocation6 + $0x150] sm:$0xff]
    %v1050 = vld [vmem:[#allocation6 + $0x158] sm:$0xff]
    %v1051 = vld [vmem:[#allocation6 + $0x160] sm:$0xff]
    %v1052 = vld [vmem:[#allocation6 + $0x168] sm:$0xff]
    %v1053 = vld [vmem:[#allocation6 + $0x170] sm:$0xff]
    %v1054 = vld [vmem:[#allocation6 + $0x178] sm:$0xff]
    %v1055 = vld [vmem:[#allocation6 + $0x180] sm:$0xff]
    %v1056 = vld [vmem:[#allocation6 + $0x188] sm:$0xff]
    %v1057 = vld [vmem:[#allocation6 + $0x190] sm:$0xff]
    %v1058 = vld [vmem:[#allocation6 + $0x198] sm:$0xff]
    %v1059 = vld [vmem:[#allocation6 + $0x1a0] sm:$0xff]
    %v1060 = vld [vmem:[#allocation6 + $0x1a8] sm:$0xff]
    %v1061 = vld [vmem:[#allocation6 + $0x1b0] sm:$0xff]
    %v1062 = vld [vmem:[#allocation6 + $0x1b8] sm:$0xff]
    %v1063 = vld [vmem:[#allocation6 + $0x1c0] sm:$0xff]
    %v1064 = vld [vmem:[#allocation6 + $0x1c8] sm:$0xff]
    %v1065 = vld [vmem:[#allocation6 + $0x1d0] sm:$0xff]
    %v1066 = vld [vmem:[#allocation6 + $0x1d8] sm:$0xff]
    %v1067 = vld [vmem:[#allocation6 + $0x1e0] sm:$0xff]
    %v1068 = vld [vmem:[#allocation6 + $0x1e8] sm:$0xff]
    %v1069 = vld [vmem:[#allocation6 + $0x1f0] sm:$0xff]
    %v1070 = vld [vmem:[#allocation6 + $0x1f8] sm:$0xff]
    %1071 = vmatpush.msra.mxu0 %v1067
    %1072 = vmatpush.msra.mxu0 %v1063
    %1073 = vmatpush.msra.mxu0 %v1059
    %1074 = vmatpush.msra.mxu0 %v1055
    %1075 = vmatpush.msra.mxu0 %v1051
    %1076 = vmatpush.msra.mxu0 %v1047
    %1077 = vmatpush.msra.mxu0 %v1043
    %1078 = vmatpush.msra.mxu0 %v1039
    %1079 = vmatpush.msra.mxu0 %v1035
    %1080 = vmatpush.msra.mxu0 %v1031
    %1081 = vmatpush.msra.mxu0 %v1027
    %1082 = vmatpush.msra.mxu0 %v1023
    %1083 = vmatpush.msra.mxu0 %v1019
    %1084 = vmatpush.msra.mxu0 %v1015
    %1085 = vmatpush.msra.mxu0 %v1011
    %1086 = vmatpush.msra.mxu0 %v1007
    %1087 = vmatmul.f32.gmra.mxu0 %v1006
    %v1088 = vpop.f32.mrf.mxu0
    %v1089 = vadd.f32 0.0, %v1088
    %1090 = vdwg.mxu0
    %1091 = vmatpush.msra.mxu0 %v1068
    %1092 = vmatpush.msra.mxu0 %v1064
    %1093 = vmatpush.msra.mxu0 %v1060
    %1094 = vmatpush.msra.mxu0 %v1056
    %1095 = vmatpush.msra.mxu0 %v1052
    %1096 = vmatpush.msra.mxu0 %v1048
    %1097 = vmatpush.msra.mxu0 %v1044
    %1098 = vmatpush.msra.mxu0 %v1040
    %1099 = vmatpush.msra.mxu0 %v1036
    %1100 = vmatpush.msra.mxu0 %v1032
    %1101 = vmatpush.msra.mxu0 %v1028
    %1102 = vmatpush.msra.mxu0 %v1024
    %1103 = vmatpush.msra.mxu0 %v1020
    %1104 = vmatpush.msra.mxu0 %v1016
    %1105 = vmatpush.msra.mxu0 %v1012
    %1106 = vmatpush.msra.mxu0 %v1008
    %1107 = vmatmul.f32.gmra.mxu0 %v1006
    %v1108 = vpop.f32.mrf.mxu0
    %v1109 = vadd.f32 0.0, %v1108
    %1110 = vdwg.mxu0
    %1111 = vmatpush.msra.mxu0 %v1069
    %1112 = vmatpush.msra.mxu0 %v1065
    %1113 = vmatpush.msra.mxu0 %v1061
    %1114 = vmatpush.msra.mxu0 %v1057
    %1115 = vmatpush.msra.mxu0 %v1053
    %1116 = vmatpush.msra.mxu0 %v1049
    %1117 = vmatpush.msra.mxu0 %v1045
    %1118 = vmatpush.msra.mxu0 %v1041
    %1119 = vmatpush.msra.mxu0 %v1037
    %1120 = vmatpush.msra.mxu0 %v1033
    %1121 = vmatpush.msra.mxu0 %v1029
    %1122 = vmatpush.msra.mxu0 %v1025
    %1123 = vmatpush.msra.mxu0 %v1021
    %1124 = vmatpush.msra.mxu0 %v1017
    %1125 = vmatpush.msra.mxu0 %v1013
    %1126 = vmatpush.msra.mxu0 %v1009
    %1127 = vmatmul.f32.gmra.mxu0 %v1006
    %v1128 = vpop.f32.mrf.mxu0
    %v1129 = vadd.f32 0.0, %v1128
    %1130 = vdwg.mxu0
    %1131 = vmatpush.msra.mxu0 %v1070
    %1132 = vmatpush.msra.mxu0 %v1066
    %1133 = vmatpush.msra.mxu0 %v1062
    %1134 = vmatpush.msra.mxu0 %v1058
    %1135 = vmatpush.msra.mxu0 %v1054
    %1136 = vmatpush.msra.mxu0 %v1050
    %1137 = vmatpush.msra.mxu0 %v1046
    %1138 = vmatpush.msra.mxu0 %v1042
    %1139 = vmatpush.msra.mxu0 %v1038
    %1140 = vmatpush.msra.mxu0 %v1034
    %1141 = vmatpush.msra.mxu0 %v1030
    %1142 = vmatpush.msra.mxu0 %v1026
    %1143 = vmatpush.msra.mxu0 %v1022
    %1144 = vmatpush.msra.mxu0 %v1018
    %1145 = vmatpush.msra.mxu0 %v1014
    %1146 = vmatpush.msra.mxu0 %v1010
    %1147 = vmatmul.f32.gmra.mxu0 %v1006
    %v1148 = vpop.f32.mrf.mxu0
    %v1149 = vadd.f32 0.0, %v1148
    %1150 = vdwg.mxu0
    %v1151 = vadd.f32 %v1002, %v1089
    %v1152 = vadd.f32 %v1003, %v1109
    %v1153 = vadd.f32 %v1004, %v1129
    %v1154 = vadd.f32 %v1005, %v1149
    %v1155 = vxor.u32 %v1151, 2147483648
    %v1156 = vmul.f32 %v1155, 1.442695
    %v1157 = vpow.pop %v1156
    %v1158 = vadd.f32 %v1157, 1.0
    %v1159 = vrcp.pop %v1158
    %v1160 = vmul.f32 %v1158, %v1159
    %v1161 = vsub.f32 1.0, %v1160
    %v1162 = vmul.f32 %v1159, %v1161
    %v1163 = vadd.f32 %v1159, %v1162
    %vm1164 = vweird.f32 %v1158
    %vm1165 = vweird.f32 %v1159
    %vm1166 = vmor %vm1164, %vm1165
    %v1167 = vsel %vm1166, %v1159, %v1163
    %v1168 = vand.u32 2147483647, %v1158
    %vm1169 = vcmp.eq.f32.partialorder %v1168, 8.507059e+37
    %v1170 = vand.u32 %v1158, 2147483648
    %v1171 = vor.u32 1.1754944e-38, %v1170
    %v1172 = vsel %vm1169, %v1171, %v1167
    %v1173 = vmul.f32 1.0, %v1172
    %v1174 = vxor.u32 %v1152, 2147483648
    %v1175 = vmul.f32 %v1174, 1.442695
    %v1176 = vpow.pop %v1175
    %v1177 = vadd.f32 %v1176, 1.0
    %v1178 = vrcp.pop %v1177
    %v1179 = vmul.f32 %v1177, %v1178
    %v1180 = vsub.f32 1.0, %v1179
    %v1181 = vmul.f32 %v1178, %v1180
    %v1182 = vadd.f32 %v1178, %v1181
    %vm1183 = vweird.f32 %v1177
    %vm1184 = vweird.f32 %v1178
    %vm1185 = vmor %vm1183, %vm1184
    %v1186 = vsel %vm1185, %v1178, %v1182
    %v1187 = vand.u32 2147483647, %v1177
    %vm1188 = vcmp.eq.f32.partialorder %v1187, 8.507059e+37
    %v1189 = vand.u32 %v1177, 2147483648
    %v1190 = vor.u32 1.1754944e-38, %v1189
    %v1191 = vsel %vm1188, %v1190, %v1186
    %v1192 = vmul.f32 1.0, %v1191
    %v1193 = vtanh.pop %v1153
    %v1194 = vxor.u32 %v1154, 2147483648
    %v1195 = vmul.f32 %v1194, 1.442695
    %v1196 = vpow.pop %v1195
    %v1197 = vadd.f32 %v1196, 1.0
    %v1198 = vrcp.pop %v1197
    %v1199 = vmul.f32 %v1197, %v1198
    %v1200 = vsub.f32 1.0, %v1199
    %v1201 = vmul.f32 %v1198, %v1200
    %v1202 = vadd.f32 %v1198, %v1201
    %vm1203 = vweird.f32 %v1197
    %vm1204 = vweird.f32 %v1198
    %vm1205 = vmor %vm1203, %vm1204
    %v1206 = vsel %vm1205, %v1198, %v1202
    %v1207 = vand.u32 2147483647, %v1197
    %vm1208 = vcmp.eq.f32.partialorder %v1207, 8.507059e+37
    %v1209 = vand.u32 %v1197, 2147483648
    %v1210 = vor.u32 1.1754944e-38, %v1209
    %v1211 = vsel %vm1208, %v1210, %v1206
    %v1212 = vmul.f32 1.0, %v1211
    %v1213 = vld [vmem:[#allocation5] sm:$0xff]
    %v1214 = vmul.f32 %v1192, %v1213
    %v1215 = vmul.f32 %v1173, %v1193
    %v1216 = vadd.f32 %v1214, %v1215
    %v1217 = vtanh.pop %v1216
    %v1218 = vmul.f32 %v1212, %v1217
    %1219 = vst [vmem:[#allocation5] sm:$0xff] %v1216
    %1220 = vst [vmem:[#allocation4] sm:$0xff] %v1218
    %s1221 = scalar_lea.vmem [#allocation3], 24
    %1222 = vst [vmem:[%s1221] sm:$0xff] %v1218
    %s1223 = smul.u32 4, 4
    %s1224 = smul.addr %s1223, 8
    %s1225 = scalar_lea.vmem [#allocation2], %s1224
    %v1226 = vld [vmem:[%s1225] sm:$0xff]
    %v1227 = vld [vmem:[%s1225 + $0x8] sm:$0xff]
    %v1228 = vld [vmem:[%s1225 + $0x10] sm:$0xff]
    %v1229 = vld [vmem:[%s1225 + $0x18] sm:$0xff]
    %v1230 = vld [vmem:[#allocation4] sm:$0xff]
    %v1231 = vld [vmem:[#allocation6] sm:$0xff]
    %v1232 = vld [vmem:[#allocation6 + $0x8] sm:$0xff]
    %v1233 = vld [vmem:[#allocation6 + $0x10] sm:$0xff]
    %v1234 = vld [vmem:[#allocation6 + $0x18] sm:$0xff]
    %v1235 = vld [vmem:[#allocation6 + $0x20] sm:$0xff]
    %v1236 = vld [vmem:[#allocation6 + $0x28] sm:$0xff]
    %v1237 = vld [vmem:[#allocation6 + $0x30] sm:$0xff]
    %v1238 = vld [vmem:[#allocation6 + $0x38] sm:$0xff]
    %v1239 = vld [vmem:[#allocation6 + $0x40] sm:$0xff]
    %v1240 = vld [vmem:[#allocation6 + $0x48] sm:$0xff]
    %v1241 = vld [vmem:[#allocation6 + $0x50] sm:$0xff]
    %v1242 = vld [vmem:[#allocation6 + $0x58] sm:$0xff]
    %v1243 = vld [vmem:[#allocation6 + $0x60] sm:$0xff]
    %v1244 = vld [vmem:[#allocation6 + $0x68] sm:$0xff]
    %v1245 = vld [vmem:[#allocation6 + $0x70] sm:$0xff]
    %v1246 = vld [vmem:[#allocation6 + $0x78] sm:$0xff]
    %v1247 = vld [vmem:[#allocation6 + $0x80] sm:$0xff]
    %v1248 = vld [vmem:[#allocation6 + $0x88] sm:$0xff]
    %v1249 = vld [vmem:[#allocation6 + $0x90] sm:$0xff]
    %v1250 = vld [vmem:[#allocation6 + $0x98] sm:$0xff]
    %v1251 = vld [vmem:[#allocation6 + $0xa0] sm:$0xff]
    %v1252 = vld [vmem:[#allocation6 + $0xa8] sm:$0xff]
    %v1253 = vld [vmem:[#allocation6 + $0xb0] sm:$0xff]
    %v1254 = vld [vmem:[#allocation6 + $0xb8] sm:$0xff]
    %v1255 = vld [vmem:[#allocation6 + $0xc0] sm:$0xff]
    %v1256 = vld [vmem:[#allocation6 + $0xc8] sm:$0xff]
    %v1257 = vld [vmem:[#allocation6 + $0xd0] sm:$0xff]
    %v1258 = vld [vmem:[#allocation6 + $0xd8] sm:$0xff]
    %v1259 = vld [vmem:[#allocation6 + $0xe0] sm:$0xff]
    %v1260 = vld [vmem:[#allocation6 + $0xe8] sm:$0xff]
    %v1261 = vld [vmem:[#allocation6 + $0xf0] sm:$0xff]
    %v1262 = vld [vmem:[#allocation6 + $0xf8] sm:$0xff]
    %v1263 = vld [vmem:[#allocation6 + $0x100] sm:$0xff]
    %v1264 = vld [vmem:[#allocation6 + $0x108] sm:$0xff]
    %v1265 = vld [vmem:[#allocation6 + $0x110] sm:$0xff]
    %v1266 = vld [vmem:[#allocation6 + $0x118] sm:$0xff]
    %v1267 = vld [vmem:[#allocation6 + $0x120] sm:$0xff]
    %v1268 = vld [vmem:[#allocation6 + $0x128] sm:$0xff]
    %v1269 = vld [vmem:[#allocation6 + $0x130] sm:$0xff]
    %v1270 = vld [vmem:[#allocation6 + $0x138] sm:$0xff]
    %v1271 = vld [vmem:[#allocation6 + $0x140] sm:$0xff]
    %v1272 = vld [vmem:[#allocation6 + $0x148] sm:$0xff]
    %v1273 = vld [vmem:[#allocation6 + $0x150] sm:$0xff]
    %v1274 = vld [vmem:[#allocation6 + $0x158] sm:$0xff]
    %v1275 = vld [vmem:[#allocation6 + $0x160] sm:$0xff]
    %v1276 = vld [vmem:[#allocation6 + $0x168] sm:$0xff]
    %v1277 = vld [vmem:[#allocation6 + $0x170] sm:$0xff]
    %v1278 = vld [vmem:[#allocation6 + $0x178] sm:$0xff]
    %v1279 = vld [vmem:[#allocation6 + $0x180] sm:$0xff]
    %v1280 = vld [vmem:[#allocation6 + $0x188] sm:$0xff]
    %v1281 = vld [vmem:[#allocation6 + $0x190] sm:$0xff]
    %v1282 = vld [vmem:[#allocation6 + $0x198] sm:$0xff]
    %v1283 = vld [vmem:[#allocation6 + $0x1a0] sm:$0xff]
    %v1284 = vld [vmem:[#allocation6 + $0x1a8] sm:$0xff]
    %v1285 = vld [vmem:[#allocation6 + $0x1b0] sm:$0xff]
    %v1286 = vld [vmem:[#allocation6 + $0x1b8] sm:$0xff]
    %v1287 = vld [vmem:[#allocation6 + $0x1c0] sm:$0xff]
    %v1288 = vld [vmem:[#allocation6 + $0x1c8] sm:$0xff]
    %v1289 = vld [vmem:[#allocation6 + $0x1d0] sm:$0xff]
    %v1290 = vld [vmem:[#allocation6 + $0x1d8] sm:$0xff]
    %v1291 = vld [vmem:[#allocation6 + $0x1e0] sm:$0xff]
    %v1292 = vld [vmem:[#allocation6 + $0x1e8] sm:$0xff]
    %v1293 = vld [vmem:[#allocation6 + $0x1f0] sm:$0xff]
    %v1294 = vld [vmem:[#allocation6 + $0x1f8] sm:$0xff]
    %1295 = vmatpush.msra.mxu0 %v1291
    %1296 = vmatpush.msra.mxu0 %v1287
    %1297 = vmatpush.msra.mxu0 %v1283
    %1298 = vmatpush.msra.mxu0 %v1279
    %1299 = vmatpush.msra.mxu0 %v1275
    %1300 = vmatpush.msra.mxu0 %v1271
    %1301 = vmatpush.msra.mxu0 %v1267
    %1302 = vmatpush.msra.mxu0 %v1263
    %1303 = vmatpush.msra.mxu0 %v1259
    %1304 = vmatpush.msra.mxu0 %v1255
    %1305 = vmatpush.msra.mxu0 %v1251
    %1306 = vmatpush.msra.mxu0 %v1247
    %1307 = vmatpush.msra.mxu0 %v1243
    %1308 = vmatpush.msra.mxu0 %v1239
    %1309 = vmatpush.msra.mxu0 %v1235
    %1310 = vmatpush.msra.mxu0 %v1231
    %1311 = vmatmul.f32.gmra.mxu0 %v1230
    %v1312 = vpop.f32.mrf.mxu0
    %v1313 = vadd.f32 0.0, %v1312
    %1314 = vdwg.mxu0
    %1315 = vmatpush.msra.mxu0 %v1292
    %1316 = vmatpush.msra.mxu0 %v1288
    %1317 = vmatpush.msra.mxu0 %v1284
    %1318 = vmatpush.msra.mxu0 %v1280
    %1319 = vmatpush.msra.mxu0 %v1276
    %1320 = vmatpush.msra.mxu0 %v1272
    %1321 = vmatpush.msra.mxu0 %v1268
    %1322 = vmatpush.msra.mxu0 %v1264
    %1323 = vmatpush.msra.mxu0 %v1260
    %1324 = vmatpush.msra.mxu0 %v1256
    %1325 = vmatpush.msra.mxu0 %v1252
    %1326 = vmatpush.msra.mxu0 %v1248
    %1327 = vmatpush.msra.mxu0 %v1244
    %1328 = vmatpush.msra.mxu0 %v1240
    %1329 = vmatpush.msra.mxu0 %v1236
    %1330 = vmatpush.msra.mxu0 %v1232
    %1331 = vmatmul.f32.gmra.mxu0 %v1230
    %v1332 = vpop.f32.mrf.mxu0
    %v1333 = vadd.f32 0.0, %v1332
    %1334 = vdwg.mxu0
    %1335 = vmatpush.msra.mxu0 %v1293
    %1336 = vmatpush.msra.mxu0 %v1289
    %1337 = vmatpush.msra.mxu0 %v1285
    %1338 = vmatpush.msra.mxu0 %v1281
    %1339 = vmatpush.msra.mxu0 %v1277
    %1340 = vmatpush.msra.mxu0 %v1273
    %1341 = vmatpush.msra.mxu0 %v1269
    %1342 = vmatpush.msra.mxu0 %v1265
    %1343 = vmatpush.msra.mxu0 %v1261
    %1344 = vmatpush.msra.mxu0 %v1257
    %1345 = vmatpush.msra.mxu0 %v1253
    %1346 = vmatpush.msra.mxu0 %v1249
    %1347 = vmatpush.msra.mxu0 %v1245
    %1348 = vmatpush.msra.mxu0 %v1241
    %1349 = vmatpush.msra.mxu0 %v1237
    %1350 = vmatpush.msra.mxu0 %v1233
    %1351 = vmatmul.f32.gmra.mxu0 %v1230
    %v1352 = vpop.f32.mrf.mxu0
    %v1353 = vadd.f32 0.0, %v1352
    %1354 = vdwg.mxu0
    %1355 = vmatpush.msra.mxu0 %v1294
    %1356 = vmatpush.msra.mxu0 %v1290
    %1357 = vmatpush.msra.mxu0 %v1286
    %1358 = vmatpush.msra.mxu0 %v1282
    %1359 = vmatpush.msra.mxu0 %v1278
    %1360 = vmatpush.msra.mxu0 %v1274
    %1361 = vmatpush.msra.mxu0 %v1270
    %1362 = vmatpush.msra.mxu0 %v1266
    %1363 = vmatpush.msra.mxu0 %v1262
    %1364 = vmatpush.msra.mxu0 %v1258
    %1365 = vmatpush.msra.mxu0 %v1254
    %1366 = vmatpush.msra.mxu0 %v1250
    %1367 = vmatpush.msra.mxu0 %v1246
    %1368 = vmatpush.msra.mxu0 %v1242
    %1369 = vmatpush.msra.mxu0 %v1238
    %1370 = vmatpush.msra.mxu0 %v1234
    %1371 = vmatmul.f32.gmra.mxu0 %v1230
    %v1372 = vpop.f32.mrf.mxu0
    %v1373 = vadd.f32 0.0, %v1372
    %1374 = vdwg.mxu0
    %v1375 = vadd.f32 %v1226, %v1313
    %v1376 = vadd.f32 %v1227, %v1333
    %v1377 = vadd.f32 %v1228, %v1353
    %v1378 = vadd.f32 %v1229, %v1373
    %v1379 = vxor.u32 %v1375, 2147483648
    %v1380 = vmul.f32 %v1379, 1.442695
    %v1381 = vpow.pop %v1380
    %v1382 = vadd.f32 %v1381, 1.0
    %v1383 = vrcp.pop %v1382
    %v1384 = vmul.f32 %v1382, %v1383
    %v1385 = vsub.f32 1.0, %v1384
    %v1386 = vmul.f32 %v1383, %v1385
    %v1387 = vadd.f32 %v1383, %v1386
    %vm1388 = vweird.f32 %v1382
    %vm1389 = vweird.f32 %v1383
    %vm1390 = vmor %vm1388, %vm1389
    %v1391 = vsel %vm1390, %v1383, %v1387
    %v1392 = vand.u32 2147483647, %v1382
    %vm1393 = vcmp.eq.f32.partialorder %v1392, 8.507059e+37
    %v1394 = vand.u32 %v1382, 2147483648
    %v1395 = vor.u32 1.1754944e-38, %v1394
    %v1396 = vsel %vm1393, %v1395, %v1391
    %v1397 = vmul.f32 1.0, %v1396
    %v1398 = vxor.u32 %v1376, 2147483648
    %v1399 = vmul.f32 %v1398, 1.442695
    %v1400 = vpow.pop %v1399
    %v1401 = vadd.f32 %v1400, 1.0
    %v1402 = vrcp.pop %v1401
    %v1403 = vmul.f32 %v1401, %v1402
    %v1404 = vsub.f32 1.0, %v1403
    %v1405 = vmul.f32 %v1402, %v1404
    %v1406 = vadd.f32 %v1402, %v1405
    %vm1407 = vweird.f32 %v1401
    %vm1408 = vweird.f32 %v1402
    %vm1409 = vmor %vm1407, %vm1408
    %v1410 = vsel %vm1409, %v1402, %v1406
    %v1411 = vand.u32 2147483647, %v1401
    %vm1412 = vcmp.eq.f32.partialorder %v1411, 8.507059e+37
    %v1413 = vand.u32 %v1401, 2147483648
    %v1414 = vor.u32 1.1754944e-38, %v1413
    %v1415 = vsel %vm1412, %v1414, %v1410
    %v1416 = vmul.f32 1.0, %v1415
    %v1417 = vtanh.pop %v1377
    %v1418 = vxor.u32 %v1378, 2147483648
    %v1419 = vmul.f32 %v1418, 1.442695
    %v1420 = vpow.pop %v1419
    %v1421 = vadd.f32 %v1420, 1.0
    %v1422 = vrcp.pop %v1421
    %v1423 = vmul.f32 %v1421, %v1422
    %v1424 = vsub.f32 1.0, %v1423
    %v1425 = vmul.f32 %v1422, %v1424
    %v1426 = vadd.f32 %v1422, %v1425
    %vm1427 = vweird.f32 %v1421
    %vm1428 = vweird.f32 %v1422
    %vm1429 = vmor %vm1427, %vm1428
    %v1430 = vsel %vm1429, %v1422, %v1426
    %v1431 = vand.u32 2147483647, %v1421
    %vm1432 = vcmp.eq.f32.partialorder %v1431, 8.507059e+37
    %v1433 = vand.u32 %v1421, 2147483648
    %v1434 = vor.u32 1.1754944e-38, %v1433
    %v1435 = vsel %vm1432, %v1434, %v1430
    %v1436 = vmul.f32 1.0, %v1435
    %v1437 = vld [vmem:[#allocation5] sm:$0xff]
    %v1438 = vmul.f32 %v1416, %v1437
    %v1439 = vmul.f32 %v1397, %v1417
    %v1440 = vadd.f32 %v1438, %v1439
    %v1441 = vtanh.pop %v1440
    %v1442 = vmul.f32 %v1436, %v1441
    %1443 = vst [vmem:[#allocation5] sm:$0xff] %v1440
    %1444 = vst [vmem:[#allocation4] sm:$0xff] %v1442
    %s1445 = scalar_lea.vmem [#allocation3], 32
    %1446 = vst [vmem:[%s1445] sm:$0xff] %v1442
    %s1447 = smul.u32 5, 4
    %s1448 = smul.addr %s1447, 8
    %s1449 = scalar_lea.vmem [#allocation2], %s1448
    %v1450 = vld [vmem:[%s1449] sm:$0xff]
    %v1451 = vld [vmem:[%s1449 + $0x8] sm:$0xff]
    %v1452 = vld [vmem:[%s1449 + $0x10] sm:$0xff]
    %v1453 = vld [vmem:[%s1449 + $0x18] sm:$0xff]
    %v1454 = vld [vmem:[#allocation4] sm:$0xff]
    %v1455 = vld [vmem:[#allocation6] sm:$0xff]
    %v1456 = vld [vmem:[#allocation6 + $0x8] sm:$0xff]
    %v1457 = vld [vmem:[#allocation6 + $0x10] sm:$0xff]
    %v1458 = vld [vmem:[#allocation6 + $0x18] sm:$0xff]
    %v1459 = vld [vmem:[#allocation6 + $0x20] sm:$0xff]
    %v1460 = vld [vmem:[#allocation6 + $0x28] sm:$0xff]
    %v1461 = vld [vmem:[#allocation6 + $0x30] sm:$0xff]
    %v1462 = vld [vmem:[#allocation6 + $0x38] sm:$0xff]
    %v1463 = vld [vmem:[#allocation6 + $0x40] sm:$0xff]
    %v1464 = vld [vmem:[#allocation6 + $0x48] sm:$0xff]
    %v1465 = vld [vmem:[#allocation6 + $0x50] sm:$0xff]
    %v1466 = vld [vmem:[#allocation6 + $0x58] sm:$0xff]
    %v1467 = vld [vmem:[#allocation6 + $0x60] sm:$0xff]
    %v1468 = vld [vmem:[#allocation6 + $0x68] sm:$0xff]
    %v1469 = vld [vmem:[#allocation6 + $0x70] sm:$0xff]
    %v1470 = vld [vmem:[#allocation6 + $0x78] sm:$0xff]
    %v1471 = vld [vmem:[#allocation6 + $0x80] sm:$0xff]
    %v1472 = vld [vmem:[#allocation6 + $0x88] sm:$0xff]
    %v1473 = vld [vmem:[#allocation6 + $0x90] sm:$0xff]
    %v1474 = vld [vmem:[#allocation6 + $0x98] sm:$0xff]
    %v1475 = vld [vmem:[#allocation6 + $0xa0] sm:$0xff]
    %v1476 = vld [vmem:[#allocation6 + $0xa8] sm:$0xff]
    %v1477 = vld [vmem:[#allocation6 + $0xb0] sm:$0xff]
    %v1478 = vld [vmem:[#allocation6 + $0xb8] sm:$0xff]
    %v1479 = vld [vmem:[#allocation6 + $0xc0] sm:$0xff]
    %v1480 = vld [vmem:[#allocation6 + $0xc8] sm:$0xff]
    %v1481 = vld [vmem:[#allocation6 + $0xd0] sm:$0xff]
    %v1482 = vld [vmem:[#allocation6 + $0xd8] sm:$0xff]
    %v1483 = vld [vmem:[#allocation6 + $0xe0] sm:$0xff]
    %v1484 = vld [vmem:[#allocation6 + $0xe8] sm:$0xff]
    %v1485 = vld [vmem:[#allocation6 + $0xf0] sm:$0xff]
    %v1486 = vld [vmem:[#allocation6 + $0xf8] sm:$0xff]
    %v1487 = vld [vmem:[#allocation6 + $0x100] sm:$0xff]
    %v1488 = vld [vmem:[#allocation6 + $0x108] sm:$0xff]
    %v1489 = vld [vmem:[#allocation6 + $0x110] sm:$0xff]
    %v1490 = vld [vmem:[#allocation6 + $0x118] sm:$0xff]
    %v1491 = vld [vmem:[#allocation6 + $0x120] sm:$0xff]
    %v1492 = vld [vmem:[#allocation6 + $0x128] sm:$0xff]
    %v1493 = vld [vmem:[#allocation6 + $0x130] sm:$0xff]
    %v1494 = vld [vmem:[#allocation6 + $0x138] sm:$0xff]
    %v1495 = vld [vmem:[#allocation6 + $0x140] sm:$0xff]
    %v1496 = vld [vmem:[#allocation6 + $0x148] sm:$0xff]
    %v1497 = vld [vmem:[#allocation6 + $0x150] sm:$0xff]
    %v1498 = vld [vmem:[#allocation6 + $0x158] sm:$0xff]
    %v1499 = vld [vmem:[#allocation6 + $0x160] sm:$0xff]
    %v1500 = vld [vmem:[#allocation6 + $0x168] sm:$0xff]
    %v1501 = vld [vmem:[#allocation6 + $0x170] sm:$0xff]
    %v1502 = vld [vmem:[#allocation6 + $0x178] sm:$0xff]
    %v1503 = vld [vmem:[#allocation6 + $0x180] sm:$0xff]
    %v1504 = vld [vmem:[#allocation6 + $0x188] sm:$0xff]
    %v1505 = vld [vmem:[#allocation6 + $0x190] sm:$0xff]
    %v1506 = vld [vmem:[#allocation6 + $0x198] sm:$0xff]
    %v1507 = vld [vmem:[#allocation6 + $0x1a0] sm:$0xff]
    %v1508 = vld [vmem:[#allocation6 + $0x1a8] sm:$0xff]
    %v1509 = vld [vmem:[#allocation6 + $0x1b0] sm:$0xff]
    %v1510 = vld [vmem:[#allocation6 + $0x1b8] sm:$0xff]
    %v1511 = vld [vmem:[#allocation6 + $0x1c0] sm:$0xff]
    %v1512 = vld [vmem:[#allocation6 + $0x1c8] sm:$0xff]
    %v1513 = vld [vmem:[#allocation6 + $0x1d0] sm:$0xff]
    %v1514 = vld [vmem:[#allocation6 + $0x1d8] sm:$0xff]
    %v1515 = vld [vmem:[#allocation6 + $0x1e0] sm:$0xff]
    %v1516 = vld [vmem:[#allocation6 + $0x1e8] sm:$0xff]
    %v1517 = vld [vmem:[#allocation6 + $0x1f0] sm:$0xff]
    %v1518 = vld [vmem:[#allocation6 + $0x1f8] sm:$0xff]
    %1519 = vmatpush.msra.mxu0 %v1515
    %1520 = vmatpush.msra.mxu0 %v1511
    %1521 = vmatpush.msra.mxu0 %v1507
    %1522 = vmatpush.msra.mxu0 %v1503
    %1523 = vmatpush.msra.mxu0 %v1499
    %1524 = vmatpush.msra.mxu0 %v1495
    %1525 = vmatpush.msra.mxu0 %v1491
    %1526 = vmatpush.msra.mxu0 %v1487
    %1527 = vmatpush.msra.mxu0 %v1483
    %1528 = vmatpush.msra.mxu0 %v1479
    %1529 = vmatpush.msra.mxu0 %v1475
    %1530 = vmatpush.msra.mxu0 %v1471
    %1531 = vmatpush.msra.mxu0 %v1467
    %1532 = vmatpush.msra.mxu0 %v1463
    %1533 = vmatpush.msra.mxu0 %v1459
    %1534 = vmatpush.msra.mxu0 %v1455
    %1535 = vmatmul.f32.gmra.mxu0 %v1454
    %v1536 = vpop.f32.mrf.mxu0
    %v1537 = vadd.f32 0.0, %v1536
    %1538 = vdwg.mxu0
    %1539 = vmatpush.msra.mxu0 %v1516
    %1540 = vmatpush.msra.mxu0 %v1512
    %1541 = vmatpush.msra.mxu0 %v1508
    %1542 = vmatpush.msra.mxu0 %v1504
    %1543 = vmatpush.msra.mxu0 %v1500
    %1544 = vmatpush.msra.mxu0 %v1496
    %1545 = vmatpush.msra.mxu0 %v1492
    %1546 = vmatpush.msra.mxu0 %v1488
    %1547 = vmatpush.msra.mxu0 %v1484
    %1548 = vmatpush.msra.mxu0 %v1480
    %1549 = vmatpush.msra.mxu0 %v1476
    %1550 = vmatpush.msra.mxu0 %v1472
    %1551 = vmatpush.msra.mxu0 %v1468
    %1552 = vmatpush.msra.mxu0 %v1464
    %1553 = vmatpush.msra.mxu0 %v1460
    %1554 = vmatpush.msra.mxu0 %v1456
    %1555 = vmatmul.f32.gmra.mxu0 %v1454
    %v1556 = vpop.f32.mrf.mxu0
    %v1557 = vadd.f32 0.0, %v1556
    %1558 = vdwg.mxu0
    %1559 = vmatpush.msra.mxu0 %v1517
    %1560 = vmatpush.msra.mxu0 %v1513
    %1561 = vmatpush.msra.mxu0 %v1509
    %1562 = vmatpush.msra.mxu0 %v1505
    %1563 = vmatpush.msra.mxu0 %v1501
    %1564 = vmatpush.msra.mxu0 %v1497
    %1565 = vmatpush.msra.mxu0 %v1493
    %1566 = vmatpush.msra.mxu0 %v1489
    %1567 = vmatpush.msra.mxu0 %v1485
    %1568 = vmatpush.msra.mxu0 %v1481
    %1569 = vmatpush.msra.mxu0 %v1477
    %1570 = vmatpush.msra.mxu0 %v1473
    %1571 = vmatpush.msra.mxu0 %v1469
    %1572 = vmatpush.msra.mxu0 %v1465
    %1573 = vmatpush.msra.mxu0 %v1461
    %1574 = vmatpush.msra.mxu0 %v1457
    %1575 = vmatmul.f32.gmra.mxu0 %v1454
    %v1576 = vpop.f32.mrf.mxu0
    %v1577 = vadd.f32 0.0, %v1576
    %1578 = vdwg.mxu0
    %1579 = vmatpush.msra.mxu0 %v1518
    %1580 = vmatpush.msra.mxu0 %v1514
    %1581 = vmatpush.msra.mxu0 %v1510
    %1582 = vmatpush.msra.mxu0 %v1506
    %1583 = vmatpush.msra.mxu0 %v1502
    %1584 = vmatpush.msra.mxu0 %v1498
    %1585 = vmatpush.msra.mxu0 %v1494
    %1586 = vmatpush.msra.mxu0 %v1490
    %1587 = vmatpush.msra.mxu0 %v1486
    %1588 = vmatpush.msra.mxu0 %v1482
    %1589 = vmatpush.msra.mxu0 %v1478
    %1590 = vmatpush.msra.mxu0 %v1474
    %1591 = vmatpush.msra.mxu0 %v1470
    %1592 = vmatpush.msra.mxu0 %v1466
    %1593 = vmatpush.msra.mxu0 %v1462
    %1594 = vmatpush.msra.mxu0 %v1458
    %1595 = vmatmul.f32.gmra.mxu0 %v1454
    %v1596 = vpop.f32.mrf.mxu0
    %v1597 = vadd.f32 0.0, %v1596
    %1598 = vdwg.mxu0
    %v1599 = vadd.f32 %v1450, %v1537
    %v1600 = vadd.f32 %v1451, %v1557
    %v1601 = vadd.f32 %v1452, %v1577
    %v1602 = vadd.f32 %v1453, %v1597
    %v1603 = vxor.u32 %v1599, 2147483648
    %v1604 = vmul.f32 %v1603, 1.442695
    %v1605 = vpow.pop %v1604
    %v1606 = vadd.f32 %v1605, 1.0
    %v1607 = vrcp.pop %v1606
    %v1608 = vmul.f32 %v1606, %v1607
    %v1609 = vsub.f32 1.0, %v1608
    %v1610 = vmul.f32 %v1607, %v1609
    %v1611 = vadd.f32 %v1607, %v1610
    %vm1612 = vweird.f32 %v1606
    %vm1613 = vweird.f32 %v1607
    %vm1614 = vmor %vm1612, %vm1613
    %v1615 = vsel %vm1614, %v1607, %v1611
    %v1616 = vand.u32 2147483647, %v1606
    %vm1617 = vcmp.eq.f32.partialorder %v1616, 8.507059e+37
    %v1618 = vand.u32 %v1606, 2147483648
    %v1619 = vor.u32 1.1754944e-38, %v1618
    %v1620 = vsel %vm1617, %v1619, %v1615
    %v1621 = vmul.f32 1.0, %v1620
    %v1622 = vxor.u32 %v1600, 2147483648
    %v1623 = vmul.f32 %v1622, 1.442695
    %v1624 = vpow.pop %v1623
    %v1625 = vadd.f32 %v1624, 1.0
    %v1626 = vrcp.pop %v1625
    %v1627 = vmul.f32 %v1625, %v1626
    %v1628 = vsub.f32 1.0, %v1627
    %v1629 = vmul.f32 %v1626, %v1628
    %v1630 = vadd.f32 %v1626, %v1629
    %vm1631 = vweird.f32 %v1625
    %vm1632 = vweird.f32 %v1626
    %vm1633 = vmor %vm1631, %vm1632
    %v1634 = vsel %vm1633, %v1626, %v1630
    %v1635 = vand.u32 2147483647, %v1625
    %vm1636 = vcmp.eq.f32.partialorder %v1635, 8.507059e+37
    %v1637 = vand.u32 %v1625, 2147483648
    %v1638 = vor.u32 1.1754944e-38, %v1637
    %v1639 = vsel %vm1636, %v1638, %v1634
    %v1640 = vmul.f32 1.0, %v1639
    %v1641 = vtanh.pop %v1601
    %v1642 = vxor.u32 %v1602, 2147483648
    %v1643 = vmul.f32 %v1642, 1.442695
    %v1644 = vpow.pop %v1643
    %v1645 = vadd.f32 %v1644, 1.0
    %v1646 = vrcp.pop %v1645
    %v1647 = vmul.f32 %v1645, %v1646
    %v1648 = vsub.f32 1.0, %v1647
    %v1649 = vmul.f32 %v1646, %v1648
    %v1650 = vadd.f32 %v1646, %v1649
    %vm1651 = vweird.f32 %v1645
    %vm1652 = vweird.f32 %v1646
    %vm1653 = vmor %vm1651, %vm1652
    %v1654 = vsel %vm1653, %v1646, %v1650
    %v1655 = vand.u32 2147483647, %v1645
    %vm1656 = vcmp.eq.f32.partialorder %v1655, 8.507059e+37
    %v1657 = vand.u32 %v1645, 2147483648
    %v1658 = vor.u32 1.1754944e-38, %v1657
    %v1659 = vsel %vm1656, %v1658, %v1654
    %v1660 = vmul.f32 1.0, %v1659
    %v1661 = vld [vmem:[#allocation5] sm:$0xff]
    %v1662 = vmul.f32 %v1640, %v1661
    %v1663 = vmul.f32 %v1621, %v1641
    %v1664 = vadd.f32 %v1662, %v1663
    %v1665 = vtanh.pop %v1664
    %v1666 = vmul.f32 %v1660, %v1665
    %1667 = vst [vmem:[#allocation5] sm:$0xff] %v1664
    %1668 = vst [vmem:[#allocation4] sm:$0xff] %v1666
    %s1669 = scalar_lea.vmem [#allocation3], 40
    %1670 = vst [vmem:[%s1669] sm:$0xff] %v1666
    %s1671 = smul.u32 6, 4
    %s1672 = smul.addr %s1671, 8
    %s1673 = scalar_lea.vmem [#allocation2], %s1672
    %v1674 = vld [vmem:[%s1673] sm:$0xff]
    %v1675 = vld [vmem:[%s1673 + $0x8] sm:$0xff]
    %v1676 = vld [vmem:[%s1673 + $0x10] sm:$0xff]
    %v1677 = vld [vmem:[%s1673 + $0x18] sm:$0xff]
    %v1678 = vld [vmem:[#allocation4] sm:$0xff]
    %v1679 = vld [vmem:[#allocation6] sm:$0xff]
    %v1680 = vld [vmem:[#allocation6 + $0x8] sm:$0xff]
    %v1681 = vld [vmem:[#allocation6 + $0x10] sm:$0xff]
    %v1682 = vld [vmem:[#allocation6 + $0x18] sm:$0xff]
    %v1683 = vld [vmem:[#allocation6 + $0x20] sm:$0xff]
    %v1684 = vld [vmem:[#allocation6 + $0x28] sm:$0xff]
    %v1685 = vld [vmem:[#allocation6 + $0x30] sm:$0xff]
    %v1686 = vld [vmem:[#allocation6 + $0x38] sm:$0xff]
    %v1687 = vld [vmem:[#allocation6 + $0x40] sm:$0xff]
    %v1688 = vld [vmem:[#allocation6 + $0x48] sm:$0xff]
    %v1689 = vld [vmem:[#allocation6 + $0x50] sm:$0xff]
    %v1690 = vld [vmem:[#allocation6 + $0x58] sm:$0xff]
    %v1691 = vld [vmem:[#allocation6 + $0x60] sm:$0xff]
    %v1692 = vld [vmem:[#allocation6 + $0x68] sm:$0xff]
    %v1693 = vld [vmem:[#allocation6 + $0x70] sm:$0xff]
    %v1694 = vld [vmem:[#allocation6 + $0x78] sm:$0xff]
    %v1695 = vld [vmem:[#allocation6 + $0x80] sm:$0xff]
    %v1696 = vld [vmem:[#allocation6 + $0x88] sm:$0xff]
    %v1697 = vld [vmem:[#allocation6 + $0x90] sm:$0xff]
    %v1698 = vld [vmem:[#allocation6 + $0x98] sm:$0xff]
    %v1699 = vld [vmem:[#allocation6 + $0xa0] sm:$0xff]
    %v1700 = vld [vmem:[#allocation6 + $0xa8] sm:$0xff]
    %v1701 = vld [vmem:[#allocation6 + $0xb0] sm:$0xff]
    %v1702 = vld [vmem:[#allocation6 + $0xb8] sm:$0xff]
    %v1703 = vld [vmem:[#allocation6 + $0xc0] sm:$0xff]
    %v1704 = vld [vmem:[#allocation6 + $0xc8] sm:$0xff]
    %v1705 = vld [vmem:[#allocation6 + $0xd0] sm:$0xff]
    %v1706 = vld [vmem:[#allocation6 + $0xd8] sm:$0xff]
    %v1707 = vld [vmem:[#allocation6 + $0xe0] sm:$0xff]
    %v1708 = vld [vmem:[#allocation6 + $0xe8] sm:$0xff]
    %v1709 = vld [vmem:[#allocation6 + $0xf0] sm:$0xff]
    %v1710 = vld [vmem:[#allocation6 + $0xf8] sm:$0xff]
    %v1711 = vld [vmem:[#allocation6 + $0x100] sm:$0xff]
    %v1712 = vld [vmem:[#allocation6 + $0x108] sm:$0xff]
    %v1713 = vld [vmem:[#allocation6 + $0x110] sm:$0xff]
    %v1714 = vld [vmem:[#allocation6 + $0x118] sm:$0xff]
    %v1715 = vld [vmem:[#allocation6 + $0x120] sm:$0xff]
    %v1716 = vld [vmem:[#allocation6 + $0x128] sm:$0xff]
    %v1717 = vld [vmem:[#allocation6 + $0x130] sm:$0xff]
    %v1718 = vld [vmem:[#allocation6 + $0x138] sm:$0xff]
    %v1719 = vld [vmem:[#allocation6 + $0x140] sm:$0xff]
    %v1720 = vld [vmem:[#allocation6 + $0x148] sm:$0xff]
    %v1721 = vld [vmem:[#allocation6 + $0x150] sm:$0xff]
    %v1722 = vld [vmem:[#allocation6 + $0x158] sm:$0xff]
    %v1723 = vld [vmem:[#allocation6 + $0x160] sm:$0xff]
    %v1724 = vld [vmem:[#allocation6 + $0x168] sm:$0xff]
    %v1725 = vld [vmem:[#allocation6 + $0x170] sm:$0xff]
    %v1726 = vld [vmem:[#allocation6 + $0x178] sm:$0xff]
    %v1727 = vld [vmem:[#allocation6 + $0x180] sm:$0xff]
    %v1728 = vld [vmem:[#allocation6 + $0x188] sm:$0xff]
    %v1729 = vld [vmem:[#allocation6 + $0x190] sm:$0xff]
    %v1730 = vld [vmem:[#allocation6 + $0x198] sm:$0xff]
    %v1731 = vld [vmem:[#allocation6 + $0x1a0] sm:$0xff]
    %v1732 = vld [vmem:[#allocation6 + $0x1a8] sm:$0xff]
    %v1733 = vld [vmem:[#allocation6 + $0x1b0] sm:$0xff]
    %v1734 = vld [vmem:[#allocation6 + $0x1b8] sm:$0xff]
    %v1735 = vld [vmem:[#allocation6 + $0x1c0] sm:$0xff]
    %v1736 = vld [vmem:[#allocation6 + $0x1c8] sm:$0xff]
    %v1737 = vld [vmem:[#allocation6 + $0x1d0] sm:$0xff]
    %v1738 = vld [vmem:[#allocation6 + $0x1d8] sm:$0xff]
    %v1739 = vld [vmem:[#allocation6 + $0x1e0] sm:$0xff]
    %v1740 = vld [vmem:[#allocation6 + $0x1e8] sm:$0xff]
    %v1741 = vld [vmem:[#allocation6 + $0x1f0] sm:$0xff]
    %v1742 = vld [vmem:[#allocation6 + $0x1f8] sm:$0xff]
    %1743 = vmatpush.msra.mxu0 %v1739
    %1744 = vmatpush.msra.mxu0 %v1735
    %1745 = vmatpush.msra.mxu0 %v1731
    %1746 = vmatpush.msra.mxu0 %v1727
    %1747 = vmatpush.msra.mxu0 %v1723
    %1748 = vmatpush.msra.mxu0 %v1719
    %1749 = vmatpush.msra.mxu0 %v1715
    %1750 = vmatpush.msra.mxu0 %v1711
    %1751 = vmatpush.msra.mxu0 %v1707
    %1752 = vmatpush.msra.mxu0 %v1703
    %1753 = vmatpush.msra.mxu0 %v1699
    %1754 = vmatpush.msra.mxu0 %v1695
    %1755 = vmatpush.msra.mxu0 %v1691
    %1756 = vmatpush.msra.mxu0 %v1687
    %1757 = vmatpush.msra.mxu0 %v1683
    %1758 = vmatpush.msra.mxu0 %v1679
    %1759 = vmatmul.f32.gmra.mxu0 %v1678
    %v1760 = vpop.f32.mrf.mxu0
    %v1761 = vadd.f32 0.0, %v1760
    %1762 = vdwg.mxu0
    %1763 = vmatpush.msra.mxu0 %v1740
    %1764 = vmatpush.msra.mxu0 %v1736
    %1765 = vmatpush.msra.mxu0 %v1732
    %1766 = vmatpush.msra.mxu0 %v1728
    %1767 = vmatpush.msra.mxu0 %v1724
    %1768 = vmatpush.msra.mxu0 %v1720
    %1769 = vmatpush.msra.mxu0 %v1716
    %1770 = vmatpush.msra.mxu0 %v1712
    %1771 = vmatpush.msra.mxu0 %v1708
    %1772 = vmatpush.msra.mxu0 %v1704
    %1773 = vmatpush.msra.mxu0 %v1700
    %1774 = vmatpush.msra.mxu0 %v1696
    %1775 = vmatpush.msra.mxu0 %v1692
    %1776 = vmatpush.msra.mxu0 %v1688
    %1777 = vmatpush.msra.mxu0 %v1684
    %1778 = vmatpush.msra.mxu0 %v1680
    %1779 = vmatmul.f32.gmra.mxu0 %v1678
    %v1780 = vpop.f32.mrf.mxu0
    %v1781 = vadd.f32 0.0, %v1780
    %1782 = vdwg.mxu0
    %1783 = vmatpush.msra.mxu0 %v1741
    %1784 = vmatpush.msra.mxu0 %v1737
    %1785 = vmatpush.msra.mxu0 %v1733
    %1786 = vmatpush.msra.mxu0 %v1729
    %1787 = vmatpush.msra.mxu0 %v1725
    %1788 = vmatpush.msra.mxu0 %v1721
    %1789 = vmatpush.msra.mxu0 %v1717
    %1790 = vmatpush.msra.mxu0 %v1713
    %1791 = vmatpush.msra.mxu0 %v1709
    %1792 = vmatpush.msra.mxu0 %v1705
    %1793 = vmatpush.msra.mxu0 %v1701
    %1794 = vmatpush.msra.mxu0 %v1697
    %1795 = vmatpush.msra.mxu0 %v1693
    %1796 = vmatpush.msra.mxu0 %v1689
    %1797 = vmatpush.msra.mxu0 %v1685
    %1798 = vmatpush.msra.mxu0 %v1681
    %1799 = vmatmul.f32.gmra.mxu0 %v1678
    %v1800 = vpop.f32.mrf.mxu0
    %v1801 = vadd.f32 0.0, %v1800
    %1802 = vdwg.mxu0
    %1803 = vmatpush.msra.mxu0 %v1742
    %1804 = vmatpush.msra.mxu0 %v1738
    %1805 = vmatpush.msra.mxu0 %v1734
    %1806 = vmatpush.msra.mxu0 %v1730
    %1807 = vmatpush.msra.mxu0 %v1726
    %1808 = vmatpush.msra.mxu0 %v1722
    %1809 = vmatpush.msra.mxu0 %v1718
    %1810 = vmatpush.msra.mxu0 %v1714
    %1811 = vmatpush.msra.mxu0 %v1710
    %1812 = vmatpush.msra.mxu0 %v1706
    %1813 = vmatpush.msra.mxu0 %v1702
    %1814 = vmatpush.msra.mxu0 %v1698
    %1815 = vmatpush.msra.mxu0 %v1694
    %1816 = vmatpush.msra.mxu0 %v1690
    %1817 = vmatpush.msra.mxu0 %v1686
    %1818 = vmatpush.msra.mxu0 %v1682
    %1819 = vmatmul.f32.gmra.mxu0 %v1678
    %v1820 = vpop.f32.mrf.mxu0
    %v1821 = vadd.f32 0.0, %v1820
    %1822 = vdwg.mxu0
    %v1823 = vadd.f32 %v1674, %v1761
    %v1824 = vadd.f32 %v1675, %v1781
    %v1825 = vadd.f32 %v1676, %v1801
    %v1826 = vadd.f32 %v1677, %v1821
    %v1827 = vxor.u32 %v1823, 2147483648
    %v1828 = vmul.f32 %v1827, 1.442695
    %v1829 = vpow.pop %v1828
    %v1830 = vadd.f32 %v1829, 1.0
    %v1831 = vrcp.pop %v1830
    %v1832 = vmul.f32 %v1830, %v1831
    %v1833 = vsub.f32 1.0, %v1832
    %v1834 = vmul.f32 %v1831, %v1833
    %v1835 = vadd.f32 %v1831, %v1834
    %vm1836 = vweird.f32 %v1830
    %vm1837 = vweird.f32 %v1831
    %vm1838 = vmor %vm1836, %vm1837
    %v1839 = vsel %vm1838, %v1831, %v1835
    %v1840 = vand.u32 2147483647, %v1830
    %vm1841 = vcmp.eq.f32.partialorder %v1840, 8.507059e+37
    %v1842 = vand.u32 %v1830, 2147483648
    %v1843 = vor.u32 1.1754944e-38, %v1842
    %v1844 = vsel %vm1841, %v1843, %v1839
    %v1845 = vmul.f32 1.0, %v1844
    %v1846 = vxor.u32 %v1824, 2147483648
    %v1847 = vmul.f32 %v1846, 1.442695
    %v1848 = vpow.pop %v1847
    %v1849 = vadd.f32 %v1848, 1.0
    %v1850 = vrcp.pop %v1849
    %v1851 = vmul.f32 %v1849, %v1850
    %v1852 = vsub.f32 1.0, %v1851
    %v1853 = vmul.f32 %v1850, %v1852
    %v1854 = vadd.f32 %v1850, %v1853
    %vm1855 = vweird.f32 %v1849
    %vm1856 = vweird.f32 %v1850
    %vm1857 = vmor %vm1855, %vm1856
    %v1858 = vsel %vm1857, %v1850, %v1854
    %v1859 = vand.u32 2147483647, %v1849
    %vm1860 = vcmp.eq.f32.partialorder %v1859, 8.507059e+37
    %v1861 = vand.u32 %v1849, 2147483648
    %v1862 = vor.u32 1.1754944e-38, %v1861
    %v1863 = vsel %vm1860, %v1862, %v1858
    %v1864 = vmul.f32 1.0, %v1863
    %v1865 = vtanh.pop %v1825
    %v1866 = vxor.u32 %v1826, 2147483648
    %v1867 = vmul.f32 %v1866, 1.442695
    %v1868 = vpow.pop %v1867
    %v1869 = vadd.f32 %v1868, 1.0
    %v1870 = vrcp.pop %v1869
    %v1871 = vmul.f32 %v1869, %v1870
    %v1872 = vsub.f32 1.0, %v1871
    %v1873 = vmul.f32 %v1870, %v1872
    %v1874 = vadd.f32 %v1870, %v1873
    %vm1875 = vweird.f32 %v1869
    %vm1876 = vweird.f32 %v1870
    %vm1877 = vmor %vm1875, %vm1876
    %v1878 = vsel %vm1877, %v1870, %v1874
    %v1879 = vand.u32 2147483647, %v1869
    %vm1880 = vcmp.eq.f32.partialorder %v1879, 8.507059e+37
    %v1881 = vand.u32 %v1869, 2147483648
    %v1882 = vor.u32 1.1754944e-38, %v1881
    %v1883 = vsel %vm1880, %v1882, %v1878
    %v1884 = vmul.f32 1.0, %v1883
    %v1885 = vld [vmem:[#allocation5] sm:$0xff]
    %v1886 = vmul.f32 %v1864, %v1885
    %v1887 = vmul.f32 %v1845, %v1865
    %v1888 = vadd.f32 %v1886, %v1887
    %v1889 = vtanh.pop %v1888
    %v1890 = vmul.f32 %v1884, %v1889
    %1891 = vst [vmem:[#allocation5] sm:$0xff] %v1888
    %1892 = vst [vmem:[#allocation4] sm:$0xff] %v1890
    %s1893 = scalar_lea.vmem [#allocation3], 48
    %1894 = vst [vmem:[%s1893] sm:$0xff] %v1890
    %s1895 = smul.u32 7, 4
    %s1896 = smul.addr %s1895, 8
    %s1897 = scalar_lea.vmem [#allocation2], %s1896
    %v1898 = vld [vmem:[%s1897] sm:$0xff]
    %v1899 = vld [vmem:[%s1897 + $0x8] sm:$0xff]
    %v1900 = vld [vmem:[%s1897 + $0x10] sm:$0xff]
    %v1901 = vld [vmem:[%s1897 + $0x18] sm:$0xff]
    %v1902 = vld [vmem:[#allocation4] sm:$0xff]
    %v1903 = vld [vmem:[#allocation6] sm:$0xff]
    %v1904 = vld [vmem:[#allocation6 + $0x8] sm:$0xff]
    %v1905 = vld [vmem:[#allocation6 + $0x10] sm:$0xff]
    %v1906 = vld [vmem:[#allocation6 + $0x18] sm:$0xff]
    %v1907 = vld [vmem:[#allocation6 + $0x20] sm:$0xff]
    %v1908 = vld [vmem:[#allocation6 + $0x28] sm:$0xff]
    %v1909 = vld [vmem:[#allocation6 + $0x30] sm:$0xff]
    %v1910 = vld [vmem:[#allocation6 + $0x38] sm:$0xff]
    %v1911 = vld [vmem:[#allocation6 + $0x40] sm:$0xff]
    %v1912 = vld [vmem:[#allocation6 + $0x48] sm:$0xff]
    %v1913 = vld [vmem:[#allocation6 + $0x50] sm:$0xff]
    %v1914 = vld [vmem:[#allocation6 + $0x58] sm:$0xff]
    %v1915 = vld [vmem:[#allocation6 + $0x60] sm:$0xff]
    %v1916 = vld [vmem:[#allocation6 + $0x68] sm:$0xff]
    %v1917 = vld [vmem:[#allocation6 + $0x70] sm:$0xff]
    %v1918 = vld [vmem:[#allocation6 + $0x78] sm:$0xff]
    %v1919 = vld [vmem:[#allocation6 + $0x80] sm:$0xff]
    %v1920 = vld [vmem:[#allocation6 + $0x88] sm:$0xff]
    %v1921 = vld [vmem:[#allocation6 + $0x90] sm:$0xff]
    %v1922 = vld [vmem:[#allocation6 + $0x98] sm:$0xff]
    %v1923 = vld [vmem:[#allocation6 + $0xa0] sm:$0xff]
    %v1924 = vld [vmem:[#allocation6 + $0xa8] sm:$0xff]
    %v1925 = vld [vmem:[#allocation6 + $0xb0] sm:$0xff]
    %v1926 = vld [vmem:[#allocation6 + $0xb8] sm:$0xff]
    %v1927 = vld [vmem:[#allocation6 + $0xc0] sm:$0xff]
    %v1928 = vld [vmem:[#allocation6 + $0xc8] sm:$0xff]
    %v1929 = vld [vmem:[#allocation6 + $0xd0] sm:$0xff]
    %v1930 = vld [vmem:[#allocation6 + $0xd8] sm:$0xff]
    %v1931 = vld [vmem:[#allocation6 + $0xe0] sm:$0xff]
    %v1932 = vld [vmem:[#allocation6 + $0xe8] sm:$0xff]
    %v1933 = vld [vmem:[#allocation6 + $0xf0] sm:$0xff]
    %v1934 = vld [vmem:[#allocation6 + $0xf8] sm:$0xff]
    %v1935 = vld [vmem:[#allocation6 + $0x100] sm:$0xff]
    %v1936 = vld [vmem:[#allocation6 + $0x108] sm:$0xff]
    %v1937 = vld [vmem:[#allocation6 + $0x110] sm:$0xff]
    %v1938 = vld [vmem:[#allocation6 + $0x118] sm:$0xff]
    %v1939 = vld [vmem:[#allocation6 + $0x120] sm:$0xff]
    %v1940 = vld [vmem:[#allocation6 + $0x128] sm:$0xff]
    %v1941 = vld [vmem:[#allocation6 + $0x130] sm:$0xff]
    %v1942 = vld [vmem:[#allocation6 + $0x138] sm:$0xff]
    %v1943 = vld [vmem:[#allocation6 + $0x140] sm:$0xff]
    %v1944 = vld [vmem:[#allocation6 + $0x148] sm:$0xff]
    %v1945 = vld [vmem:[#allocation6 + $0x150] sm:$0xff]
    %v1946 = vld [vmem:[#allocation6 + $0x158] sm:$0xff]
    %v1947 = vld [vmem:[#allocation6 + $0x160] sm:$0xff]
    %v1948 = vld [vmem:[#allocation6 + $0x168] sm:$0xff]
    %v1949 = vld [vmem:[#allocation6 + $0x170] sm:$0xff]
    %v1950 = vld [vmem:[#allocation6 + $0x178] sm:$0xff]
    %v1951 = vld [vmem:[#allocation6 + $0x180] sm:$0xff]
    %v1952 = vld [vmem:[#allocation6 + $0x188] sm:$0xff]
    %v1953 = vld [vmem:[#allocation6 + $0x190] sm:$0xff]
    %v1954 = vld [vmem:[#allocation6 + $0x198] sm:$0xff]
    %v1955 = vld [vmem:[#allocation6 + $0x1a0] sm:$0xff]
    %v1956 = vld [vmem:[#allocation6 + $0x1a8] sm:$0xff]
    %v1957 = vld [vmem:[#allocation6 + $0x1b0] sm:$0xff]
    %v1958 = vld [vmem:[#allocation6 + $0x1b8] sm:$0xff]
    %v1959 = vld [vmem:[#allocation6 + $0x1c0] sm:$0xff]
    %v1960 = vld [vmem:[#allocation6 + $0x1c8] sm:$0xff]
    %v1961 = vld [vmem:[#allocation6 + $0x1d0] sm:$0xff]
    %v1962 = vld [vmem:[#allocation6 + $0x1d8] sm:$0xff]
    %v1963 = vld [vmem:[#allocation6 + $0x1e0] sm:$0xff]
    %v1964 = vld [vmem:[#allocation6 + $0x1e8] sm:$0xff]
    %v1965 = vld [vmem:[#allocation6 + $0x1f0] sm:$0xff]
    %v1966 = vld [vmem:[#allocation6 + $0x1f8] sm:$0xff]
    %1967 = vmatpush.msra.mxu0 %v1963
    %1968 = vmatpush.msra.mxu0 %v1959
    %1969 = vmatpush.msra.mxu0 %v1955
    %1970 = vmatpush.msra.mxu0 %v1951
    %1971 = vmatpush.msra.mxu0 %v1947
    %1972 = vmatpush.msra.mxu0 %v1943
    %1973 = vmatpush.msra.mxu0 %v1939
    %1974 = vmatpush.msra.mxu0 %v1935
    %1975 = vmatpush.msra.mxu0 %v1931
    %1976 = vmatpush.msra.mxu0 %v1927
    %1977 = vmatpush.msra.mxu0 %v1923
    %1978 = vmatpush.msra.mxu0 %v1919
    %1979 = vmatpush.msra.mxu0 %v1915
    %1980 = vmatpush.msra.mxu0 %v1911
    %1981 = vmatpush.msra.mxu0 %v1907
    %1982 = vmatpush.msra.mxu0 %v1903
    %1983 = vmatmul.f32.gmra.mxu0 %v1902
    %v1984 = vpop.f32.mrf.mxu0
    %v1985 = vadd.f32 0.0, %v1984
    %1986 = vdwg.mxu0
    %1987 = vmatpush.msra.mxu0 %v1964
    %1988 = vmatpush.msra.mxu0 %v1960
    %1989 = vmatpush.msra.mxu0 %v1956
    %1990 = vmatpush.msra.mxu0 %v1952
    %1991 = vmatpush.msra.mxu0 %v1948
    %1992 = vmatpush.msra.mxu0 %v1944
    %1993 = vmatpush.msra.mxu0 %v1940
    %1994 = vmatpush.msra.mxu0 %v1936
    %1995 = vmatpush.msra.mxu0 %v1932
    %1996 = vmatpush.msra.mxu0 %v1928
    %1997 = vmatpush.msra.mxu0 %v1924
    %1998 = vmatpush.msra.mxu0 %v1920
    %1999 = vmatpush.msra.mxu0 %v1916
    %2000 = vmatpush.msra.mxu0 %v1912
    %2001 = vmatpush.msra.mxu0 %v1908
    %2002 = vmatpush.msra.mxu0 %v1904
    %2003 = vmatmul.f32.gmra.mxu0 %v1902
    %v2004 = vpop.f32.mrf.mxu0
    %v2005 = vadd.f32 0.0, %v2004
    %2006 = vdwg.mxu0
    %2007 = vmatpush.msra.mxu0 %v1965
    %2008 = vmatpush.msra.mxu0 %v1961
    %2009 = vmatpush.msra.mxu0 %v1957
    %2010 = vmatpush.msra.mxu0 %v1953
    %2011 = vmatpush.msra.mxu0 %v1949
    %2012 = vmatpush.msra.mxu0 %v1945
    %2013 = vmatpush.msra.mxu0 %v1941
    %2014 = vmatpush.msra.mxu0 %v1937
    %2015 = vmatpush.msra.mxu0 %v1933
    %2016 = vmatpush.msra.mxu0 %v1929
    %2017 = vmatpush.msra.mxu0 %v1925
    %2018 = vmatpush.msra.mxu0 %v1921
    %2019 = vmatpush.msra.mxu0 %v1917
    %2020 = vmatpush.msra.mxu0 %v1913
    %2021 = vmatpush.msra.mxu0 %v1909
    %2022 = vmatpush.msra.mxu0 %v1905
    %2023 = vmatmul.f32.gmra.mxu0 %v1902
    %v2024 = vpop.f32.mrf.mxu0
    %v2025 = vadd.f32 0.0, %v2024
    %2026 = vdwg.mxu0
    %2027 = vmatpush.msra.mxu0 %v1966
    %2028 = vmatpush.msra.mxu0 %v1962
    %2029 = vmatpush.msra.mxu0 %v1958
    %2030 = vmatpush.msra.mxu0 %v1954
    %2031 = vmatpush.msra.mxu0 %v1950
    %2032 = vmatpush.msra.mxu0 %v1946
    %2033 = vmatpush.msra.mxu0 %v1942
    %2034 = vmatpush.msra.mxu0 %v1938
    %2035 = vmatpush.msra.mxu0 %v1934
    %2036 = vmatpush.msra.mxu0 %v1930
    %2037 = vmatpush.msra.mxu0 %v1926
    %2038 = vmatpush.msra.mxu0 %v1922
    %2039 = vmatpush.msra.mxu0 %v1918
    %2040 = vmatpush.msra.mxu0 %v1914
    %2041 = vmatpush.msra.mxu0 %v1910
    %2042 = vmatpush.msra.mxu0 %v1906
    %2043 = vmatmul.f32.gmra.mxu0 %v1902
    %v2044 = vpop.f32.mrf.mxu0
    %v2045 = vadd.f32 0.0, %v2044
    %2046 = vdwg.mxu0
    %v2047 = vadd.f32 %v1898, %v1985
    %v2048 = vadd.f32 %v1899, %v2005
    %v2049 = vadd.f32 %v1900, %v2025
    %v2050 = vadd.f32 %v1901, %v2045
    %v2051 = vxor.u32 %v2047, 2147483648
    %v2052 = vmul.f32 %v2051, 1.442695
    %v2053 = vpow.pop %v2052
    %v2054 = vadd.f32 %v2053, 1.0
    %v2055 = vrcp.pop %v2054
    %v2056 = vmul.f32 %v2054, %v2055
    %v2057 = vsub.f32 1.0, %v2056
    %v2058 = vmul.f32 %v2055, %v2057
    %v2059 = vadd.f32 %v2055, %v2058
    %vm2060 = vweird.f32 %v2054
    %vm2061 = vweird.f32 %v2055
    %vm2062 = vmor %vm2060, %vm2061
    %v2063 = vsel %vm2062, %v2055, %v2059
    %v2064 = vand.u32 2147483647, %v2054
    %vm2065 = vcmp.eq.f32.partialorder %v2064, 8.507059e+37
    %v2066 = vand.u32 %v2054, 2147483648
    %v2067 = vor.u32 1.1754944e-38, %v2066
    %v2068 = vsel %vm2065, %v2067, %v2063
    %v2069 = vmul.f32 1.0, %v2068
    %v2070 = vxor.u32 %v2048, 2147483648
    %v2071 = vmul.f32 %v2070, 1.442695
    %v2072 = vpow.pop %v2071
    %v2073 = vadd.f32 %v2072, 1.0
    %v2074 = vrcp.pop %v2073
    %v2075 = vmul.f32 %v2073, %v2074
    %v2076 = vsub.f32 1.0, %v2075
    %v2077 = vmul.f32 %v2074, %v2076
    %v2078 = vadd.f32 %v2074, %v2077
    %vm2079 = vweird.f32 %v2073
    %vm2080 = vweird.f32 %v2074
    %vm2081 = vmor %vm2079, %vm2080
    %v2082 = vsel %vm2081, %v2074, %v2078
    %v2083 = vand.u32 2147483647, %v2073
    %vm2084 = vcmp.eq.f32.partialorder %v2083, 8.507059e+37
    %v2085 = vand.u32 %v2073, 2147483648
    %v2086 = vor.u32 1.1754944e-38, %v2085
    %v2087 = vsel %vm2084, %v2086, %v2082
    %v2088 = vmul.f32 1.0, %v2087
    %v2089 = vtanh.pop %v2049
    %v2090 = vxor.u32 %v2050, 2147483648
    %v2091 = vmul.f32 %v2090, 1.442695
    %v2092 = vpow.pop %v2091
    %v2093 = vadd.f32 %v2092, 1.0
    %v2094 = vrcp.pop %v2093
    %v2095 = vmul.f32 %v2093, %v2094
    %v2096 = vsub.f32 1.0, %v2095
    %v2097 = vmul.f32 %v2094, %v2096
    %v2098 = vadd.f32 %v2094, %v2097
    %vm2099 = vweird.f32 %v2093
    %vm2100 = vweird.f32 %v2094
    %vm2101 = vmor %vm2099, %vm2100
    %v2102 = vsel %vm2101, %v2094, %v2098
    %v2103 = vand.u32 2147483647, %v2093
    %vm2104 = vcmp.eq.f32.partialorder %v2103, 8.507059e+37
    %v2105 = vand.u32 %v2093, 2147483648
    %v2106 = vor.u32 1.1754944e-38, %v2105
    %v2107 = vsel %vm2104, %v2106, %v2102
    %v2108 = vmul.f32 1.0, %v2107
    %v2109 = vld [vmem:[#allocation5] sm:$0xff]
    %v2110 = vmul.f32 %v2088, %v2109
    %v2111 = vmul.f32 %v2069, %v2089
    %v2112 = vadd.f32 %v2110, %v2111
    %v2113 = vtanh.pop %v2112
    %v2114 = vmul.f32 %v2108, %v2113
    %2115 = vst [vmem:[#allocation5] sm:$0xff] %v2112
    %2116 = vst [vmem:[#allocation4] sm:$0xff] %v2114
    %s2117 = scalar_lea.vmem [#allocation3], 56
    %2118 = vst [vmem:[%s2117] sm:$0xff] %v2114
    %v2119 = vld [vmem:[#allocation3] sm:$0xff]
    %v2120 = vld [vmem:[#allocation3 + $0x8] sm:$0xff]
    %v2121 = vld [vmem:[#allocation3 + $0x10] sm:$0xff]
    %v2122 = vld [vmem:[#allocation3 + $0x18] sm:$0xff]
    %v2123 = vld [vmem:[#allocation3 + $0x20] sm:$0xff]
    %v2124 = vld [vmem:[#allocation3 + $0x28] sm:$0xff]
    %v2125 = vld [vmem:[#allocation3 + $0x30] sm:$0xff]
    %v2126 = vld [vmem:[#allocation3 + $0x38] sm:$0xff]
    %v2127 = vld [vmem:[#allocation8] sm:$0xff]
    %v2128 = vld [vmem:[#allocation8 + $0x8] sm:$0xff]
    %v2129 = vld [vmem:[#allocation8 + $0x10] sm:$0xff]
    %v2130 = vld [vmem:[#allocation8 + $0x18] sm:$0xff]
    %v2131 = vld [vmem:[#allocation8 + $0x20] sm:$0xff]
    %v2132 = vld [vmem:[#allocation8 + $0x28] sm:$0xff]
    %v2133 = vld [vmem:[#allocation8 + $0x30] sm:$0xff]
    %v2134 = vld [vmem:[#allocation8 + $0x38] sm:$0xff]
    %v2135 = vld [vmem:[#allocation8 + $0x40] sm:$0xff]
    %v2136 = vld [vmem:[#allocation8 + $0x48] sm:$0xff]
    %v2137 = vld [vmem:[#allocation8 + $0x50] sm:$0xff]
    %v2138 = vld [vmem:[#allocation8 + $0x58] sm:$0xff]
    %v2139 = vld [vmem:[#allocation8 + $0x60] sm:$0xff]
    %v2140 = vld [vmem:[#allocation8 + $0x68] sm:$0xff]
    %v2141 = vld [vmem:[#allocation8 + $0x70] sm:$0xff]
    %v2142 = vld [vmem:[#allocation8 + $0x78] sm:$0xff]
    %v2143 = vld [vmem:[#allocation8 + $0x80] sm:$0xff]
    %v2144 = vld [vmem:[#allocation8 + $0x88] sm:$0xff]
    %v2145 = vld [vmem:[#allocation8 + $0x90] sm:$0xff]
    %v2146 = vld [vmem:[#allocation8 + $0x98] sm:$0xff]
    %v2147 = vld [vmem:[#allocation8 + $0xa0] sm:$0xff]
    %v2148 = vld [vmem:[#allocation8 + $0xa8] sm:$0xff]
    %v2149 = vld [vmem:[#allocation8 + $0xb0] sm:$0xff]
    %v2150 = vld [vmem:[#allocation8 + $0xb8] sm:$0xff]
    %v2151 = vld [vmem:[#allocation8 + $0xc0] sm:$0xff]
    %v2152 = vld [vmem:[#allocation8 + $0xc8] sm:$0xff]
    %v2153 = vld [vmem:[#allocation8 + $0xd0] sm:$0xff]
    %v2154 = vld [vmem:[#allocation8 + $0xd8] sm:$0xff]
    %v2155 = vld [vmem:[#allocation8 + $0xe0] sm:$0xff]
    %v2156 = vld [vmem:[#allocation8 + $0xe8] sm:$0xff]
    %v2157 = vld [vmem:[#allocation8 + $0xf0] sm:$0xff]
    %v2158 = vld [vmem:[#allocation8 + $0xf8] sm:$0xff]
    %v2159 = vld [vmem:[#allocation8 + $0x100] sm:$0xff]
    %v2160 = vld [vmem:[#allocation8 + $0x108] sm:$0xff]
    %v2161 = vld [vmem:[#allocation8 + $0x110] sm:$0xff]
    %v2162 = vld [vmem:[#allocation8 + $0x118] sm:$0xff]
    %v2163 = vld [vmem:[#allocation8 + $0x120] sm:$0xff]
    %v2164 = vld [vmem:[#allocation8 + $0x128] sm:$0xff]
    %v2165 = vld [vmem:[#allocation8 + $0x130] sm:$0xff]
    %v2166 = vld [vmem:[#allocation8 + $0x138] sm:$0xff]
    %v2167 = vld [vmem:[#allocation8 + $0x140] sm:$0xff]
    %v2168 = vld [vmem:[#allocation8 + $0x148] sm:$0xff]
    %v2169 = vld [vmem:[#allocation8 + $0x150] sm:$0xff]
    %v2170 = vld [vmem:[#allocation8 + $0x158] sm:$0xff]
    %v2171 = vld [vmem:[#allocation8 + $0x160] sm:$0xff]
    %v2172 = vld [vmem:[#allocation8 + $0x168] sm:$0xff]
    %v2173 = vld [vmem:[#allocation8 + $0x170] sm:$0xff]
    %v2174 = vld [vmem:[#allocation8 + $0x178] sm:$0xff]
    %v2175 = vld [vmem:[#allocation8 + $0x180] sm:$0xff]
    %v2176 = vld [vmem:[#allocation8 + $0x188] sm:$0xff]
    %v2177 = vld [vmem:[#allocation8 + $0x190] sm:$0xff]
    %v2178 = vld [vmem:[#allocation8 + $0x198] sm:$0xff]
    %v2179 = vld [vmem:[#allocation8 + $0x1a0] sm:$0xff]
    %v2180 = vld [vmem:[#allocation8 + $0x1a8] sm:$0xff]
    %v2181 = vld [vmem:[#allocation8 + $0x1b0] sm:$0xff]
    %v2182 = vld [vmem:[#allocation8 + $0x1b8] sm:$0xff]
    %v2183 = vld [vmem:[#allocation8 + $0x1c0] sm:$0xff]
    %v2184 = vld [vmem:[#allocation8 + $0x1c8] sm:$0xff]
    %v2185 = vld [vmem:[#allocation8 + $0x1d0] sm:$0xff]
    %v2186 = vld [vmem:[#allocation8 + $0x1d8] sm:$0xff]
    %v2187 = vld [vmem:[#allocation8 + $0x1e0] sm:$0xff]
    %v2188 = vld [vmem:[#allocation8 + $0x1e8] sm:$0xff]
    %v2189 = vld [vmem:[#allocation8 + $0x1f0] sm:$0xff]
    %v2190 = vld [vmem:[#allocation8 + $0x1f8] sm:$0xff]
    %v2191 = vld [vmem:[%s6] sm:$0xf]
    %v2193 = vperm.slane %v2191, 0
    %v2194 = vperm.slane %v2191, 1
    %v2195 = vperm.slane %v2191, 2
    %v2196 = vperm.slane %v2191, 3
    %2201 = vmatpush.msra.mxu0 %v2187
    %2202 = vmatpush.msra.mxu0 %v2183
    %2203 = vmatpush.msra.mxu0 %v2179
    %2204 = vmatpush.msra.mxu0 %v2175
    %2205 = vmatpush.msra.mxu0 %v2171
    %2206 = vmatpush.msra.mxu0 %v2167
    %2207 = vmatpush.msra.mxu0 %v2163
    %2208 = vmatpush.msra.mxu0 %v2159
    %2209 = vmatpush.msra.mxu0 %v2155
    %2210 = vmatpush.msra.mxu0 %v2151
    %2211 = vmatpush.msra.mxu0 %v2147
    %2212 = vmatpush.msra.mxu0 %v2143
    %2213 = vmatpush.msra.mxu0 %v2139
    %2214 = vmatpush.msra.mxu0 %v2135
    %2215 = vmatpush.msra.mxu0 %v2131
    %2216 = vmatpush.msra.mxu0 %v2127
    %2217 = vmatmul.f32.gmra.mxu0 %v2119
    %v2218 = vpop.f32.mrf.mxu0
    %v2219 = vadd.f32 %v2193, %v2218
    %2220 = vmatmul.f32.gmra.mxu0 %v2120
    %v2221 = vpop.f32.mrf.mxu0
    %v2222 = vadd.f32 %v2193, %v2221
    %2223 = vmatmul.f32.gmra.mxu0 %v2121
    %v2224 = vpop.f32.mrf.mxu0
    %v2225 = vadd.f32 %v2193, %v2224
    %2226 = vmatmul.f32.gmra.mxu0 %v2122
    %v2227 = vpop.f32.mrf.mxu0
    %v2228 = vadd.f32 %v2193, %v2227
    %2229 = vmatmul.f32.gmra.mxu0 %v2123
    %v2230 = vpop.f32.mrf.mxu0
    %v2231 = vadd.f32 %v2193, %v2230
    %2232 = vmatmul.f32.gmra.mxu0 %v2124
    %v2233 = vpop.f32.mrf.mxu0
    %v2234 = vadd.f32 %v2193, %v2233
    %2235 = vmatmul.f32.gmra.mxu0 %v2125
    %v2236 = vpop.f32.mrf.mxu0
    %v2237 = vadd.f32 %v2193, %v2236
    %2238 = vmatmul.f32.gmra.mxu0 %v2126
    %v2239 = vpop.f32.mrf.mxu0
    %v2240 = vadd.f32 %v2193, %v2239
    %2241 = vdwg.mxu0
    %2242 = vmatpush.msra.mxu0 %v2188
    %2243 = vmatpush.msra.mxu0 %v2184
    %2244 = vmatpush.msra.mxu0 %v2180
    %2245 = vmatpush.msra.mxu0 %v2176
    %2246 = vmatpush.msra.mxu0 %v2172
    %2247 = vmatpush.msra.mxu0 %v2168
    %2248 = vmatpush.msra.mxu0 %v2164
    %2249 = vmatpush.msra.mxu0 %v2160
    %2250 = vmatpush.msra.mxu0 %v2156
    %2251 = vmatpush.msra.mxu0 %v2152
    %2252 = vmatpush.msra.mxu0 %v2148
    %2253 = vmatpush.msra.mxu0 %v2144
    %2254 = vmatpush.msra.mxu0 %v2140
    %2255 = vmatpush.msra.mxu0 %v2136
    %2256 = vmatpush.msra.mxu0 %v2132
    %2257 = vmatpush.msra.mxu0 %v2128
    %2258 = vmatmul.f32.gmra.mxu0 %v2119
    %v2259 = vpop.f32.mrf.mxu0
    %v2260 = vadd.f32 %v2194, %v2259
    %2261 = vmatmul.f32.gmra.mxu0 %v2120
    %v2262 = vpop.f32.mrf.mxu0
    %v2263 = vadd.f32 %v2194, %v2262
    %2264 = vmatmul.f32.gmra.mxu0 %v2121
    %v2265 = vpop.f32.mrf.mxu0
    %v2266 = vadd.f32 %v2194, %v2265
    %2267 = vmatmul.f32.gmra.mxu0 %v2122
    %v2268 = vpop.f32.mrf.mxu0
    %v2269 = vadd.f32 %v2194, %v2268
    %2270 = vmatmul.f32.gmra.mxu0 %v2123
    %v2271 = vpop.f32.mrf.mxu0
    %v2272 = vadd.f32 %v2194, %v2271
    %2273 = vmatmul.f32.gmra.mxu0 %v2124
    %v2274 = vpop.f32.mrf.mxu0
    %v2275 = vadd.f32 %v2194, %v2274
    %2276 = vmatmul.f32.gmra.mxu0 %v2125
    %v2277 = vpop.f32.mrf.mxu0
    %v2278 = vadd.f32 %v2194, %v2277
    %2279 = vmatmul.f32.gmra.mxu0 %v2126
    %v2280 = vpop.f32.mrf.mxu0
    %v2281 = vadd.f32 %v2194, %v2280
    %2282 = vdwg.mxu0
    %2283 = vmatpush.msra.mxu0 %v2189
    %2284 = vmatpush.msra.mxu0 %v2185
    %2285 = vmatpush.msra.mxu0 %v2181
    %2286 = vmatpush.msra.mxu0 %v2177
    %2287 = vmatpush.msra.mxu0 %v2173
    %2288 = vmatpush.msra.mxu0 %v2169
    %2289 = vmatpush.msra.mxu0 %v2165
    %2290 = vmatpush.msra.mxu0 %v2161
    %2291 = vmatpush.msra.mxu0 %v2157
    %2292 = vmatpush.msra.mxu0 %v2153
    %2293 = vmatpush.msra.mxu0 %v2149
    %2294 = vmatpush.msra.mxu0 %v2145
    %2295 = vmatpush.msra.mxu0 %v2141
    %2296 = vmatpush.msra.mxu0 %v2137
    %2297 = vmatpush.msra.mxu0 %v2133
    %2298 = vmatpush.msra.mxu0 %v2129
    %2299 = vmatmul.f32.gmra.mxu0 %v2119
    %v2300 = vpop.f32.mrf.mxu0
    %v2301 = vadd.f32 %v2195, %v2300
    %2302 = vmatmul.f32.gmra.mxu0 %v2120
    %v2303 = vpop.f32.mrf.mxu0
    %v2304 = vadd.f32 %v2195, %v2303
    %2305 = vmatmul.f32.gmra.mxu0 %v2121
    %v2306 = vpop.f32.mrf.mxu0
    %v2307 = vadd.f32 %v2195, %v2306
    %2308 = vmatmul.f32.gmra.mxu0 %v2122
    %v2309 = vpop.f32.mrf.mxu0
    %v2310 = vadd.f32 %v2195, %v2309
    %2311 = vmatmul.f32.gmra.mxu0 %v2123
    %v2312 = vpop.f32.mrf.mxu0
    %v2313 = vadd.f32 %v2195, %v2312
    %2314 = vmatmul.f32.gmra.mxu0 %v2124
    %v2315 = vpop.f32.mrf.mxu0
    %v2316 = vadd.f32 %v2195, %v2315
    %2317 = vmatmul.f32.gmra.mxu0 %v2125
    %v2318 = vpop.f32.mrf.mxu0
    %v2319 = vadd.f32 %v2195, %v2318
    %2320 = vmatmul.f32.gmra.mxu0 %v2126
    %v2321 = vpop.f32.mrf.mxu0
    %v2322 = vadd.f32 %v2195, %v2321
    %2323 = vdwg.mxu0
    %2324 = vmatpush.msra.mxu0 %v2190
    %2325 = vmatpush.msra.mxu0 %v2186
    %2326 = vmatpush.msra.mxu0 %v2182
    %2327 = vmatpush.msra.mxu0 %v2178
    %2328 = vmatpush.msra.mxu0 %v2174
    %2329 = vmatpush.msra.mxu0 %v2170
    %2330 = vmatpush.msra.mxu0 %v2166
    %2331 = vmatpush.msra.mxu0 %v2162
    %2332 = vmatpush.msra.mxu0 %v2158
    %2333 = vmatpush.msra.mxu0 %v2154
    %2334 = vmatpush.msra.mxu0 %v2150
    %2335 = vmatpush.msra.mxu0 %v2146
    %2336 = vmatpush.msra.mxu0 %v2142
    %2337 = vmatpush.msra.mxu0 %v2138
    %2338 = vmatpush.msra.mxu0 %v2134
    %2339 = vmatpush.msra.mxu0 %v2130
    %2340 = vmatmul.f32.gmra.mxu0 %v2119
    %v2341 = vpop.f32.mrf.mxu0
    %v2342 = vadd.f32 %v2196, %v2341
    %2343 = vmatmul.f32.gmra.mxu0 %v2120
    %v2344 = vpop.f32.mrf.mxu0
    %v2345 = vadd.f32 %v2196, %v2344
    %2346 = vmatmul.f32.gmra.mxu0 %v2121
    %v2347 = vpop.f32.mrf.mxu0
    %v2348 = vadd.f32 %v2196, %v2347
    %2349 = vmatmul.f32.gmra.mxu0 %v2122
    %v2350 = vpop.f32.mrf.mxu0
    %v2351 = vadd.f32 %v2196, %v2350
    %2352 = vmatmul.f32.gmra.mxu0 %v2123
    %v2353 = vpop.f32.mrf.mxu0
    %v2354 = vadd.f32 %v2196, %v2353
    %2355 = vmatmul.f32.gmra.mxu0 %v2124
    %v2356 = vpop.f32.mrf.mxu0
    %v2357 = vadd.f32 %v2196, %v2356
    %2358 = vmatmul.f32.gmra.mxu0 %v2125
    %v2359 = vpop.f32.mrf.mxu0
    %v2360 = vadd.f32 %v2196, %v2359
    %2361 = vmatmul.f32.gmra.mxu0 %v2126
    %v2362 = vpop.f32.mrf.mxu0
    %v2363 = vadd.f32 %v2196, %v2362
    %2364 = vdwg.mxu0
    %2365 = vst [vmem:[#allocation2] sm:$0xff] %v2219
    %2366 = vst [vmem:[#allocation2 + $0x8] sm:$0xff] %v2260
    %2367 = vst [vmem:[#allocation2 + $0x10] sm:$0xff] %v2301
    %2368 = vst [vmem:[#allocation2 + $0x18] sm:$0xff] %v2342
    %2369 = vst [vmem:[#allocation2 + $0x20] sm:$0xff] %v2222
    %2370 = vst [vmem:[#allocation2 + $0x28] sm:$0xff] %v2263
    %2371 = vst [vmem:[#allocation2 + $0x30] sm:$0xff] %v2304
    %2372 = vst [vmem:[#allocation2 + $0x38] sm:$0xff] %v2345
    %2373 = vst [vmem:[#allocation2 + $0x40] sm:$0xff] %v2225
    %2374 = vst [vmem:[#allocation2 + $0x48] sm:$0xff] %v2266
    %2375 = vst [vmem:[#allocation2 + $0x50] sm:$0xff] %v2307
    %2376 = vst [vmem:[#allocation2 + $0x58] sm:$0xff] %v2348
    %2377 = vst [vmem:[#allocation2 + $0x60] sm:$0xff] %v2228
    %2378 = vst [vmem:[#allocation2 + $0x68] sm:$0xff] %v2269
    %2379 = vst [vmem:[#allocation2 + $0x70] sm:$0xff] %v2310
    %2380 = vst [vmem:[#allocation2 + $0x78] sm:$0xff] %v2351
    %2381 = vst [vmem:[#allocation2 + $0x80] sm:$0xff] %v2231
    %2382 = vst [vmem:[#allocation2 + $0x88] sm:$0xff] %v2272
    %2383 = vst [vmem:[#allocation2 + $0x90] sm:$0xff] %v2313
    %2384 = vst [vmem:[#allocation2 + $0x98] sm:$0xff] %v2354
    %2385 = vst [vmem:[#allocation2 + $0xa0] sm:$0xff] %v2234
    %2386 = vst [vmem:[#allocation2 + $0xa8] sm:$0xff] %v2275
    %2387 = vst [vmem:[#allocation2 + $0xb0] sm:$0xff] %v2316
    %2388 = vst [vmem:[#allocation2 + $0xb8] sm:$0xff] %v2357
    %2389 = vst [vmem:[#allocation2 + $0xc0] sm:$0xff] %v2237
    %2390 = vst [vmem:[#allocation2 + $0xc8] sm:$0xff] %v2278
    %2391 = vst [vmem:[#allocation2 + $0xd0] sm:$0xff] %v2319
    %2392 = vst [vmem:[#allocation2 + $0xd8] sm:$0xff] %v2360
    %2393 = vst [vmem:[#allocation2 + $0xe0] sm:$0xff] %v2240
    %2394 = vst [vmem:[#allocation2 + $0xe8] sm:$0xff] %v2281
    %2395 = vst [vmem:[#allocation2 + $0xf0] sm:$0xff] %v2322
    %2396 = vst [vmem:[#allocation2 + $0xf8] sm:$0xff] %v2363
    %2397 = vst [vmem:[#allocation4] sm:$0xff] 0.0
    %2398 = vst [vmem:[#allocation5] sm:$0xff] 0.0
    %v2399 = vld [vmem:[%s330] sm:$0xff]
    %v2400 = vld [vmem:[%s330 + $0x8] sm:$0xff]
    %v2401 = vld [vmem:[%s330 + $0x10] sm:$0xff]
    %v2402 = vld [vmem:[%s330 + $0x18] sm:$0xff]
    %v2403 = vld [vmem:[#allocation4] sm:$0xff]
    %v2404 = vld [vmem:[#allocation10] sm:$0xff]
    %v2405 = vld [vmem:[#allocation10 + $0x8] sm:$0xff]
    %v2406 = vld [vmem:[#allocation10 + $0x10] sm:$0xff]
    %v2407 = vld [vmem:[#allocation10 + $0x18] sm:$0xff]
    %v2408 = vld [vmem:[#allocation10 + $0x20] sm:$0xff]
    %v2409 = vld [vmem:[#allocation10 + $0x28] sm:$0xff]
    %v2410 = vld [vmem:[#allocation10 + $0x30] sm:$0xff]
    %v2411 = vld [vmem:[#allocation10 + $0x38] sm:$0xff]
    %v2412 = vld [vmem:[#allocation10 + $0x40] sm:$0xff]
    %v2413 = vld [vmem:[#allocation10 + $0x48] sm:$0xff]
    %v2414 = vld [vmem:[#allocation10 + $0x50] sm:$0xff]
    %v2415 = vld [vmem:[#allocation10 + $0x58] sm:$0xff]
    %v2416 = vld [vmem:[#allocation10 + $0x60] sm:$0xff]
    %v2417 = vld [vmem:[#allocation10 + $0x68] sm:$0xff]
    %v2418 = vld [vmem:[#allocation10 + $0x70] sm:$0xff]
    %v2419 = vld [vmem:[#allocation10 + $0x78] sm:$0xff]
    %v2420 = vld [vmem:[#allocation10 + $0x80] sm:$0xff]
    %v2421 = vld [vmem:[#allocation10 + $0x88] sm:$0xff]
    %v2422 = vld [vmem:[#allocation10 + $0x90] sm:$0xff]
    %v2423 = vld [vmem:[#allocation10 + $0x98] sm:$0xff]
    %v2424 = vld [vmem:[#allocation10 + $0xa0] sm:$0xff]
    %v2425 = vld [vmem:[#allocation10 + $0xa8] sm:$0xff]
    %v2426 = vld [vmem:[#allocation10 + $0xb0] sm:$0xff]
    %v2427 = vld [vmem:[#allocation10 + $0xb8] sm:$0xff]
    %v2428 = vld [vmem:[#allocation10 + $0xc0] sm:$0xff]
    %v2429 = vld [vmem:[#allocation10 + $0xc8] sm:$0xff]
    %v2430 = vld [vmem:[#allocation10 + $0xd0] sm:$0xff]
    %v2431 = vld [vmem:[#allocation10 + $0xd8] sm:$0xff]
    %v2432 = vld [vmem:[#allocation10 + $0xe0] sm:$0xff]
    %v2433 = vld [vmem:[#allocation10 + $0xe8] sm:$0xff]
    %v2434 = vld [vmem:[#allocation10 + $0xf0] sm:$0xff]
    %v2435 = vld [vmem:[#allocation10 + $0xf8] sm:$0xff]
    %v2436 = vld [vmem:[#allocation10 + $0x100] sm:$0xff]
    %v2437 = vld [vmem:[#allocation10 + $0x108] sm:$0xff]
    %v2438 = vld [vmem:[#allocation10 + $0x110] sm:$0xff]
    %v2439 = vld [vmem:[#allocation10 + $0x118] sm:$0xff]
    %v2440 = vld [vmem:[#allocation10 + $0x120] sm:$0xff]
    %v2441 = vld [vmem:[#allocation10 + $0x128] sm:$0xff]
    %v2442 = vld [vmem:[#allocation10 + $0x130] sm:$0xff]
    %v2443 = vld [vmem:[#allocation10 + $0x138] sm:$0xff]
    %v2444 = vld [vmem:[#allocation10 + $0x140] sm:$0xff]
    %v2445 = vld [vmem:[#allocation10 + $0x148] sm:$0xff]
    %v2446 = vld [vmem:[#allocation10 + $0x150] sm:$0xff]
    %v2447 = vld [vmem:[#allocation10 + $0x158] sm:$0xff]
    %v2448 = vld [vmem:[#allocation10 + $0x160] sm:$0xff]
    %v2449 = vld [vmem:[#allocation10 + $0x168] sm:$0xff]
    %v2450 = vld [vmem:[#allocation10 + $0x170] sm:$0xff]
    %v2451 = vld [vmem:[#allocation10 + $0x178] sm:$0xff]
    %v2452 = vld [vmem:[#allocation10 + $0x180] sm:$0xff]
    %v2453 = vld [vmem:[#allocation10 + $0x188] sm:$0xff]
    %v2454 = vld [vmem:[#allocation10 + $0x190] sm:$0xff]
    %v2455 = vld [vmem:[#allocation10 + $0x198] sm:$0xff]
    %v2456 = vld [vmem:[#allocation10 + $0x1a0] sm:$0xff]
    %v2457 = vld [vmem:[#allocation10 + $0x1a8] sm:$0xff]
    %v2458 = vld [vmem:[#allocation10 + $0x1b0] sm:$0xff]
    %v2459 = vld [vmem:[#allocation10 + $0x1b8] sm:$0xff]
    %v2460 = vld [vmem:[#allocation10 + $0x1c0] sm:$0xff]
    %v2461 = vld [vmem:[#allocation10 + $0x1c8] sm:$0xff]
    %v2462 = vld [vmem:[#allocation10 + $0x1d0] sm:$0xff]
    %v2463 = vld [vmem:[#allocation10 + $0x1d8] sm:$0xff]
    %v2464 = vld [vmem:[#allocation10 + $0x1e0] sm:$0xff]
    %v2465 = vld [vmem:[#allocation10 + $0x1e8] sm:$0xff]
    %v2466 = vld [vmem:[#allocation10 + $0x1f0] sm:$0xff]
    %v2467 = vld [vmem:[#allocation10 + $0x1f8] sm:$0xff]
    %2468 = vmatpush.msra.mxu0 %v2464
    %2469 = vmatpush.msra.mxu0 %v2460
    %2470 = vmatpush.msra.mxu0 %v2456
    %2471 = vmatpush.msra.mxu0 %v2452
    %2472 = vmatpush.msra.mxu0 %v2448
    %2473 = vmatpush.msra.mxu0 %v2444
    %2474 = vmatpush.msra.mxu0 %v2440
    %2475 = vmatpush.msra.mxu0 %v2436
    %2476 = vmatpush.msra.mxu0 %v2432
    %2477 = vmatpush.msra.mxu0 %v2428
    %2478 = vmatpush.msra.mxu0 %v2424
    %2479 = vmatpush.msra.mxu0 %v2420
    %2480 = vmatpush.msra.mxu0 %v2416
    %2481 = vmatpush.msra.mxu0 %v2412
    %2482 = vmatpush.msra.mxu0 %v2408
    %2483 = vmatpush.msra.mxu0 %v2404
    %2484 = vmatmul.f32.gmra.mxu0 %v2403
    %v2485 = vpop.f32.mrf.mxu0
    %v2486 = vadd.f32 0.0, %v2485
    %2487 = vdwg.mxu0
    %2488 = vmatpush.msra.mxu0 %v2465
    %2489 = vmatpush.msra.mxu0 %v2461
    %2490 = vmatpush.msra.mxu0 %v2457
    %2491 = vmatpush.msra.mxu0 %v2453
    %2492 = vmatpush.msra.mxu0 %v2449
    %2493 = vmatpush.msra.mxu0 %v2445
    %2494 = vmatpush.msra.mxu0 %v2441
    %2495 = vmatpush.msra.mxu0 %v2437
    %2496 = vmatpush.msra.mxu0 %v2433
    %2497 = vmatpush.msra.mxu0 %v2429
    %2498 = vmatpush.msra.mxu0 %v2425
    %2499 = vmatpush.msra.mxu0 %v2421
    %2500 = vmatpush.msra.mxu0 %v2417
    %2501 = vmatpush.msra.mxu0 %v2413
    %2502 = vmatpush.msra.mxu0 %v2409
    %2503 = vmatpush.msra.mxu0 %v2405
    %2504 = vmatmul.f32.gmra.mxu0 %v2403
    %v2505 = vpop.f32.mrf.mxu0
    %v2506 = vadd.f32 0.0, %v2505
    %2507 = vdwg.mxu0
    %2508 = vmatpush.msra.mxu0 %v2466
    %2509 = vmatpush.msra.mxu0 %v2462
    %2510 = vmatpush.msra.mxu0 %v2458
    %2511 = vmatpush.msra.mxu0 %v2454
    %2512 = vmatpush.msra.mxu0 %v2450
    %2513 = vmatpush.msra.mxu0 %v2446
    %2514 = vmatpush.msra.mxu0 %v2442
    %2515 = vmatpush.msra.mxu0 %v2438
    %2516 = vmatpush.msra.mxu0 %v2434
    %2517 = vmatpush.msra.mxu0 %v2430
    %2518 = vmatpush.msra.mxu0 %v2426
    %2519 = vmatpush.msra.mxu0 %v2422
    %2520 = vmatpush.msra.mxu0 %v2418
    %2521 = vmatpush.msra.mxu0 %v2414
    %2522 = vmatpush.msra.mxu0 %v2410
    %2523 = vmatpush.msra.mxu0 %v2406
    %2524 = vmatmul.f32.gmra.mxu0 %v2403
    %v2525 = vpop.f32.mrf.mxu0
    %v2526 = vadd.f32 0.0, %v2525
    %2527 = vdwg.mxu0
    %2528 = vmatpush.msra.mxu0 %v2467
    %2529 = vmatpush.msra.mxu0 %v2463
    %2530 = vmatpush.msra.mxu0 %v2459
    %2531 = vmatpush.msra.mxu0 %v2455
    %2532 = vmatpush.msra.mxu0 %v2451
    %2533 = vmatpush.msra.mxu0 %v2447
    %2534 = vmatpush.msra.mxu0 %v2443
    %2535 = vmatpush.msra.mxu0 %v2439
    %2536 = vmatpush.msra.mxu0 %v2435
    %2537 = vmatpush.msra.mxu0 %v2431
    %2538 = vmatpush.msra.mxu0 %v2427
    %2539 = vmatpush.msra.mxu0 %v2423
    %2540 = vmatpush.msra.mxu0 %v2419
    %2541 = vmatpush.msra.mxu0 %v2415
    %2542 = vmatpush.msra.mxu0 %v2411
    %2543 = vmatpush.msra.mxu0 %v2407
    %2544 = vmatmul.f32.gmra.mxu0 %v2403
    %v2545 = vpop.f32.mrf.mxu0
    %v2546 = vadd.f32 0.0, %v2545
    %2547 = vdwg.mxu0
    %v2548 = vadd.f32 %v2399, %v2486
    %v2549 = vadd.f32 %v2400, %v2506
    %v2550 = vadd.f32 %v2401, %v2526
    %v2551 = vadd.f32 %v2402, %v2546
    %v2552 = vxor.u32 %v2548, 2147483648
    %v2553 = vmul.f32 %v2552, 1.442695
    %v2554 = vpow.pop %v2553
    %v2555 = vadd.f32 %v2554, 1.0
    %v2556 = vrcp.pop %v2555
    %v2557 = vmul.f32 %v2555, %v2556
    %v2558 = vsub.f32 1.0, %v2557
    %v2559 = vmul.f32 %v2556, %v2558
    %v2560 = vadd.f32 %v2556, %v2559
    %vm2561 = vweird.f32 %v2555
    %vm2562 = vweird.f32 %v2556
    %vm2563 = vmor %vm2561, %vm2562
    %v2564 = vsel %vm2563, %v2556, %v2560
    %v2565 = vand.u32 2147483647, %v2555
    %vm2566 = vcmp.eq.f32.partialorder %v2565, 8.507059e+37
    %v2567 = vand.u32 %v2555, 2147483648
    %v2568 = vor.u32 1.1754944e-38, %v2567
    %v2569 = vsel %vm2566, %v2568, %v2564
    %v2570 = vmul.f32 1.0, %v2569
    %v2571 = vxor.u32 %v2549, 2147483648
    %v2572 = vmul.f32 %v2571, 1.442695
    %v2573 = vpow.pop %v2572
    %v2574 = vadd.f32 %v2573, 1.0
    %v2575 = vrcp.pop %v2574
    %v2576 = vmul.f32 %v2574, %v2575
    %v2577 = vsub.f32 1.0, %v2576
    %v2578 = vmul.f32 %v2575, %v2577
    %v2579 = vadd.f32 %v2575, %v2578
    %vm2580 = vweird.f32 %v2574
    %vm2581 = vweird.f32 %v2575
    %vm2582 = vmor %vm2580, %vm2581
    %v2583 = vsel %vm2582, %v2575, %v2579
    %v2584 = vand.u32 2147483647, %v2574
    %vm2585 = vcmp.eq.f32.partialorder %v2584, 8.507059e+37
    %v2586 = vand.u32 %v2574, 2147483648
    %v2587 = vor.u32 1.1754944e-38, %v2586
    %v2588 = vsel %vm2585, %v2587, %v2583
    %v2589 = vmul.f32 1.0, %v2588
    %v2590 = vtanh.pop %v2550
    %v2591 = vxor.u32 %v2551, 2147483648
    %v2592 = vmul.f32 %v2591, 1.442695
    %v2593 = vpow.pop %v2592
    %v2594 = vadd.f32 %v2593, 1.0
    %v2595 = vrcp.pop %v2594
    %v2596 = vmul.f32 %v2594, %v2595
    %v2597 = vsub.f32 1.0, %v2596
    %v2598 = vmul.f32 %v2595, %v2597
    %v2599 = vadd.f32 %v2595, %v2598
    %vm2600 = vweird.f32 %v2594
    %vm2601 = vweird.f32 %v2595
    %vm2602 = vmor %vm2600, %vm2601
    %v2603 = vsel %vm2602, %v2595, %v2599
    %v2604 = vand.u32 2147483647, %v2594
    %vm2605 = vcmp.eq.f32.partialorder %v2604, 8.507059e+37
    %v2606 = vand.u32 %v2594, 2147483648
    %v2607 = vor.u32 1.1754944e-38, %v2606
    %v2608 = vsel %vm2605, %v2607, %v2603
    %v2609 = vmul.f32 1.0, %v2608
    %v2610 = vld [vmem:[#allocation5] sm:$0xff]
    %v2611 = vmul.f32 %v2589, %v2610
    %v2612 = vmul.f32 %v2570, %v2590
    %v2613 = vadd.f32 %v2611, %v2612
    %v2614 = vtanh.pop %v2613
    %v2615 = vmul.f32 %v2609, %v2614
    %2616 = vst [vmem:[#allocation5] sm:$0xff] %v2613
    %2617 = vst [vmem:[#allocation4] sm:$0xff] %v2615
    %2618 = vst [vmem:[#allocation3] sm:$0xff] %v2615
    %v2619 = vld [vmem:[%s553] sm:$0xff]
    %v2620 = vld [vmem:[%s553 + $0x8] sm:$0xff]
    %v2621 = vld [vmem:[%s553 + $0x10] sm:$0xff]
    %v2622 = vld [vmem:[%s553 + $0x18] sm:$0xff]
    %v2623 = vld [vmem:[#allocation4] sm:$0xff]
    %v2624 = vld [vmem:[#allocation10] sm:$0xff]
    %v2625 = vld [vmem:[#allocation10 + $0x8] sm:$0xff]
    %v2626 = vld [vmem:[#allocation10 + $0x10] sm:$0xff]
    %v2627 = vld [vmem:[#allocation10 + $0x18] sm:$0xff]
    %v2628 = vld [vmem:[#allocation10 + $0x20] sm:$0xff]
    %v2629 = vld [vmem:[#allocation10 + $0x28] sm:$0xff]
    %v2630 = vld [vmem:[#allocation10 + $0x30] sm:$0xff]
    %v2631 = vld [vmem:[#allocation10 + $0x38] sm:$0xff]
    %v2632 = vld [vmem:[#allocation10 + $0x40] sm:$0xff]
    %v2633 = vld [vmem:[#allocation10 + $0x48] sm:$0xff]
    %v2634 = vld [vmem:[#allocation10 + $0x50] sm:$0xff]
    %v2635 = vld [vmem:[#allocation10 + $0x58] sm:$0xff]
    %v2636 = vld [vmem:[#allocation10 + $0x60] sm:$0xff]
    %v2637 = vld [vmem:[#allocation10 + $0x68] sm:$0xff]
    %v2638 = vld [vmem:[#allocation10 + $0x70] sm:$0xff]
    %v2639 = vld [vmem:[#allocation10 + $0x78] sm:$0xff]
    %v2640 = vld [vmem:[#allocation10 + $0x80] sm:$0xff]
    %v2641 = vld [vmem:[#allocation10 + $0x88] sm:$0xff]
    %v2642 = vld [vmem:[#allocation10 + $0x90] sm:$0xff]
    %v2643 = vld [vmem:[#allocation10 + $0x98] sm:$0xff]
    %v2644 = vld [vmem:[#allocation10 + $0xa0] sm:$0xff]
    %v2645 = vld [vmem:[#allocation10 + $0xa8] sm:$0xff]
    %v2646 = vld [vmem:[#allocation10 + $0xb0] sm:$0xff]
    %v2647 = vld [vmem:[#allocation10 + $0xb8] sm:$0xff]
    %v2648 = vld [vmem:[#allocation10 + $0xc0] sm:$0xff]
    %v2649 = vld [vmem:[#allocation10 + $0xc8] sm:$0xff]
    %v2650 = vld [vmem:[#allocation10 + $0xd0] sm:$0xff]
    %v2651 = vld [vmem:[#allocation10 + $0xd8] sm:$0xff]
    %v2652 = vld [vmem:[#allocation10 + $0xe0] sm:$0xff]
    %v2653 = vld [vmem:[#allocation10 + $0xe8] sm:$0xff]
    %v2654 = vld [vmem:[#allocation10 + $0xf0] sm:$0xff]
    %v2655 = vld [vmem:[#allocation10 + $0xf8] sm:$0xff]
    %v2656 = vld [vmem:[#allocation10 + $0x100] sm:$0xff]
    %v2657 = vld [vmem:[#allocation10 + $0x108] sm:$0xff]
    %v2658 = vld [vmem:[#allocation10 + $0x110] sm:$0xff]
    %v2659 = vld [vmem:[#allocation10 + $0x118] sm:$0xff]
    %v2660 = vld [vmem:[#allocation10 + $0x120] sm:$0xff]
    %v2661 = vld [vmem:[#allocation10 + $0x128] sm:$0xff]
    %v2662 = vld [vmem:[#allocation10 + $0x130] sm:$0xff]
    %v2663 = vld [vmem:[#allocation10 + $0x138] sm:$0xff]
    %v2664 = vld [vmem:[#allocation10 + $0x140] sm:$0xff]
    %v2665 = vld [vmem:[#allocation10 + $0x148] sm:$0xff]
    %v2666 = vld [vmem:[#allocation10 + $0x150] sm:$0xff]
    %v2667 = vld [vmem:[#allocation10 + $0x158] sm:$0xff]
    %v2668 = vld [vmem:[#allocation10 + $0x160] sm:$0xff]
    %v2669 = vld [vmem:[#allocation10 + $0x168] sm:$0xff]
    %v2670 = vld [vmem:[#allocation10 + $0x170] sm:$0xff]
    %v2671 = vld [vmem:[#allocation10 + $0x178] sm:$0xff]
    %v2672 = vld [vmem:[#allocation10 + $0x180] sm:$0xff]
    %v2673 = vld [vmem:[#allocation10 + $0x188] sm:$0xff]
    %v2674 = vld [vmem:[#allocation10 + $0x190] sm:$0xff]
    %v2675 = vld [vmem:[#allocation10 + $0x198] sm:$0xff]
    %v2676 = vld [vmem:[#allocation10 + $0x1a0] sm:$0xff]
    %v2677 = vld [vmem:[#allocation10 + $0x1a8] sm:$0xff]
    %v2678 = vld [vmem:[#allocation10 + $0x1b0] sm:$0xff]
    %v2679 = vld [vmem:[#allocation10 + $0x1b8] sm:$0xff]
    %v2680 = vld [vmem:[#allocation10 + $0x1c0] sm:$0xff]
    %v2681 = vld [vmem:[#allocation10 + $0x1c8] sm:$0xff]
    %v2682 = vld [vmem:[#allocation10 + $0x1d0] sm:$0xff]
    %v2683 = vld [vmem:[#allocation10 + $0x1d8] sm:$0xff]
    %v2684 = vld [vmem:[#allocation10 + $0x1e0] sm:$0xff]
    %v2685 = vld [vmem:[#allocation10 + $0x1e8] sm:$0xff]
    %v2686 = vld [vmem:[#allocation10 + $0x1f0] sm:$0xff]
    %v2687 = vld [vmem:[#allocation10 + $0x1f8] sm:$0xff]
    %2688 = vmatpush.msra.mxu0 %v2684
    %2689 = vmatpush.msra.mxu0 %v2680
    %2690 = vmatpush.msra.mxu0 %v2676
    %2691 = vmatpush.msra.mxu0 %v2672
    %2692 = vmatpush.msra.mxu0 %v2668
    %2693 = vmatpush.msra.mxu0 %v2664
    %2694 = vmatpush.msra.mxu0 %v2660
    %2695 = vmatpush.msra.mxu0 %v2656
    %2696 = vmatpush.msra.mxu0 %v2652
    %2697 = vmatpush.msra.mxu0 %v2648
    %2698 = vmatpush.msra.mxu0 %v2644
    %2699 = vmatpush.msra.mxu0 %v2640
    %2700 = vmatpush.msra.mxu0 %v2636
    %2701 = vmatpush.msra.mxu0 %v2632
    %2702 = vmatpush.msra.mxu0 %v2628
    %2703 = vmatpush.msra.mxu0 %v2624
    %2704 = vmatmul.f32.gmra.mxu0 %v2623
    %v2705 = vpop.f32.mrf.mxu0
    %v2706 = vadd.f32 0.0, %v2705
    %2707 = vdwg.mxu0
    %2708 = vmatpush.msra.mxu0 %v2685
    %2709 = vmatpush.msra.mxu0 %v2681
    %2710 = vmatpush.msra.mxu0 %v2677
    %2711 = vmatpush.msra.mxu0 %v2673
    %2712 = vmatpush.msra.mxu0 %v2669
    %2713 = vmatpush.msra.mxu0 %v2665
    %2714 = vmatpush.msra.mxu0 %v2661
    %2715 = vmatpush.msra.mxu0 %v2657
    %2716 = vmatpush.msra.mxu0 %v2653
    %2717 = vmatpush.msra.mxu0 %v2649
    %2718 = vmatpush.msra.mxu0 %v2645
    %2719 = vmatpush.msra.mxu0 %v2641
    %2720 = vmatpush.msra.mxu0 %v2637
    %2721 = vmatpush.msra.mxu0 %v2633
    %2722 = vmatpush.msra.mxu0 %v2629
    %2723 = vmatpush.msra.mxu0 %v2625
    %2724 = vmatmul.f32.gmra.mxu0 %v2623
    %v2725 = vpop.f32.mrf.mxu0
    %v2726 = vadd.f32 0.0, %v2725
    %2727 = vdwg.mxu0
    %2728 = vmatpush.msra.mxu0 %v2686
    %2729 = vmatpush.msra.mxu0 %v2682
    %2730 = vmatpush.msra.mxu0 %v2678
    %2731 = vmatpush.msra.mxu0 %v2674
    %2732 = vmatpush.msra.mxu0 %v2670
    %2733 = vmatpush.msra.mxu0 %v2666
    %2734 = vmatpush.msra.mxu0 %v2662
    %2735 = vmatpush.msra.mxu0 %v2658
    %2736 = vmatpush.msra.mxu0 %v2654
    %2737 = vmatpush.msra.mxu0 %v2650
    %2738 = vmatpush.msra.mxu0 %v2646
    %2739 = vmatpush.msra.mxu0 %v2642
    %2740 = vmatpush.msra.mxu0 %v2638
    %2741 = vmatpush.msra.mxu0 %v2634
    %2742 = vmatpush.msra.mxu0 %v2630
    %2743 = vmatpush.msra.mxu0 %v2626
    %2744 = vmatmul.f32.gmra.mxu0 %v2623
    %v2745 = vpop.f32.mrf.mxu0
    %v2746 = vadd.f32 0.0, %v2745
    %2747 = vdwg.mxu0
    %2748 = vmatpush.msra.mxu0 %v2687
    %2749 = vmatpush.msra.mxu0 %v2683
    %2750 = vmatpush.msra.mxu0 %v2679
    %2751 = vmatpush.msra.mxu0 %v2675
    %2752 = vmatpush.msra.mxu0 %v2671
    %2753 = vmatpush.msra.mxu0 %v2667
    %2754 = vmatpush.msra.mxu0 %v2663
    %2755 = vmatpush.msra.mxu0 %v2659
    %2756 = vmatpush.msra.mxu0 %v2655
    %2757 = vmatpush.msra.mxu0 %v2651
    %2758 = vmatpush.msra.mxu0 %v2647
    %2759 = vmatpush.msra.mxu0 %v2643
    %2760 = vmatpush.msra.mxu0 %v2639
    %2761 = vmatpush.msra.mxu0 %v2635
    %2762 = vmatpush.msra.mxu0 %v2631
    %2763 = vmatpush.msra.mxu0 %v2627
    %2764 = vmatmul.f32.gmra.mxu0 %v2623
    %v2765 = vpop.f32.mrf.mxu0
    %v2766 = vadd.f32 0.0, %v2765
    %2767 = vdwg.mxu0
    %v2768 = vadd.f32 %v2619, %v2706
    %v2769 = vadd.f32 %v2620, %v2726
    %v2770 = vadd.f32 %v2621, %v2746
    %v2771 = vadd.f32 %v2622, %v2766
    %v2772 = vxor.u32 %v2768, 2147483648
    %v2773 = vmul.f32 %v2772, 1.442695
    %v2774 = vpow.pop %v2773
    %v2775 = vadd.f32 %v2774, 1.0
    %v2776 = vrcp.pop %v2775
    %v2777 = vmul.f32 %v2775, %v2776
    %v2778 = vsub.f32 1.0, %v2777
    %v2779 = vmul.f32 %v2776, %v2778
    %v2780 = vadd.f32 %v2776, %v2779
    %vm2781 = vweird.f32 %v2775
    %vm2782 = vweird.f32 %v2776
    %vm2783 = vmor %vm2781, %vm2782
    %v2784 = vsel %vm2783, %v2776, %v2780
    %v2785 = vand.u32 2147483647, %v2775
    %vm2786 = vcmp.eq.f32.partialorder %v2785, 8.507059e+37
    %v2787 = vand.u32 %v2775, 2147483648
    %v2788 = vor.u32 1.1754944e-38, %v2787
    %v2789 = vsel %vm2786, %v2788, %v2784
    %v2790 = vmul.f32 1.0, %v2789
    %v2791 = vxor.u32 %v2769, 2147483648
    %v2792 = vmul.f32 %v2791, 1.442695
    %v2793 = vpow.pop %v2792
    %v2794 = vadd.f32 %v2793, 1.0
    %v2795 = vrcp.pop %v2794
    %v2796 = vmul.f32 %v2794, %v2795
    %v2797 = vsub.f32 1.0, %v2796
    %v2798 = vmul.f32 %v2795, %v2797
    %v2799 = vadd.f32 %v2795, %v2798
    %vm2800 = vweird.f32 %v2794
    %vm2801 = vweird.f32 %v2795
    %vm2802 = vmor %vm2800, %vm2801
    %v2803 = vsel %vm2802, %v2795, %v2799
    %v2804 = vand.u32 2147483647, %v2794
    %vm2805 = vcmp.eq.f32.partialorder %v2804, 8.507059e+37
    %v2806 = vand.u32 %v2794, 2147483648
    %v2807 = vor.u32 1.1754944e-38, %v2806
    %v2808 = vsel %vm2805, %v2807, %v2803
    %v2809 = vmul.f32 1.0, %v2808
    %v2810 = vtanh.pop %v2770
    %v2811 = vxor.u32 %v2771, 2147483648
    %v2812 = vmul.f32 %v2811, 1.442695
    %v2813 = vpow.pop %v2812
    %v2814 = vadd.f32 %v2813, 1.0
    %v2815 = vrcp.pop %v2814
    %v2816 = vmul.f32 %v2814, %v2815
    %v2817 = vsub.f32 1.0, %v2816
    %v2818 = vmul.f32 %v2815, %v2817
    %v2819 = vadd.f32 %v2815, %v2818
    %vm2820 = vweird.f32 %v2814
    %vm2821 = vweird.f32 %v2815
    %vm2822 = vmor %vm2820, %vm2821
    %v2823 = vsel %vm2822, %v2815, %v2819
    %v2824 = vand.u32 2147483647, %v2814
    %vm2825 = vcmp.eq.f32.partialorder %v2824, 8.507059e+37
    %v2826 = vand.u32 %v2814, 2147483648
    %v2827 = vor.u32 1.1754944e-38, %v2826
    %v2828 = vsel %vm2825, %v2827, %v2823
    %v2829 = vmul.f32 1.0, %v2828
    %v2830 = vld [vmem:[#allocation5] sm:$0xff]
    %v2831 = vmul.f32 %v2809, %v2830
    %v2832 = vmul.f32 %v2790, %v2810
    %v2833 = vadd.f32 %v2831, %v2832
    %v2834 = vtanh.pop %v2833
    %v2835 = vmul.f32 %v2829, %v2834
    %2836 = vst [vmem:[#allocation5] sm:$0xff] %v2833
    %2837 = vst [vmem:[#allocation4] sm:$0xff] %v2835
    %2838 = vst [vmem:[%s773] sm:$0xff] %v2835
    %v2839 = vld [vmem:[%s777] sm:$0xff]
    %v2840 = vld [vmem:[%s777 + $0x8] sm:$0xff]
    %v2841 = vld [vmem:[%s777 + $0x10] sm:$0xff]
    %v2842 = vld [vmem:[%s777 + $0x18] sm:$0xff]
    %v2843 = vld [vmem:[#allocation4] sm:$0xff]
    %v2844 = vld [vmem:[#allocation10] sm:$0xff]
    %v2845 = vld [vmem:[#allocation10 + $0x8] sm:$0xff]
    %v2846 = vld [vmem:[#allocation10 + $0x10] sm:$0xff]
    %v2847 = vld [vmem:[#allocation10 + $0x18] sm:$0xff]
    %v2848 = vld [vmem:[#allocation10 + $0x20] sm:$0xff]
    %v2849 = vld [vmem:[#allocation10 + $0x28] sm:$0xff]
    %v2850 = vld [vmem:[#allocation10 + $0x30] sm:$0xff]
    %v2851 = vld [vmem:[#allocation10 + $0x38] sm:$0xff]
    %v2852 = vld [vmem:[#allocation10 + $0x40] sm:$0xff]
    %v2853 = vld [vmem:[#allocation10 + $0x48] sm:$0xff]
    %v2854 = vld [vmem:[#allocation10 + $0x50] sm:$0xff]
    %v2855 = vld [vmem:[#allocation10 + $0x58] sm:$0xff]
    %v2856 = vld [vmem:[#allocation10 + $0x60] sm:$0xff]
    %v2857 = vld [vmem:[#allocation10 + $0x68] sm:$0xff]
    %v2858 = vld [vmem:[#allocation10 + $0x70] sm:$0xff]
    %v2859 = vld [vmem:[#allocation10 + $0x78] sm:$0xff]
    %v2860 = vld [vmem:[#allocation10 + $0x80] sm:$0xff]
    %v2861 = vld [vmem:[#allocation10 + $0x88] sm:$0xff]
    %v2862 = vld [vmem:[#allocation10 + $0x90] sm:$0xff]
    %v2863 = vld [vmem:[#allocation10 + $0x98] sm:$0xff]
    %v2864 = vld [vmem:[#allocation10 + $0xa0] sm:$0xff]
    %v2865 = vld [vmem:[#allocation10 + $0xa8] sm:$0xff]
    %v2866 = vld [vmem:[#allocation10 + $0xb0] sm:$0xff]
    %v2867 = vld [vmem:[#allocation10 + $0xb8] sm:$0xff]
    %v2868 = vld [vmem:[#allocation10 + $0xc0] sm:$0xff]
    %v2869 = vld [vmem:[#allocation10 + $0xc8] sm:$0xff]
    %v2870 = vld [vmem:[#allocation10 + $0xd0] sm:$0xff]
    %v2871 = vld [vmem:[#allocation10 + $0xd8] sm:$0xff]
    %v2872 = vld [vmem:[#allocation10 + $0xe0] sm:$0xff]
    %v2873 = vld [vmem:[#allocation10 + $0xe8] sm:$0xff]
    %v2874 = vld [vmem:[#allocation10 + $0xf0] sm:$0xff]
    %v2875 = vld [vmem:[#allocation10 + $0xf8] sm:$0xff]
    %v2876 = vld [vmem:[#allocation10 + $0x100] sm:$0xff]
    %v2877 = vld [vmem:[#allocation10 + $0x108] sm:$0xff]
    %v2878 = vld [vmem:[#allocation10 + $0x110] sm:$0xff]
    %v2879 = vld [vmem:[#allocation10 + $0x118] sm:$0xff]
    %v2880 = vld [vmem:[#allocation10 + $0x120] sm:$0xff]
    %v2881 = vld [vmem:[#allocation10 + $0x128] sm:$0xff]
    %v2882 = vld [vmem:[#allocation10 + $0x130] sm:$0xff]
    %v2883 = vld [vmem:[#allocation10 + $0x138] sm:$0xff]
    %v2884 = vld [vmem:[#allocation10 + $0x140] sm:$0xff]
    %v2885 = vld [vmem:[#allocation10 + $0x148] sm:$0xff]
    %v2886 = vld [vmem:[#allocation10 + $0x150] sm:$0xff]
    %v2887 = vld [vmem:[#allocation10 + $0x158] sm:$0xff]
    %v2888 = vld [vmem:[#allocation10 + $0x160] sm:$0xff]
    %v2889 = vld [vmem:[#allocation10 + $0x168] sm:$0xff]
    %v2890 = vld [vmem:[#allocation10 + $0x170] sm:$0xff]
    %v2891 = vld [vmem:[#allocation10 + $0x178] sm:$0xff]
    %v2892 = vld [vmem:[#allocation10 + $0x180] sm:$0xff]
    %v2893 = vld [vmem:[#allocation10 + $0x188] sm:$0xff]
    %v2894 = vld [vmem:[#allocation10 + $0x190] sm:$0xff]
    %v2895 = vld [vmem:[#allocation10 + $0x198] sm:$0xff]
    %v2896 = vld [vmem:[#allocation10 + $0x1a0] sm:$0xff]
    %v2897 = vld [vmem:[#allocation10 + $0x1a8] sm:$0xff]
    %v2898 = vld [vmem:[#allocation10 + $0x1b0] sm:$0xff]
    %v2899 = vld [vmem:[#allocation10 + $0x1b8] sm:$0xff]
    %v2900 = vld [vmem:[#allocation10 + $0x1c0] sm:$0xff]
    %v2901 = vld [vmem:[#allocation10 + $0x1c8] sm:$0xff]
    %v2902 = vld [vmem:[#allocation10 + $0x1d0] sm:$0xff]
    %v2903 = vld [vmem:[#allocation10 + $0x1d8] sm:$0xff]
    %v2904 = vld [vmem:[#allocation10 + $0x1e0] sm:$0xff]
    %v2905 = vld [vmem:[#allocation10 + $0x1e8] sm:$0xff]
    %v2906 = vld [vmem:[#allocation10 + $0x1f0] sm:$0xff]
    %v2907 = vld [vmem:[#allocation10 + $0x1f8] sm:$0xff]
    %2908 = vmatpush.msra.mxu0 %v2904
    %2909 = vmatpush.msra.mxu0 %v2900
    %2910 = vmatpush.msra.mxu0 %v2896
    %2911 = vmatpush.msra.mxu0 %v2892
    %2912 = vmatpush.msra.mxu0 %v2888
    %2913 = vmatpush.msra.mxu0 %v2884
    %2914 = vmatpush.msra.mxu0 %v2880
    %2915 = vmatpush.msra.mxu0 %v2876
    %2916 = vmatpush.msra.mxu0 %v2872
    %2917 = vmatpush.msra.mxu0 %v2868
    %2918 = vmatpush.msra.mxu0 %v2864
    %2919 = vmatpush.msra.mxu0 %v2860
    %2920 = vmatpush.msra.mxu0 %v2856
    %2921 = vmatpush.msra.mxu0 %v2852
    %2922 = vmatpush.msra.mxu0 %v2848
    %2923 = vmatpush.msra.mxu0 %v2844
    %2924 = vmatmul.f32.gmra.mxu0 %v2843
    %v2925 = vpop.f32.mrf.mxu0
    %v2926 = vadd.f32 0.0, %v2925
    %2927 = vdwg.mxu0
    %2928 = vmatpush.msra.mxu0 %v2905
    %2929 = vmatpush.msra.mxu0 %v2901
    %2930 = vmatpush.msra.mxu0 %v2897
    %2931 = vmatpush.msra.mxu0 %v2893
    %2932 = vmatpush.msra.mxu0 %v2889
    %2933 = vmatpush.msra.mxu0 %v2885
    %2934 = vmatpush.msra.mxu0 %v2881
    %2935 = vmatpush.msra.mxu0 %v2877
    %2936 = vmatpush.msra.mxu0 %v2873
    %2937 = vmatpush.msra.mxu0 %v2869
    %2938 = vmatpush.msra.mxu0 %v2865
    %2939 = vmatpush.msra.mxu0 %v2861
    %2940 = vmatpush.msra.mxu0 %v2857
    %2941 = vmatpush.msra.mxu0 %v2853
    %2942 = vmatpush.msra.mxu0 %v2849
    %2943 = vmatpush.msra.mxu0 %v2845
    %2944 = vmatmul.f32.gmra.mxu0 %v2843
    %v2945 = vpop.f32.mrf.mxu0
    %v2946 = vadd.f32 0.0, %v2945
    %2947 = vdwg.mxu0
    %2948 = vmatpush.msra.mxu0 %v2906
    %2949 = vmatpush.msra.mxu0 %v2902
    %2950 = vmatpush.msra.mxu0 %v2898
    %2951 = vmatpush.msra.mxu0 %v2894
    %2952 = vmatpush.msra.mxu0 %v2890
    %2953 = vmatpush.msra.mxu0 %v2886
    %2954 = vmatpush.msra.mxu0 %v2882
    %2955 = vmatpush.msra.mxu0 %v2878
    %2956 = vmatpush.msra.mxu0 %v2874
    %2957 = vmatpush.msra.mxu0 %v2870
    %2958 = vmatpush.msra.mxu0 %v2866
    %2959 = vmatpush.msra.mxu0 %v2862
    %2960 = vmatpush.msra.mxu0 %v2858
    %2961 = vmatpush.msra.mxu0 %v2854
    %2962 = vmatpush.msra.mxu0 %v2850
    %2963 = vmatpush.msra.mxu0 %v2846
    %2964 = vmatmul.f32.gmra.mxu0 %v2843
    %v2965 = vpop.f32.mrf.mxu0
    %v2966 = vadd.f32 0.0, %v2965
    %2967 = vdwg.mxu0
    %2968 = vmatpush.msra.mxu0 %v2907
    %2969 = vmatpush.msra.mxu0 %v2903
    %2970 = vmatpush.msra.mxu0 %v2899
    %2971 = vmatpush.msra.mxu0 %v2895
    %2972 = vmatpush.msra.mxu0 %v2891
    %2973 = vmatpush.msra.mxu0 %v2887
    %2974 = vmatpush.msra.mxu0 %v2883
    %2975 = vmatpush.msra.mxu0 %v2879
    %2976 = vmatpush.msra.mxu0 %v2875
    %2977 = vmatpush.msra.mxu0 %v2871
    %2978 = vmatpush.msra.mxu0 %v2867
    %2979 = vmatpush.msra.mxu0 %v2863
    %2980 = vmatpush.msra.mxu0 %v2859
    %2981 = vmatpush.msra.mxu0 %v2855
    %2982 = vmatpush.msra.mxu0 %v2851
    %2983 = vmatpush.msra.mxu0 %v2847
    %2984 = vmatmul.f32.gmra.mxu0 %v2843
    %v2985 = vpop.f32.mrf.mxu0
    %v2986 = vadd.f32 0.0, %v2985
    %2987 = vdwg.mxu0
    %v2988 = vadd.f32 %v2839, %v2926
    %v2989 = vadd.f32 %v2840, %v2946
    %v2990 = vadd.f32 %v2841, %v2966
    %v2991 = vadd.f32 %v2842, %v2986
    %v2992 = vxor.u32 %v2988, 2147483648
    %v2993 = vmul.f32 %v2992, 1.442695
    %v2994 = vpow.pop %v2993
    %v2995 = vadd.f32 %v2994, 1.0
    %v2996 = vrcp.pop %v2995
    %v2997 = vmul.f32 %v2995, %v2996
    %v2998 = vsub.f32 1.0, %v2997
    %v2999 = vmul.f32 %v2996, %v2998
    %v3000 = vadd.f32 %v2996, %v2999
    %vm3001 = vweird.f32 %v2995
    %vm3002 = vweird.f32 %v2996
    %vm3003 = vmor %vm3001, %vm3002
    %v3004 = vsel %vm3003, %v2996, %v3000
    %v3005 = vand.u32 2147483647, %v2995
    %vm3006 = vcmp.eq.f32.partialorder %v3005, 8.507059e+37
    %v3007 = vand.u32 %v2995, 2147483648
    %v3008 = vor.u32 1.1754944e-38, %v3007
    %v3009 = vsel %vm3006, %v3008, %v3004
    %v3010 = vmul.f32 1.0, %v3009
    %v3011 = vxor.u32 %v2989, 2147483648
    %v3012 = vmul.f32 %v3011, 1.442695
    %v3013 = vpow.pop %v3012
    %v3014 = vadd.f32 %v3013, 1.0
    %v3015 = vrcp.pop %v3014
    %v3016 = vmul.f32 %v3014, %v3015
    %v3017 = vsub.f32 1.0, %v3016
    %v3018 = vmul.f32 %v3015, %v3017
    %v3019 = vadd.f32 %v3015, %v3018
    %vm3020 = vweird.f32 %v3014
    %vm3021 = vweird.f32 %v3015
    %vm3022 = vmor %vm3020, %vm3021
    %v3023 = vsel %vm3022, %v3015, %v3019
    %v3024 = vand.u32 2147483647, %v3014
    %vm3025 = vcmp.eq.f32.partialorder %v3024, 8.507059e+37
    %v3026 = vand.u32 %v3014, 2147483648
    %v3027 = vor.u32 1.1754944e-38, %v3026
    %v3028 = vsel %vm3025, %v3027, %v3023
    %v3029 = vmul.f32 1.0, %v3028
    %v3030 = vtanh.pop %v2990
    %v3031 = vxor.u32 %v2991, 2147483648
    %v3032 = vmul.f32 %v3031, 1.442695
    %v3033 = vpow.pop %v3032
    %v3034 = vadd.f32 %v3033, 1.0
    %v3035 = vrcp.pop %v3034
    %v3036 = vmul.f32 %v3034, %v3035
    %v3037 = vsub.f32 1.0, %v3036
    %v3038 = vmul.f32 %v3035, %v3037
    %v3039 = vadd.f32 %v3035, %v3038
    %vm3040 = vweird.f32 %v3034
    %vm3041 = vweird.f32 %v3035
    %vm3042 = vmor %vm3040, %vm3041
    %v3043 = vsel %vm3042, %v3035, %v3039
    %v3044 = vand.u32 2147483647, %v3034
    %vm3045 = vcmp.eq.f32.partialorder %v3044, 8.507059e+37
    %v3046 = vand.u32 %v3034, 2147483648
    %v3047 = vor.u32 1.1754944e-38, %v3046
    %v3048 = vsel %vm3045, %v3047, %v3043
    %v3049 = vmul.f32 1.0, %v3048
    %v3050 = vld [vmem:[#allocation5] sm:$0xff]
    %v3051 = vmul.f32 %v3029, %v3050
    %v3052 = vmul.f32 %v3010, %v3030
    %v3053 = vadd.f32 %v3051, %v3052
    %v3054 = vtanh.pop %v3053
    %v3055 = vmul.f32 %v3049, %v3054
    %3056 = vst [vmem:[#allocation5] sm:$0xff] %v3053
    %3057 = vst [vmem:[#allocation4] sm:$0xff] %v3055
    %3058 = vst [vmem:[%s997] sm:$0xff] %v3055
    %v3059 = vld [vmem:[%s1001] sm:$0xff]
    %v3060 = vld [vmem:[%s1001 + $0x8] sm:$0xff]
    %v3061 = vld [vmem:[%s1001 + $0x10] sm:$0xff]
    %v3062 = vld [vmem:[%s1001 + $0x18] sm:$0xff]
    %v3063 = vld [vmem:[#allocation4] sm:$0xff]
    %v3064 = vld [vmem:[#allocation10] sm:$0xff]
    %v3065 = vld [vmem:[#allocation10 + $0x8] sm:$0xff]
    %v3066 = vld [vmem:[#allocation10 + $0x10] sm:$0xff]
    %v3067 = vld [vmem:[#allocation10 + $0x18] sm:$0xff]
    %v3068 = vld [vmem:[#allocation10 + $0x20] sm:$0xff]
    %v3069 = vld [vmem:[#allocation10 + $0x28] sm:$0xff]
    %v3070 = vld [vmem:[#allocation10 + $0x30] sm:$0xff]
    %v3071 = vld [vmem:[#allocation10 + $0x38] sm:$0xff]
    %v3072 = vld [vmem:[#allocation10 + $0x40] sm:$0xff]
    %v3073 = vld [vmem:[#allocation10 + $0x48] sm:$0xff]
    %v3074 = vld [vmem:[#allocation10 + $0x50] sm:$0xff]
    %v3075 = vld [vmem:[#allocation10 + $0x58] sm:$0xff]
    %v3076 = vld [vmem:[#allocation10 + $0x60] sm:$0xff]
    %v3077 = vld [vmem:[#allocation10 + $0x68] sm:$0xff]
    %v3078 = vld [vmem:[#allocation10 + $0x70] sm:$0xff]
    %v3079 = vld [vmem:[#allocation10 + $0x78] sm:$0xff]
    %v3080 = vld [vmem:[#allocation10 + $0x80] sm:$0xff]
    %v3081 = vld [vmem:[#allocation10 + $0x88] sm:$0xff]
    %v3082 = vld [vmem:[#allocation10 + $0x90] sm:$0xff]
    %v3083 = vld [vmem:[#allocation10 + $0x98] sm:$0xff]
    %v3084 = vld [vmem:[#allocation10 + $0xa0] sm:$0xff]
    %v3085 = vld [vmem:[#allocation10 + $0xa8] sm:$0xff]
    %v3086 = vld [vmem:[#allocation10 + $0xb0] sm:$0xff]
    %v3087 = vld [vmem:[#allocation10 + $0xb8] sm:$0xff]
    %v3088 = vld [vmem:[#allocation10 + $0xc0] sm:$0xff]
    %v3089 = vld [vmem:[#allocation10 + $0xc8] sm:$0xff]
    %v3090 = vld [vmem:[#allocation10 + $0xd0] sm:$0xff]
    %v3091 = vld [vmem:[#allocation10 + $0xd8] sm:$0xff]
    %v3092 = vld [vmem:[#allocation10 + $0xe0] sm:$0xff]
    %v3093 = vld [vmem:[#allocation10 + $0xe8] sm:$0xff]
    %v3094 = vld [vmem:[#allocation10 + $0xf0] sm:$0xff]
    %v3095 = vld [vmem:[#allocation10 + $0xf8] sm:$0xff]
    %v3096 = vld [vmem:[#allocation10 + $0x100] sm:$0xff]
    %v3097 = vld [vmem:[#allocation10 + $0x108] sm:$0xff]
    %v3098 = vld [vmem:[#allocation10 + $0x110] sm:$0xff]
    %v3099 = vld [vmem:[#allocation10 + $0x118] sm:$0xff]
    %v3100 = vld [vmem:[#allocation10 + $0x120] sm:$0xff]
    %v3101 = vld [vmem:[#allocation10 + $0x128] sm:$0xff]
    %v3102 = vld [vmem:[#allocation10 + $0x130] sm:$0xff]
    %v3103 = vld [vmem:[#allocation10 + $0x138] sm:$0xff]
    %v3104 = vld [vmem:[#allocation10 + $0x140] sm:$0xff]
    %v3105 = vld [vmem:[#allocation10 + $0x148] sm:$0xff]
    %v3106 = vld [vmem:[#allocation10 + $0x150] sm:$0xff]
    %v3107 = vld [vmem:[#allocation10 + $0x158] sm:$0xff]
    %v3108 = vld [vmem:[#allocation10 + $0x160] sm:$0xff]
    %v3109 = vld [vmem:[#allocation10 + $0x168] sm:$0xff]
    %v3110 = vld [vmem:[#allocation10 + $0x170] sm:$0xff]
    %v3111 = vld [vmem:[#allocation10 + $0x178] sm:$0xff]
    %v3112 = vld [vmem:[#allocation10 + $0x180] sm:$0xff]
    %v3113 = vld [vmem:[#allocation10 + $0x188] sm:$0xff]
    %v3114 = vld [vmem:[#allocation10 + $0x190] sm:$0xff]
    %v3115 = vld [vmem:[#allocation10 + $0x198] sm:$0xff]
    %v3116 = vld [vmem:[#allocation10 + $0x1a0] sm:$0xff]
    %v3117 = vld [vmem:[#allocation10 + $0x1a8] sm:$0xff]
    %v3118 = vld [vmem:[#allocation10 + $0x1b0] sm:$0xff]
    %v3119 = vld [vmem:[#allocation10 + $0x1b8] sm:$0xff]
    %v3120 = vld [vmem:[#allocation10 + $0x1c0] sm:$0xff]
    %v3121 = vld [vmem:[#allocation10 + $0x1c8] sm:$0xff]
    %v3122 = vld [vmem:[#allocation10 + $0x1d0] sm:$0xff]
    %v3123 = vld [vmem:[#allocation10 + $0x1d8] sm:$0xff]
    %v3124 = vld [vmem:[#allocation10 + $0x1e0] sm:$0xff]
    %v3125 = vld [vmem:[#allocation10 + $0x1e8] sm:$0xff]
    %v3126 = vld [vmem:[#allocation10 + $0x1f0] sm:$0xff]
    %v3127 = vld [vmem:[#allocation10 + $0x1f8] sm:$0xff]
    %3128 = vmatpush.msra.mxu0 %v3124
    %3129 = vmatpush.msra.mxu0 %v3120
    %3130 = vmatpush.msra.mxu0 %v3116
    %3131 = vmatpush.msra.mxu0 %v3112
    %3132 = vmatpush.msra.mxu0 %v3108
    %3133 = vmatpush.msra.mxu0 %v3104
    %3134 = vmatpush.msra.mxu0 %v3100
    %3135 = vmatpush.msra.mxu0 %v3096
    %3136 = vmatpush.msra.mxu0 %v3092
    %3137 = vmatpush.msra.mxu0 %v3088
    %3138 = vmatpush.msra.mxu0 %v3084
    %3139 = vmatpush.msra.mxu0 %v3080
    %3140 = vmatpush.msra.mxu0 %v3076
    %3141 = vmatpush.msra.mxu0 %v3072
    %3142 = vmatpush.msra.mxu0 %v3068
    %3143 = vmatpush.msra.mxu0 %v3064
    %3144 = vmatmul.f32.gmra.mxu0 %v3063
    %v3145 = vpop.f32.mrf.mxu0
    %v3146 = vadd.f32 0.0, %v3145
    %3147 = vdwg.mxu0
    %3148 = vmatpush.msra.mxu0 %v3125
    %3149 = vmatpush.msra.mxu0 %v3121
    %3150 = vmatpush.msra.mxu0 %v3117
    %3151 = vmatpush.msra.mxu0 %v3113
    %3152 = vmatpush.msra.mxu0 %v3109
    %3153 = vmatpush.msra.mxu0 %v3105
    %3154 = vmatpush.msra.mxu0 %v3101
    %3155 = vmatpush.msra.mxu0 %v3097
    %3156 = vmatpush.msra.mxu0 %v3093
    %3157 = vmatpush.msra.mxu0 %v3089
    %3158 = vmatpush.msra.mxu0 %v3085
    %3159 = vmatpush.msra.mxu0 %v3081
    %3160 = vmatpush.msra.mxu0 %v3077
    %3161 = vmatpush.msra.mxu0 %v3073
    %3162 = vmatpush.msra.mxu0 %v3069
    %3163 = vmatpush.msra.mxu0 %v3065
    %3164 = vmatmul.f32.gmra.mxu0 %v3063
    %v3165 = vpop.f32.mrf.mxu0
    %v3166 = vadd.f32 0.0, %v3165
    %3167 = vdwg.mxu0
    %3168 = vmatpush.msra.mxu0 %v3126
    %3169 = vmatpush.msra.mxu0 %v3122
    %3170 = vmatpush.msra.mxu0 %v3118
    %3171 = vmatpush.msra.mxu0 %v3114
    %3172 = vmatpush.msra.mxu0 %v3110
    %3173 = vmatpush.msra.mxu0 %v3106
    %3174 = vmatpush.msra.mxu0 %v3102
    %3175 = vmatpush.msra.mxu0 %v3098
    %3176 = vmatpush.msra.mxu0 %v3094
    %3177 = vmatpush.msra.mxu0 %v3090
    %3178 = vmatpush.msra.mxu0 %v3086
    %3179 = vmatpush.msra.mxu0 %v3082
    %3180 = vmatpush.msra.mxu0 %v3078
    %3181 = vmatpush.msra.mxu0 %v3074
    %3182 = vmatpush.msra.mxu0 %v3070
    %3183 = vmatpush.msra.mxu0 %v3066
    %3184 = vmatmul.f32.gmra.mxu0 %v3063
    %v3185 = vpop.f32.mrf.mxu0
    %v3186 = vadd.f32 0.0, %v3185
    %3187 = vdwg.mxu0
    %3188 = vmatpush.msra.mxu0 %v3127
    %3189 = vmatpush.msra.mxu0 %v3123
    %3190 = vmatpush.msra.mxu0 %v3119
    %3191 = vmatpush.msra.mxu0 %v3115
    %3192 = vmatpush.msra.mxu0 %v3111
    %3193 = vmatpush.msra.mxu0 %v3107
    %3194 = vmatpush.msra.mxu0 %v3103
    %3195 = vmatpush.msra.mxu0 %v3099
    %3196 = vmatpush.msra.mxu0 %v3095
    %3197 = vmatpush.msra.mxu0 %v3091
    %3198 = vmatpush.msra.mxu0 %v3087
    %3199 = vmatpush.msra.mxu0 %v3083
    %3200 = vmatpush.msra.mxu0 %v3079
    %3201 = vmatpush.msra.mxu0 %v3075
    %3202 = vmatpush.msra.mxu0 %v3071
    %3203 = vmatpush.msra.mxu0 %v3067
    %3204 = vmatmul.f32.gmra.mxu0 %v3063
    %v3205 = vpop.f32.mrf.mxu0
    %v3206 = vadd.f32 0.0, %v3205
    %3207 = vdwg.mxu0
    %v3208 = vadd.f32 %v3059, %v3146
    %v3209 = vadd.f32 %v3060, %v3166
    %v3210 = vadd.f32 %v3061, %v3186
    %v3211 = vadd.f32 %v3062, %v3206
    %v3212 = vxor.u32 %v3208, 2147483648
    %v3213 = vmul.f32 %v3212, 1.442695
    %v3214 = vpow.pop %v3213
    %v3215 = vadd.f32 %v3214, 1.0
    %v3216 = vrcp.pop %v3215
    %v3217 = vmul.f32 %v3215, %v3216
    %v3218 = vsub.f32 1.0, %v3217
    %v3219 = vmul.f32 %v3216, %v3218
    %v3220 = vadd.f32 %v3216, %v3219
    %vm3221 = vweird.f32 %v3215
    %vm3222 = vweird.f32 %v3216
    %vm3223 = vmor %vm3221, %vm3222
    %v3224 = vsel %vm3223, %v3216, %v3220
    %v3225 = vand.u32 2147483647, %v3215
    %vm3226 = vcmp.eq.f32.partialorder %v3225, 8.507059e+37
    %v3227 = vand.u32 %v3215, 2147483648
    %v3228 = vor.u32 1.1754944e-38, %v3227
    %v3229 = vsel %vm3226, %v3228, %v3224
    %v3230 = vmul.f32 1.0, %v3229
    %v3231 = vxor.u32 %v3209, 2147483648
    %v3232 = vmul.f32 %v3231, 1.442695
    %v3233 = vpow.pop %v3232
    %v3234 = vadd.f32 %v3233, 1.0
    %v3235 = vrcp.pop %v3234
    %v3236 = vmul.f32 %v3234, %v3235
    %v3237 = vsub.f32 1.0, %v3236
    %v3238 = vmul.f32 %v3235, %v3237
    %v3239 = vadd.f32 %v3235, %v3238
    %vm3240 = vweird.f32 %v3234
    %vm3241 = vweird.f32 %v3235
    %vm3242 = vmor %vm3240, %vm3241
    %v3243 = vsel %vm3242, %v3235, %v3239
    %v3244 = vand.u32 2147483647, %v3234
    %vm3245 = vcmp.eq.f32.partialorder %v3244, 8.507059e+37
    %v3246 = vand.u32 %v3234, 2147483648
    %v3247 = vor.u32 1.1754944e-38, %v3246
    %v3248 = vsel %vm3245, %v3247, %v3243
    %v3249 = vmul.f32 1.0, %v3248
    %v3250 = vtanh.pop %v3210
    %v3251 = vxor.u32 %v3211, 2147483648
    %v3252 = vmul.f32 %v3251, 1.442695
    %v3253 = vpow.pop %v3252
    %v3254 = vadd.f32 %v3253, 1.0
    %v3255 = vrcp.pop %v3254
    %v3256 = vmul.f32 %v3254, %v3255
    %v3257 = vsub.f32 1.0, %v3256
    %v3258 = vmul.f32 %v3255, %v3257
    %v3259 = vadd.f32 %v3255, %v3258
    %vm3260 = vweird.f32 %v3254
    %vm3261 = vweird.f32 %v3255
    %vm3262 = vmor %vm3260, %vm3261
    %v3263 = vsel %vm3262, %v3255, %v3259
    %v3264 = vand.u32 2147483647, %v3254
    %vm3265 = vcmp.eq.f32.partialorder %v3264, 8.507059e+37
    %v3266 = vand.u32 %v3254, 2147483648
    %v3267 = vor.u32 1.1754944e-38, %v3266
    %v3268 = vsel %vm3265, %v3267, %v3263
    %v3269 = vmul.f32 1.0, %v3268
    %v3270 = vld [vmem:[#allocation5] sm:$0xff]
    %v3271 = vmul.f32 %v3249, %v3270
    %v3272 = vmul.f32 %v3230, %v3250
    %v3273 = vadd.f32 %v3271, %v3272
    %v3274 = vtanh.pop %v3273
    %v3275 = vmul.f32 %v3269, %v3274
    %3276 = vst [vmem:[#allocation5] sm:$0xff] %v3273
    %3277 = vst [vmem:[#allocation4] sm:$0xff] %v3275
    %3278 = vst [vmem:[%s1221] sm:$0xff] %v3275
    %v3279 = vld [vmem:[%s1225] sm:$0xff]
    %v3280 = vld [vmem:[%s1225 + $0x8] sm:$0xff]
    %v3281 = vld [vmem:[%s1225 + $0x10] sm:$0xff]
    %v3282 = vld [vmem:[%s1225 + $0x18] sm:$0xff]
    %v3283 = vld [vmem:[#allocation4] sm:$0xff]
    %v3284 = vld [vmem:[#allocation10] sm:$0xff]
    %v3285 = vld [vmem:[#allocation10 + $0x8] sm:$0xff]
    %v3286 = vld [vmem:[#allocation10 + $0x10] sm:$0xff]
    %v3287 = vld [vmem:[#allocation10 + $0x18] sm:$0xff]
    %v3288 = vld [vmem:[#allocation10 + $0x20] sm:$0xff]
    %v3289 = vld [vmem:[#allocation10 + $0x28] sm:$0xff]
    %v3290 = vld [vmem:[#allocation10 + $0x30] sm:$0xff]
    %v3291 = vld [vmem:[#allocation10 + $0x38] sm:$0xff]
    %v3292 = vld [vmem:[#allocation10 + $0x40] sm:$0xff]
    %v3293 = vld [vmem:[#allocation10 + $0x48] sm:$0xff]
    %v3294 = vld [vmem:[#allocation10 + $0x50] sm:$0xff]
    %v3295 = vld [vmem:[#allocation10 + $0x58] sm:$0xff]
    %v3296 = vld [vmem:[#allocation10 + $0x60] sm:$0xff]
    %v3297 = vld [vmem:[#allocation10 + $0x68] sm:$0xff]
    %v3298 = vld [vmem:[#allocation10 + $0x70] sm:$0xff]
    %v3299 = vld [vmem:[#allocation10 + $0x78] sm:$0xff]
    %v3300 = vld [vmem:[#allocation10 + $0x80] sm:$0xff]
    %v3301 = vld [vmem:[#allocation10 + $0x88] sm:$0xff]
    %v3302 = vld [vmem:[#allocation10 + $0x90] sm:$0xff]
    %v3303 = vld [vmem:[#allocation10 + $0x98] sm:$0xff]
    %v3304 = vld [vmem:[#allocation10 + $0xa0] sm:$0xff]
    %v3305 = vld [vmem:[#allocation10 + $0xa8] sm:$0xff]
    %v3306 = vld [vmem:[#allocation10 + $0xb0] sm:$0xff]
    %v3307 = vld [vmem:[#allocation10 + $0xb8] sm:$0xff]
    %v3308 = vld [vmem:[#allocation10 + $0xc0] sm:$0xff]
    %v3309 = vld [vmem:[#allocation10 + $0xc8] sm:$0xff]
    %v3310 = vld [vmem:[#allocation10 + $0xd0] sm:$0xff]
    %v3311 = vld [vmem:[#allocation10 + $0xd8] sm:$0xff]
    %v3312 = vld [vmem:[#allocation10 + $0xe0] sm:$0xff]
    %v3313 = vld [vmem:[#allocation10 + $0xe8] sm:$0xff]
    %v3314 = vld [vmem:[#allocation10 + $0xf0] sm:$0xff]
    %v3315 = vld [vmem:[#allocation10 + $0xf8] sm:$0xff]
    %v3316 = vld [vmem:[#allocation10 + $0x100] sm:$0xff]
    %v3317 = vld [vmem:[#allocation10 + $0x108] sm:$0xff]
    %v3318 = vld [vmem:[#allocation10 + $0x110] sm:$0xff]
    %v3319 = vld [vmem:[#allocation10 + $0x118] sm:$0xff]
    %v3320 = vld [vmem:[#allocation10 + $0x120] sm:$0xff]
    %v3321 = vld [vmem:[#allocation10 + $0x128] sm:$0xff]
    %v3322 = vld [vmem:[#allocation10 + $0x130] sm:$0xff]
    %v3323 = vld [vmem:[#allocation10 + $0x138] sm:$0xff]
    %v3324 = vld [vmem:[#allocation10 + $0x140] sm:$0xff]
    %v3325 = vld [vmem:[#allocation10 + $0x148] sm:$0xff]
    %v3326 = vld [vmem:[#allocation10 + $0x150] sm:$0xff]
    %v3327 = vld [vmem:[#allocation10 + $0x158] sm:$0xff]
    %v3328 = vld [vmem:[#allocation10 + $0x160] sm:$0xff]
    %v3329 = vld [vmem:[#allocation10 + $0x168] sm:$0xff]
    %v3330 = vld [vmem:[#allocation10 + $0x170] sm:$0xff]
    %v3331 = vld [vmem:[#allocation10 + $0x178] sm:$0xff]
    %v3332 = vld [vmem:[#allocation10 + $0x180] sm:$0xff]
    %v3333 = vld [vmem:[#allocation10 + $0x188] sm:$0xff]
    %v3334 = vld [vmem:[#allocation10 + $0x190] sm:$0xff]
    %v3335 = vld [vmem:[#allocation10 + $0x198] sm:$0xff]
    %v3336 = vld [vmem:[#allocation10 + $0x1a0] sm:$0xff]
    %v3337 = vld [vmem:[#allocation10 + $0x1a8] sm:$0xff]
    %v3338 = vld [vmem:[#allocation10 + $0x1b0] sm:$0xff]
    %v3339 = vld [vmem:[#allocation10 + $0x1b8] sm:$0xff]
    %v3340 = vld [vmem:[#allocation10 + $0x1c0] sm:$0xff]
    %v3341 = vld [vmem:[#allocation10 + $0x1c8] sm:$0xff]
    %v3342 = vld [vmem:[#allocation10 + $0x1d0] sm:$0xff]
    %v3343 = vld [vmem:[#allocation10 + $0x1d8] sm:$0xff]
    %v3344 = vld [vmem:[#allocation10 + $0x1e0] sm:$0xff]
    %v3345 = vld [vmem:[#allocation10 + $0x1e8] sm:$0xff]
    %v3346 = vld [vmem:[#allocation10 + $0x1f0] sm:$0xff]
    %v3347 = vld [vmem:[#allocation10 + $0x1f8] sm:$0xff]
    %3348 = vmatpush.msra.mxu0 %v3344
    %3349 = vmatpush.msra.mxu0 %v3340
    %3350 = vmatpush.msra.mxu0 %v3336
    %3351 = vmatpush.msra.mxu0 %v3332
    %3352 = vmatpush.msra.mxu0 %v3328
    %3353 = vmatpush.msra.mxu0 %v3324
    %3354 = vmatpush.msra.mxu0 %v3320
    %3355 = vmatpush.msra.mxu0 %v3316
    %3356 = vmatpush.msra.mxu0 %v3312
    %3357 = vmatpush.msra.mxu0 %v3308
    %3358 = vmatpush.msra.mxu0 %v3304
    %3359 = vmatpush.msra.mxu0 %v3300
    %3360 = vmatpush.msra.mxu0 %v3296
    %3361 = vmatpush.msra.mxu0 %v3292
    %3362 = vmatpush.msra.mxu0 %v3288
    %3363 = vmatpush.msra.mxu0 %v3284
    %3364 = vmatmul.f32.gmra.mxu0 %v3283
    %v3365 = vpop.f32.mrf.mxu0
    %v3366 = vadd.f32 0.0, %v3365
    %3367 = vdwg.mxu0
    %3368 = vmatpush.msra.mxu0 %v3345
    %3369 = vmatpush.msra.mxu0 %v3341
    %3370 = vmatpush.msra.mxu0 %v3337
    %3371 = vmatpush.msra.mxu0 %v3333
    %3372 = vmatpush.msra.mxu0 %v3329
    %3373 = vmatpush.msra.mxu0 %v3325
    %3374 = vmatpush.msra.mxu0 %v3321
    %3375 = vmatpush.msra.mxu0 %v3317
    %3376 = vmatpush.msra.mxu0 %v3313
    %3377 = vmatpush.msra.mxu0 %v3309
    %3378 = vmatpush.msra.mxu0 %v3305
    %3379 = vmatpush.msra.mxu0 %v3301
    %3380 = vmatpush.msra.mxu0 %v3297
    %3381 = vmatpush.msra.mxu0 %v3293
    %3382 = vmatpush.msra.mxu0 %v3289
    %3383 = vmatpush.msra.mxu0 %v3285
    %3384 = vmatmul.f32.gmra.mxu0 %v3283
    %v3385 = vpop.f32.mrf.mxu0
    %v3386 = vadd.f32 0.0, %v3385
    %3387 = vdwg.mxu0
    %3388 = vmatpush.msra.mxu0 %v3346
    %3389 = vmatpush.msra.mxu0 %v3342
    %3390 = vmatpush.msra.mxu0 %v3338
    %3391 = vmatpush.msra.mxu0 %v3334
    %3392 = vmatpush.msra.mxu0 %v3330
    %3393 = vmatpush.msra.mxu0 %v3326
    %3394 = vmatpush.msra.mxu0 %v3322
    %3395 = vmatpush.msra.mxu0 %v3318
    %3396 = vmatpush.msra.mxu0 %v3314
    %3397 = vmatpush.msra.mxu0 %v3310
    %3398 = vmatpush.msra.mxu0 %v3306
    %3399 = vmatpush.msra.mxu0 %v3302
    %3400 = vmatpush.msra.mxu0 %v3298
    %3401 = vmatpush.msra.mxu0 %v3294
    %3402 = vmatpush.msra.mxu0 %v3290
    %3403 = vmatpush.msra.mxu0 %v3286
    %3404 = vmatmul.f32.gmra.mxu0 %v3283
    %v3405 = vpop.f32.mrf.mxu0
    %v3406 = vadd.f32 0.0, %v3405
    %3407 = vdwg.mxu0
    %3408 = vmatpush.msra.mxu0 %v3347
    %3409 = vmatpush.msra.mxu0 %v3343
    %3410 = vmatpush.msra.mxu0 %v3339
    %3411 = vmatpush.msra.mxu0 %v3335
    %3412 = vmatpush.msra.mxu0 %v3331
    %3413 = vmatpush.msra.mxu0 %v3327
    %3414 = vmatpush.msra.mxu0 %v3323
    %3415 = vmatpush.msra.mxu0 %v3319
    %3416 = vmatpush.msra.mxu0 %v3315
    %3417 = vmatpush.msra.mxu0 %v3311
    %3418 = vmatpush.msra.mxu0 %v3307
    %3419 = vmatpush.msra.mxu0 %v3303
    %3420 = vmatpush.msra.mxu0 %v3299
    %3421 = vmatpush.msra.mxu0 %v3295
    %3422 = vmatpush.msra.mxu0 %v3291
    %3423 = vmatpush.msra.mxu0 %v3287
    %3424 = vmatmul.f32.gmra.mxu0 %v3283
    %v3425 = vpop.f32.mrf.mxu0
    %v3426 = vadd.f32 0.0, %v3425
    %3427 = vdwg.mxu0
    %v3428 = vadd.f32 %v3279, %v3366
    %v3429 = vadd.f32 %v3280, %v3386
    %v3430 = vadd.f32 %v3281, %v3406
    %v3431 = vadd.f32 %v3282, %v3426
    %v3432 = vxor.u32 %v3428, 2147483648
    %v3433 = vmul.f32 %v3432, 1.442695
    %v3434 = vpow.pop %v3433
    %v3435 = vadd.f32 %v3434, 1.0
    %v3436 = vrcp.pop %v3435
    %v3437 = vmul.f32 %v3435, %v3436
    %v3438 = vsub.f32 1.0, %v3437
    %v3439 = vmul.f32 %v3436, %v3438
    %v3440 = vadd.f32 %v3436, %v3439
    %vm3441 = vweird.f32 %v3435
    %vm3442 = vweird.f32 %v3436
    %vm3443 = vmor %vm3441, %vm3442
    %v3444 = vsel %vm3443, %v3436, %v3440
    %v3445 = vand.u32 2147483647, %v3435
    %vm3446 = vcmp.eq.f32.partialorder %v3445, 8.507059e+37
    %v3447 = vand.u32 %v3435, 2147483648
    %v3448 = vor.u32 1.1754944e-38, %v3447
    %v3449 = vsel %vm3446, %v3448, %v3444
    %v3450 = vmul.f32 1.0, %v3449
    %v3451 = vxor.u32 %v3429, 2147483648
    %v3452 = vmul.f32 %v3451, 1.442695
    %v3453 = vpow.pop %v3452
    %v3454 = vadd.f32 %v3453, 1.0
    %v3455 = vrcp.pop %v3454
    %v3456 = vmul.f32 %v3454, %v3455
    %v3457 = vsub.f32 1.0, %v3456
    %v3458 = vmul.f32 %v3455, %v3457
    %v3459 = vadd.f32 %v3455, %v3458
    %vm3460 = vweird.f32 %v3454
    %vm3461 = vweird.f32 %v3455
    %vm3462 = vmor %vm3460, %vm3461
    %v3463 = vsel %vm3462, %v3455, %v3459
    %v3464 = vand.u32 2147483647, %v3454
    %vm3465 = vcmp.eq.f32.partialorder %v3464, 8.507059e+37
    %v3466 = vand.u32 %v3454, 2147483648
    %v3467 = vor.u32 1.1754944e-38, %v3466
    %v3468 = vsel %vm3465, %v3467, %v3463
    %v3469 = vmul.f32 1.0, %v3468
    %v3470 = vtanh.pop %v3430
    %v3471 = vxor.u32 %v3431, 2147483648
    %v3472 = vmul.f32 %v3471, 1.442695
    %v3473 = vpow.pop %v3472
    %v3474 = vadd.f32 %v3473, 1.0
    %v3475 = vrcp.pop %v3474
    %v3476 = vmul.f32 %v3474, %v3475
    %v3477 = vsub.f32 1.0, %v3476
    %v3478 = vmul.f32 %v3475, %v3477
    %v3479 = vadd.f32 %v3475, %v3478
    %vm3480 = vweird.f32 %v3474
    %vm3481 = vweird.f32 %v3475
    %vm3482 = vmor %vm3480, %vm3481
    %v3483 = vsel %vm3482, %v3475, %v3479
    %v3484 = vand.u32 2147483647, %v3474
    %vm3485 = vcmp.eq.f32.partialorder %v3484, 8.507059e+37
    %v3486 = vand.u32 %v3474, 2147483648
    %v3487 = vor.u32 1.1754944e-38, %v3486
    %v3488 = vsel %vm3485, %v3487, %v3483
    %v3489 = vmul.f32 1.0, %v3488
    %v3490 = vld [vmem:[#allocation5] sm:$0xff]
    %v3491 = vmul.f32 %v3469, %v3490
    %v3492 = vmul.f32 %v3450, %v3470
    %v3493 = vadd.f32 %v3491, %v3492
    %v3494 = vtanh.pop %v3493
    %v3495 = vmul.f32 %v3489, %v3494
    %3496 = vst [vmem:[#allocation5] sm:$0xff] %v3493
    %3497 = vst [vmem:[#allocation4] sm:$0xff] %v3495
    %3498 = vst [vmem:[%s1445] sm:$0xff] %v3495
    %v3499 = vld [vmem:[%s1449] sm:$0xff]
    %v3500 = vld [vmem:[%s1449 + $0x8] sm:$0xff]
    %v3501 = vld [vmem:[%s1449 + $0x10] sm:$0xff]
    %v3502 = vld [vmem:[%s1449 + $0x18] sm:$0xff]
    %v3503 = vld [vmem:[#allocation4] sm:$0xff]
    %v3504 = vld [vmem:[#allocation10] sm:$0xff]
    %v3505 = vld [vmem:[#allocation10 + $0x8] sm:$0xff]
    %v3506 = vld [vmem:[#allocation10 + $0x10] sm:$0xff]
    %v3507 = vld [vmem:[#allocation10 + $0x18] sm:$0xff]
    %v3508 = vld [vmem:[#allocation10 + $0x20] sm:$0xff]
    %v3509 = vld [vmem:[#allocation10 + $0x28] sm:$0xff]
    %v3510 = vld [vmem:[#allocation10 + $0x30] sm:$0xff]
    %v3511 = vld [vmem:[#allocation10 + $0x38] sm:$0xff]
    %v3512 = vld [vmem:[#allocation10 + $0x40] sm:$0xff]
    %v3513 = vld [vmem:[#allocation10 + $0x48] sm:$0xff]
    %v3514 = vld [vmem:[#allocation10 + $0x50] sm:$0xff]
    %v3515 = vld [vmem:[#allocation10 + $0x58] sm:$0xff]
    %v3516 = vld [vmem:[#allocation10 + $0x60] sm:$0xff]
    %v3517 = vld [vmem:[#allocation10 + $0x68] sm:$0xff]
    %v3518 = vld [vmem:[#allocation10 + $0x70] sm:$0xff]
    %v3519 = vld [vmem:[#allocation10 + $0x78] sm:$0xff]
    %v3520 = vld [vmem:[#allocation10 + $0x80] sm:$0xff]
    %v3521 = vld [vmem:[#allocation10 + $0x88] sm:$0xff]
    %v3522 = vld [vmem:[#allocation10 + $0x90] sm:$0xff]
    %v3523 = vld [vmem:[#allocation10 + $0x98] sm:$0xff]
    %v3524 = vld [vmem:[#allocation10 + $0xa0] sm:$0xff]
    %v3525 = vld [vmem:[#allocation10 + $0xa8] sm:$0xff]
    %v3526 = vld [vmem:[#allocation10 + $0xb0] sm:$0xff]
    %v3527 = vld [vmem:[#allocation10 + $0xb8] sm:$0xff]
    %v3528 = vld [vmem:[#allocation10 + $0xc0] sm:$0xff]
    %v3529 = vld [vmem:[#allocation10 + $0xc8] sm:$0xff]
    %v3530 = vld [vmem:[#allocation10 + $0xd0] sm:$0xff]
    %v3531 = vld [vmem:[#allocation10 + $0xd8] sm:$0xff]
    %v3532 = vld [vmem:[#allocation10 + $0xe0] sm:$0xff]
    %v3533 = vld [vmem:[#allocation10 + $0xe8] sm:$0xff]
    %v3534 = vld [vmem:[#allocation10 + $0xf0] sm:$0xff]
    %v3535 = vld [vmem:[#allocation10 + $0xf8] sm:$0xff]
    %v3536 = vld [vmem:[#allocation10 + $0x100] sm:$0xff]
    %v3537 = vld [vmem:[#allocation10 + $0x108] sm:$0xff]
    %v3538 = vld [vmem:[#allocation10 + $0x110] sm:$0xff]
    %v3539 = vld [vmem:[#allocation10 + $0x118] sm:$0xff]
    %v3540 = vld [vmem:[#allocation10 + $0x120] sm:$0xff]
    %v3541 = vld [vmem:[#allocation10 + $0x128] sm:$0xff]
    %v3542 = vld [vmem:[#allocation10 + $0x130] sm:$0xff]
    %v3543 = vld [vmem:[#allocation10 + $0x138] sm:$0xff]
    %v3544 = vld [vmem:[#allocation10 + $0x140] sm:$0xff]
    %v3545 = vld [vmem:[#allocation10 + $0x148] sm:$0xff]
    %v3546 = vld [vmem:[#allocation10 + $0x150] sm:$0xff]
    %v3547 = vld [vmem:[#allocation10 + $0x158] sm:$0xff]
    %v3548 = vld [vmem:[#allocation10 + $0x160] sm:$0xff]
    %v3549 = vld [vmem:[#allocation10 + $0x168] sm:$0xff]
    %v3550 = vld [vmem:[#allocation10 + $0x170] sm:$0xff]
    %v3551 = vld [vmem:[#allocation10 + $0x178] sm:$0xff]
    %v3552 = vld [vmem:[#allocation10 + $0x180] sm:$0xff]
    %v3553 = vld [vmem:[#allocation10 + $0x188] sm:$0xff]
    %v3554 = vld [vmem:[#allocation10 + $0x190] sm:$0xff]
    %v3555 = vld [vmem:[#allocation10 + $0x198] sm:$0xff]
    %v3556 = vld [vmem:[#allocation10 + $0x1a0] sm:$0xff]
    %v3557 = vld [vmem:[#allocation10 + $0x1a8] sm:$0xff]
    %v3558 = vld [vmem:[#allocation10 + $0x1b0] sm:$0xff]
    %v3559 = vld [vmem:[#allocation10 + $0x1b8] sm:$0xff]
    %v3560 = vld [vmem:[#allocation10 + $0x1c0] sm:$0xff]
    %v3561 = vld [vmem:[#allocation10 + $0x1c8] sm:$0xff]
    %v3562 = vld [vmem:[#allocation10 + $0x1d0] sm:$0xff]
    %v3563 = vld [vmem:[#allocation10 + $0x1d8] sm:$0xff]
    %v3564 = vld [vmem:[#allocation10 + $0x1e0] sm:$0xff]
    %v3565 = vld [vmem:[#allocation10 + $0x1e8] sm:$0xff]
    %v3566 = vld [vmem:[#allocation10 + $0x1f0] sm:$0xff]
    %v3567 = vld [vmem:[#allocation10 + $0x1f8] sm:$0xff]
    %3568 = vmatpush.msra.mxu0 %v3564
    %3569 = vmatpush.msra.mxu0 %v3560
    %3570 = vmatpush.msra.mxu0 %v3556
    %3571 = vmatpush.msra.mxu0 %v3552
    %3572 = vmatpush.msra.mxu0 %v3548
    %3573 = vmatpush.msra.mxu0 %v3544
    %3574 = vmatpush.msra.mxu0 %v3540
    %3575 = vmatpush.msra.mxu0 %v3536
    %3576 = vmatpush.msra.mxu0 %v3532
    %3577 = vmatpush.msra.mxu0 %v3528
    %3578 = vmatpush.msra.mxu0 %v3524
    %3579 = vmatpush.msra.mxu0 %v3520
    %3580 = vmatpush.msra.mxu0 %v3516
    %3581 = vmatpush.msra.mxu0 %v3512
    %3582 = vmatpush.msra.mxu0 %v3508
    %3583 = vmatpush.msra.mxu0 %v3504
    %3584 = vmatmul.f32.gmra.mxu0 %v3503
    %v3585 = vpop.f32.mrf.mxu0
    %v3586 = vadd.f32 0.0, %v3585
    %3587 = vdwg.mxu0
    %3588 = vmatpush.msra.mxu0 %v3565
    %3589 = vmatpush.msra.mxu0 %v3561
    %3590 = vmatpush.msra.mxu0 %v3557
    %3591 = vmatpush.msra.mxu0 %v3553
    %3592 = vmatpush.msra.mxu0 %v3549
    %3593 = vmatpush.msra.mxu0 %v3545
    %3594 = vmatpush.msra.mxu0 %v3541
    %3595 = vmatpush.msra.mxu0 %v3537
    %3596 = vmatpush.msra.mxu0 %v3533
    %3597 = vmatpush.msra.mxu0 %v3529
    %3598 = vmatpush.msra.mxu0 %v3525
    %3599 = vmatpush.msra.mxu0 %v3521
    %3600 = vmatpush.msra.mxu0 %v3517
    %3601 = vmatpush.msra.mxu0 %v3513
    %3602 = vmatpush.msra.mxu0 %v3509
    %3603 = vmatpush.msra.mxu0 %v3505
    %3604 = vmatmul.f32.gmra.mxu0 %v3503
    %v3605 = vpop.f32.mrf.mxu0
    %v3606 = vadd.f32 0.0, %v3605
    %3607 = vdwg.mxu0
    %3608 = vmatpush.msra.mxu0 %v3566
    %3609 = vmatpush.msra.mxu0 %v3562
    %3610 = vmatpush.msra.mxu0 %v3558
    %3611 = vmatpush.msra.mxu0 %v3554
    %3612 = vmatpush.msra.mxu0 %v3550
    %3613 = vmatpush.msra.mxu0 %v3546
    %3614 = vmatpush.msra.mxu0 %v3542
    %3615 = vmatpush.msra.mxu0 %v3538
    %3616 = vmatpush.msra.mxu0 %v3534
    %3617 = vmatpush.msra.mxu0 %v3530
    %3618 = vmatpush.msra.mxu0 %v3526
    %3619 = vmatpush.msra.mxu0 %v3522
    %3620 = vmatpush.msra.mxu0 %v3518
    %3621 = vmatpush.msra.mxu0 %v3514
    %3622 = vmatpush.msra.mxu0 %v3510
    %3623 = vmatpush.msra.mxu0 %v3506
    %3624 = vmatmul.f32.gmra.mxu0 %v3503
    %v3625 = vpop.f32.mrf.mxu0
    %v3626 = vadd.f32 0.0, %v3625
    %3627 = vdwg.mxu0
    %3628 = vmatpush.msra.mxu0 %v3567
    %3629 = vmatpush.msra.mxu0 %v3563
    %3630 = vmatpush.msra.mxu0 %v3559
    %3631 = vmatpush.msra.mxu0 %v3555
    %3632 = vmatpush.msra.mxu0 %v3551
    %3633 = vmatpush.msra.mxu0 %v3547
    %3634 = vmatpush.msra.mxu0 %v3543
    %3635 = vmatpush.msra.mxu0 %v3539
    %3636 = vmatpush.msra.mxu0 %v3535
    %3637 = vmatpush.msra.mxu0 %v3531
    %3638 = vmatpush.msra.mxu0 %v3527
    %3639 = vmatpush.msra.mxu0 %v3523
    %3640 = vmatpush.msra.mxu0 %v3519
    %3641 = vmatpush.msra.mxu0 %v3515
    %3642 = vmatpush.msra.mxu0 %v3511
    %3643 = vmatpush.msra.mxu0 %v3507
    %3644 = vmatmul.f32.gmra.mxu0 %v3503
    %v3645 = vpop.f32.mrf.mxu0
    %v3646 = vadd.f32 0.0, %v3645
    %3647 = vdwg.mxu0
    %v3648 = vadd.f32 %v3499, %v3586
    %v3649 = vadd.f32 %v3500, %v3606
    %v3650 = vadd.f32 %v3501, %v3626
    %v3651 = vadd.f32 %v3502, %v3646
    %v3652 = vxor.u32 %v3648, 2147483648
    %v3653 = vmul.f32 %v3652, 1.442695
    %v3654 = vpow.pop %v3653
    %v3655 = vadd.f32 %v3654, 1.0
    %v3656 = vrcp.pop %v3655
    %v3657 = vmul.f32 %v3655, %v3656
    %v3658 = vsub.f32 1.0, %v3657
    %v3659 = vmul.f32 %v3656, %v3658
    %v3660 = vadd.f32 %v3656, %v3659
    %vm3661 = vweird.f32 %v3655
    %vm3662 = vweird.f32 %v3656
    %vm3663 = vmor %vm3661, %vm3662
    %v3664 = vsel %vm3663, %v3656, %v3660
    %v3665 = vand.u32 2147483647, %v3655
    %vm3666 = vcmp.eq.f32.partialorder %v3665, 8.507059e+37
    %v3667 = vand.u32 %v3655, 2147483648
    %v3668 = vor.u32 1.1754944e-38, %v3667
    %v3669 = vsel %vm3666, %v3668, %v3664
    %v3670 = vmul.f32 1.0, %v3669
    %v3671 = vxor.u32 %v3649, 2147483648
    %v3672 = vmul.f32 %v3671, 1.442695
    %v3673 = vpow.pop %v3672
    %v3674 = vadd.f32 %v3673, 1.0
    %v3675 = vrcp.pop %v3674
    %v3676 = vmul.f32 %v3674, %v3675
    %v3677 = vsub.f32 1.0, %v3676
    %v3678 = vmul.f32 %v3675, %v3677
    %v3679 = vadd.f32 %v3675, %v3678
    %vm3680 = vweird.f32 %v3674
    %vm3681 = vweird.f32 %v3675
    %vm3682 = vmor %vm3680, %vm3681
    %v3683 = vsel %vm3682, %v3675, %v3679
    %v3684 = vand.u32 2147483647, %v3674
    %vm3685 = vcmp.eq.f32.partialorder %v3684, 8.507059e+37
    %v3686 = vand.u32 %v3674, 2147483648
    %v3687 = vor.u32 1.1754944e-38, %v3686
    %v3688 = vsel %vm3685, %v3687, %v3683
    %v3689 = vmul.f32 1.0, %v3688
    %v3690 = vtanh.pop %v3650
    %v3691 = vxor.u32 %v3651, 2147483648
    %v3692 = vmul.f32 %v3691, 1.442695
    %v3693 = vpow.pop %v3692
    %v3694 = vadd.f32 %v3693, 1.0
    %v3695 = vrcp.pop %v3694
    %v3696 = vmul.f32 %v3694, %v3695
    %v3697 = vsub.f32 1.0, %v3696
    %v3698 = vmul.f32 %v3695, %v3697
    %v3699 = vadd.f32 %v3695, %v3698
    %vm3700 = vweird.f32 %v3694
    %vm3701 = vweird.f32 %v3695
    %vm3702 = vmor %vm3700, %vm3701
    %v3703 = vsel %vm3702, %v3695, %v3699
    %v3704 = vand.u32 2147483647, %v3694
    %vm3705 = vcmp.eq.f32.partialorder %v3704, 8.507059e+37
    %v3706 = vand.u32 %v3694, 2147483648
    %v3707 = vor.u32 1.1754944e-38, %v3706
    %v3708 = vsel %vm3705, %v3707, %v3703
    %v3709 = vmul.f32 1.0, %v3708
    %v3710 = vld [vmem:[#allocation5] sm:$0xff]
    %v3711 = vmul.f32 %v3689, %v3710
    %v3712 = vmul.f32 %v3670, %v3690
    %v3713 = vadd.f32 %v3711, %v3712
    %v3714 = vtanh.pop %v3713
    %v3715 = vmul.f32 %v3709, %v3714
    %3716 = vst [vmem:[#allocation5] sm:$0xff] %v3713
    %3717 = vst [vmem:[#allocation4] sm:$0xff] %v3715
    %3718 = vst [vmem:[%s1669] sm:$0xff] %v3715
    %v3719 = vld [vmem:[%s1673] sm:$0xff]
    %v3720 = vld [vmem:[%s1673 + $0x8] sm:$0xff]
    %v3721 = vld [vmem:[%s1673 + $0x10] sm:$0xff]
    %v3722 = vld [vmem:[%s1673 + $0x18] sm:$0xff]
    %v3723 = vld [vmem:[#allocation4] sm:$0xff]
    %v3724 = vld [vmem:[#allocation10] sm:$0xff]
    %v3725 = vld [vmem:[#allocation10 + $0x8] sm:$0xff]
    %v3726 = vld [vmem:[#allocation10 + $0x10] sm:$0xff]
    %v3727 = vld [vmem:[#allocation10 + $0x18] sm:$0xff]
    %v3728 = vld [vmem:[#allocation10 + $0x20] sm:$0xff]
    %v3729 = vld [vmem:[#allocation10 + $0x28] sm:$0xff]
    %v3730 = vld [vmem:[#allocation10 + $0x30] sm:$0xff]
    %v3731 = vld [vmem:[#allocation10 + $0x38] sm:$0xff]
    %v3732 = vld [vmem:[#allocation10 + $0x40] sm:$0xff]
    %v3733 = vld [vmem:[#allocation10 + $0x48] sm:$0xff]
    %v3734 = vld [vmem:[#allocation10 + $0x50] sm:$0xff]
    %v3735 = vld [vmem:[#allocation10 + $0x58] sm:$0xff]
    %v3736 = vld [vmem:[#allocation10 + $0x60] sm:$0xff]
    %v3737 = vld [vmem:[#allocation10 + $0x68] sm:$0xff]
    %v3738 = vld [vmem:[#allocation10 + $0x70] sm:$0xff]
    %v3739 = vld [vmem:[#allocation10 + $0x78] sm:$0xff]
    %v3740 = vld [vmem:[#allocation10 + $0x80] sm:$0xff]
    %v3741 = vld [vmem:[#allocation10 + $0x88] sm:$0xff]
    %v3742 = vld [vmem:[#allocation10 + $0x90] sm:$0xff]
    %v3743 = vld [vmem:[#allocation10 + $0x98] sm:$0xff]
    %v3744 = vld [vmem:[#allocation10 + $0xa0] sm:$0xff]
    %v3745 = vld [vmem:[#allocation10 + $0xa8] sm:$0xff]
    %v3746 = vld [vmem:[#allocation10 + $0xb0] sm:$0xff]
    %v3747 = vld [vmem:[#allocation10 + $0xb8] sm:$0xff]
    %v3748 = vld [vmem:[#allocation10 + $0xc0] sm:$0xff]
    %v3749 = vld [vmem:[#allocation10 + $0xc8] sm:$0xff]
    %v3750 = vld [vmem:[#allocation10 + $0xd0] sm:$0xff]
    %v3751 = vld [vmem:[#allocation10 + $0xd8] sm:$0xff]
    %v3752 = vld [vmem:[#allocation10 + $0xe0] sm:$0xff]
    %v3753 = vld [vmem:[#allocation10 + $0xe8] sm:$0xff]
    %v3754 = vld [vmem:[#allocation10 + $0xf0] sm:$0xff]
    %v3755 = vld [vmem:[#allocation10 + $0xf8] sm:$0xff]
    %v3756 = vld [vmem:[#allocation10 + $0x100] sm:$0xff]
    %v3757 = vld [vmem:[#allocation10 + $0x108] sm:$0xff]
    %v3758 = vld [vmem:[#allocation10 + $0x110] sm:$0xff]
    %v3759 = vld [vmem:[#allocation10 + $0x118] sm:$0xff]
    %v3760 = vld [vmem:[#allocation10 + $0x120] sm:$0xff]
    %v3761 = vld [vmem:[#allocation10 + $0x128] sm:$0xff]
    %v3762 = vld [vmem:[#allocation10 + $0x130] sm:$0xff]
    %v3763 = vld [vmem:[#allocation10 + $0x138] sm:$0xff]
    %v3764 = vld [vmem:[#allocation10 + $0x140] sm:$0xff]
    %v3765 = vld [vmem:[#allocation10 + $0x148] sm:$0xff]
    %v3766 = vld [vmem:[#allocation10 + $0x150] sm:$0xff]
    %v3767 = vld [vmem:[#allocation10 + $0x158] sm:$0xff]
    %v3768 = vld [vmem:[#allocation10 + $0x160] sm:$0xff]
    %v3769 = vld [vmem:[#allocation10 + $0x168] sm:$0xff]
    %v3770 = vld [vmem:[#allocation10 + $0x170] sm:$0xff]
    %v3771 = vld [vmem:[#allocation10 + $0x178] sm:$0xff]
    %v3772 = vld [vmem:[#allocation10 + $0x180] sm:$0xff]
    %v3773 = vld [vmem:[#allocation10 + $0x188] sm:$0xff]
    %v3774 = vld [vmem:[#allocation10 + $0x190] sm:$0xff]
    %v3775 = vld [vmem:[#allocation10 + $0x198] sm:$0xff]
    %v3776 = vld [vmem:[#allocation10 + $0x1a0] sm:$0xff]
    %v3777 = vld [vmem:[#allocation10 + $0x1a8] sm:$0xff]
    %v3778 = vld [vmem:[#allocation10 + $0x1b0] sm:$0xff]
    %v3779 = vld [vmem:[#allocation10 + $0x1b8] sm:$0xff]
    %v3780 = vld [vmem:[#allocation10 + $0x1c0] sm:$0xff]
    %v3781 = vld [vmem:[#allocation10 + $0x1c8] sm:$0xff]
    %v3782 = vld [vmem:[#allocation10 + $0x1d0] sm:$0xff]
    %v3783 = vld [vmem:[#allocation10 + $0x1d8] sm:$0xff]
    %v3784 = vld [vmem:[#allocation10 + $0x1e0] sm:$0xff]
    %v3785 = vld [vmem:[#allocation10 + $0x1e8] sm:$0xff]
    %v3786 = vld [vmem:[#allocation10 + $0x1f0] sm:$0xff]
    %v3787 = vld [vmem:[#allocation10 + $0x1f8] sm:$0xff]
    %3788 = vmatpush.msra.mxu0 %v3784
    %3789 = vmatpush.msra.mxu0 %v3780
    %3790 = vmatpush.msra.mxu0 %v3776
    %3791 = vmatpush.msra.mxu0 %v3772
    %3792 = vmatpush.msra.mxu0 %v3768
    %3793 = vmatpush.msra.mxu0 %v3764
    %3794 = vmatpush.msra.mxu0 %v3760
    %3795 = vmatpush.msra.mxu0 %v3756
    %3796 = vmatpush.msra.mxu0 %v3752
    %3797 = vmatpush.msra.mxu0 %v3748
    %3798 = vmatpush.msra.mxu0 %v3744
    %3799 = vmatpush.msra.mxu0 %v3740
    %3800 = vmatpush.msra.mxu0 %v3736
    %3801 = vmatpush.msra.mxu0 %v3732
    %3802 = vmatpush.msra.mxu0 %v3728
    %3803 = vmatpush.msra.mxu0 %v3724
    %3804 = vmatmul.f32.gmra.mxu0 %v3723
    %v3805 = vpop.f32.mrf.mxu0
    %v3806 = vadd.f32 0.0, %v3805
    %3807 = vdwg.mxu0
    %3808 = vmatpush.msra.mxu0 %v3785
    %3809 = vmatpush.msra.mxu0 %v3781
    %3810 = vmatpush.msra.mxu0 %v3777
    %3811 = vmatpush.msra.mxu0 %v3773
    %3812 = vmatpush.msra.mxu0 %v3769
    %3813 = vmatpush.msra.mxu0 %v3765
    %3814 = vmatpush.msra.mxu0 %v3761
    %3815 = vmatpush.msra.mxu0 %v3757
    %3816 = vmatpush.msra.mxu0 %v3753
    %3817 = vmatpush.msra.mxu0 %v3749
    %3818 = vmatpush.msra.mxu0 %v3745
    %3819 = vmatpush.msra.mxu0 %v3741
    %3820 = vmatpush.msra.mxu0 %v3737
    %3821 = vmatpush.msra.mxu0 %v3733
    %3822 = vmatpush.msra.mxu0 %v3729
    %3823 = vmatpush.msra.mxu0 %v3725
    %3824 = vmatmul.f32.gmra.mxu0 %v3723
    %v3825 = vpop.f32.mrf.mxu0
    %v3826 = vadd.f32 0.0, %v3825
    %3827 = vdwg.mxu0
    %3828 = vmatpush.msra.mxu0 %v3786
    %3829 = vmatpush.msra.mxu0 %v3782
    %3830 = vmatpush.msra.mxu0 %v3778
    %3831 = vmatpush.msra.mxu0 %v3774
    %3832 = vmatpush.msra.mxu0 %v3770
    %3833 = vmatpush.msra.mxu0 %v3766
    %3834 = vmatpush.msra.mxu0 %v3762
    %3835 = vmatpush.msra.mxu0 %v3758
    %3836 = vmatpush.msra.mxu0 %v3754
    %3837 = vmatpush.msra.mxu0 %v3750
    %3838 = vmatpush.msra.mxu0 %v3746
    %3839 = vmatpush.msra.mxu0 %v3742
    %3840 = vmatpush.msra.mxu0 %v3738
    %3841 = vmatpush.msra.mxu0 %v3734
    %3842 = vmatpush.msra.mxu0 %v3730
    %3843 = vmatpush.msra.mxu0 %v3726
    %3844 = vmatmul.f32.gmra.mxu0 %v3723
    %v3845 = vpop.f32.mrf.mxu0
    %v3846 = vadd.f32 0.0, %v3845
    %3847 = vdwg.mxu0
    %3848 = vmatpush.msra.mxu0 %v3787
    %3849 = vmatpush.msra.mxu0 %v3783
    %3850 = vmatpush.msra.mxu0 %v3779
    %3851 = vmatpush.msra.mxu0 %v3775
    %3852 = vmatpush.msra.mxu0 %v3771
    %3853 = vmatpush.msra.mxu0 %v3767
    %3854 = vmatpush.msra.mxu0 %v3763
    %3855 = vmatpush.msra.mxu0 %v3759
    %3856 = vmatpush.msra.mxu0 %v3755
    %3857 = vmatpush.msra.mxu0 %v3751
    %3858 = vmatpush.msra.mxu0 %v3747
    %3859 = vmatpush.msra.mxu0 %v3743
    %3860 = vmatpush.msra.mxu0 %v3739
    %3861 = vmatpush.msra.mxu0 %v3735
    %3862 = vmatpush.msra.mxu0 %v3731
    %3863 = vmatpush.msra.mxu0 %v3727
    %3864 = vmatmul.f32.gmra.mxu0 %v3723
    %v3865 = vpop.f32.mrf.mxu0
    %v3866 = vadd.f32 0.0, %v3865
    %3867 = vdwg.mxu0
    %v3868 = vadd.f32 %v3719, %v3806
    %v3869 = vadd.f32 %v3720, %v3826
    %v3870 = vadd.f32 %v3721, %v3846
    %v3871 = vadd.f32 %v3722, %v3866
    %v3872 = vxor.u32 %v3868, 2147483648
    %v3873 = vmul.f32 %v3872, 1.442695
    %v3874 = vpow.pop %v3873
    %v3875 = vadd.f32 %v3874, 1.0
    %v3876 = vrcp.pop %v3875
    %v3877 = vmul.f32 %v3875, %v3876
    %v3878 = vsub.f32 1.0, %v3877
    %v3879 = vmul.f32 %v3876, %v3878
    %v3880 = vadd.f32 %v3876, %v3879
    %vm3881 = vweird.f32 %v3875
    %vm3882 = vweird.f32 %v3876
    %vm3883 = vmor %vm3881, %vm3882
    %v3884 = vsel %vm3883, %v3876, %v3880
    %v3885 = vand.u32 2147483647, %v3875
    %vm3886 = vcmp.eq.f32.partialorder %v3885, 8.507059e+37
    %v3887 = vand.u32 %v3875, 2147483648
    %v3888 = vor.u32 1.1754944e-38, %v3887
    %v3889 = vsel %vm3886, %v3888, %v3884
    %v3890 = vmul.f32 1.0, %v3889
    %v3891 = vxor.u32 %v3869, 2147483648
    %v3892 = vmul.f32 %v3891, 1.442695
    %v3893 = vpow.pop %v3892
    %v3894 = vadd.f32 %v3893, 1.0
    %v3895 = vrcp.pop %v3894
    %v3896 = vmul.f32 %v3894, %v3895
    %v3897 = vsub.f32 1.0, %v3896
    %v3898 = vmul.f32 %v3895, %v3897
    %v3899 = vadd.f32 %v3895, %v3898
    %vm3900 = vweird.f32 %v3894
    %vm3901 = vweird.f32 %v3895
    %vm3902 = vmor %vm3900, %vm3901
    %v3903 = vsel %vm3902, %v3895, %v3899
    %v3904 = vand.u32 2147483647, %v3894
    %vm3905 = vcmp.eq.f32.partialorder %v3904, 8.507059e+37
    %v3906 = vand.u32 %v3894, 2147483648
    %v3907 = vor.u32 1.1754944e-38, %v3906
    %v3908 = vsel %vm3905, %v3907, %v3903
    %v3909 = vmul.f32 1.0, %v3908
    %v3910 = vtanh.pop %v3870
    %v3911 = vxor.u32 %v3871, 2147483648
    %v3912 = vmul.f32 %v3911, 1.442695
    %v3913 = vpow.pop %v3912
    %v3914 = vadd.f32 %v3913, 1.0
    %v3915 = vrcp.pop %v3914
    %v3916 = vmul.f32 %v3914, %v3915
    %v3917 = vsub.f32 1.0, %v3916
    %v3918 = vmul.f32 %v3915, %v3917
    %v3919 = vadd.f32 %v3915, %v3918
    %vm3920 = vweird.f32 %v3914
    %vm3921 = vweird.f32 %v3915
    %vm3922 = vmor %vm3920, %vm3921
    %v3923 = vsel %vm3922, %v3915, %v3919
    %v3924 = vand.u32 2147483647, %v3914
    %vm3925 = vcmp.eq.f32.partialorder %v3924, 8.507059e+37
    %v3926 = vand.u32 %v3914, 2147483648
    %v3927 = vor.u32 1.1754944e-38, %v3926
    %v3928 = vsel %vm3925, %v3927, %v3923
    %v3929 = vmul.f32 1.0, %v3928
    %v3930 = vld [vmem:[#allocation5] sm:$0xff]
    %v3931 = vmul.f32 %v3909, %v3930
    %v3932 = vmul.f32 %v3890, %v3910
    %v3933 = vadd.f32 %v3931, %v3932
    %v3934 = vtanh.pop %v3933
    %v3935 = vmul.f32 %v3929, %v3934
    %3936 = vst [vmem:[#allocation5] sm:$0xff] %v3933
    %3937 = vst [vmem:[#allocation4] sm:$0xff] %v3935
    %3938 = vst [vmem:[%s1893] sm:$0xff] %v3935
    %v3939 = vld [vmem:[%s1897] sm:$0xff]
    %v3940 = vld [vmem:[%s1897 + $0x8] sm:$0xff]
    %v3941 = vld [vmem:[%s1897 + $0x10] sm:$0xff]
    %v3942 = vld [vmem:[%s1897 + $0x18] sm:$0xff]
    %v3943 = vld [vmem:[#allocation4] sm:$0xff]
    %v3944 = vld [vmem:[#allocation10] sm:$0xff]
    %v3945 = vld [vmem:[#allocation10 + $0x8] sm:$0xff]
    %v3946 = vld [vmem:[#allocation10 + $0x10] sm:$0xff]
    %v3947 = vld [vmem:[#allocation10 + $0x18] sm:$0xff]
    %v3948 = vld [vmem:[#allocation10 + $0x20] sm:$0xff]
    %v3949 = vld [vmem:[#allocation10 + $0x28] sm:$0xff]
    %v3950 = vld [vmem:[#allocation10 + $0x30] sm:$0xff]
    %v3951 = vld [vmem:[#allocation10 + $0x38] sm:$0xff]
    %v3952 = vld [vmem:[#allocation10 + $0x40] sm:$0xff]
    %v3953 = vld [vmem:[#allocation10 + $0x48] sm:$0xff]
    %v3954 = vld [vmem:[#allocation10 + $0x50] sm:$0xff]
    %v3955 = vld [vmem:[#allocation10 + $0x58] sm:$0xff]
    %v3956 = vld [vmem:[#allocation10 + $0x60] sm:$0xff]
    %v3957 = vld [vmem:[#allocation10 + $0x68] sm:$0xff]
    %v3958 = vld [vmem:[#allocation10 + $0x70] sm:$0xff]
    %v3959 = vld [vmem:[#allocation10 + $0x78] sm:$0xff]
    %v3960 = vld [vmem:[#allocation10 + $0x80] sm:$0xff]
    %v3961 = vld [vmem:[#allocation10 + $0x88] sm:$0xff]
    %v3962 = vld [vmem:[#allocation10 + $0x90] sm:$0xff]
    %v3963 = vld [vmem:[#allocation10 + $0x98] sm:$0xff]
    %v3964 = vld [vmem:[#allocation10 + $0xa0] sm:$0xff]
    %v3965 = vld [vmem:[#allocation10 + $0xa8] sm:$0xff]
    %v3966 = vld [vmem:[#allocation10 + $0xb0] sm:$0xff]
    %v3967 = vld [vmem:[#allocation10 + $0xb8] sm:$0xff]
    %v3968 = vld [vmem:[#allocation10 + $0xc0] sm:$0xff]
    %v3969 = vld [vmem:[#allocation10 + $0xc8] sm:$0xff]
    %v3970 = vld [vmem:[#allocation10 + $0xd0] sm:$0xff]
    %v3971 = vld [vmem:[#allocation10 + $0xd8] sm:$0xff]
    %v3972 = vld [vmem:[#allocation10 + $0xe0] sm:$0xff]
    %v3973 = vld [vmem:[#allocation10 + $0xe8] sm:$0xff]
    %v3974 = vld [vmem:[#allocation10 + $0xf0] sm:$0xff]
    %v3975 = vld [vmem:[#allocation10 + $0xf8] sm:$0xff]
    %v3976 = vld [vmem:[#allocation10 + $0x100] sm:$0xff]
    %v3977 = vld [vmem:[#allocation10 + $0x108] sm:$0xff]
    %v3978 = vld [vmem:[#allocation10 + $0x110] sm:$0xff]
    %v3979 = vld [vmem:[#allocation10 + $0x118] sm:$0xff]
    %v3980 = vld [vmem:[#allocation10 + $0x120] sm:$0xff]
    %v3981 = vld [vmem:[#allocation10 + $0x128] sm:$0xff]
    %v3982 = vld [vmem:[#allocation10 + $0x130] sm:$0xff]
    %v3983 = vld [vmem:[#allocation10 + $0x138] sm:$0xff]
    %v3984 = vld [vmem:[#allocation10 + $0x140] sm:$0xff]
    %v3985 = vld [vmem:[#allocation10 + $0x148] sm:$0xff]
    %v3986 = vld [vmem:[#allocation10 + $0x150] sm:$0xff]
    %v3987 = vld [vmem:[#allocation10 + $0x158] sm:$0xff]
    %v3988 = vld [vmem:[#allocation10 + $0x160] sm:$0xff]
    %v3989 = vld [vmem:[#allocation10 + $0x168] sm:$0xff]
    %v3990 = vld [vmem:[#allocation10 + $0x170] sm:$0xff]
    %v3991 = vld [vmem:[#allocation10 + $0x178] sm:$0xff]
    %v3992 = vld [vmem:[#allocation10 + $0x180] sm:$0xff]
    %v3993 = vld [vmem:[#allocation10 + $0x188] sm:$0xff]
    %v3994 = vld [vmem:[#allocation10 + $0x190] sm:$0xff]
    %v3995 = vld [vmem:[#allocation10 + $0x198] sm:$0xff]
    %v3996 = vld [vmem:[#allocation10 + $0x1a0] sm:$0xff]
    %v3997 = vld [vmem:[#allocation10 + $0x1a8] sm:$0xff]
    %v3998 = vld [vmem:[#allocation10 + $0x1b0] sm:$0xff]
    %v3999 = vld [vmem:[#allocation10 + $0x1b8] sm:$0xff]
    %v4000 = vld [vmem:[#allocation10 + $0x1c0] sm:$0xff]
    %v4001 = vld [vmem:[#allocation10 + $0x1c8] sm:$0xff]
    %v4002 = vld [vmem:[#allocation10 + $0x1d0] sm:$0xff]
    %v4003 = vld [vmem:[#allocation10 + $0x1d8] sm:$0xff]
    %v4004 = vld [vmem:[#allocation10 + $0x1e0] sm:$0xff]
    %v4005 = vld [vmem:[#allocation10 + $0x1e8] sm:$0xff]
    %v4006 = vld [vmem:[#allocation10 + $0x1f0] sm:$0xff]
    %v4007 = vld [vmem:[#allocation10 + $0x1f8] sm:$0xff]
    %4008 = vmatpush.msra.mxu0 %v4004
    %4009 = vmatpush.msra.mxu0 %v4000
    %4010 = vmatpush.msra.mxu0 %v3996
    %4011 = vmatpush.msra.mxu0 %v3992
    %4012 = vmatpush.msra.mxu0 %v3988
    %4013 = vmatpush.msra.mxu0 %v3984
    %4014 = vmatpush.msra.mxu0 %v3980
    %4015 = vmatpush.msra.mxu0 %v3976
    %4016 = vmatpush.msra.mxu0 %v3972
    %4017 = vmatpush.msra.mxu0 %v3968
    %4018 = vmatpush.msra.mxu0 %v3964
    %4019 = vmatpush.msra.mxu0 %v3960
    %4020 = vmatpush.msra.mxu0 %v3956
    %4021 = vmatpush.msra.mxu0 %v3952
    %4022 = vmatpush.msra.mxu0 %v3948
    %4023 = vmatpush.msra.mxu0 %v3944
    %4024 = vmatmul.f32.gmra.mxu0 %v3943
    %v4025 = vpop.f32.mrf.mxu0
    %v4026 = vadd.f32 0.0, %v4025
    %4027 = vdwg.mxu0
    %4028 = vmatpush.msra.mxu0 %v4005
    %4029 = vmatpush.msra.mxu0 %v4001
    %4030 = vmatpush.msra.mxu0 %v3997
    %4031 = vmatpush.msra.mxu0 %v3993
    %4032 = vmatpush.msra.mxu0 %v3989
    %4033 = vmatpush.msra.mxu0 %v3985
    %4034 = vmatpush.msra.mxu0 %v3981
    %4035 = vmatpush.msra.mxu0 %v3977
    %4036 = vmatpush.msra.mxu0 %v3973
    %4037 = vmatpush.msra.mxu0 %v3969
    %4038 = vmatpush.msra.mxu0 %v3965
    %4039 = vmatpush.msra.mxu0 %v3961
    %4040 = vmatpush.msra.mxu0 %v3957
    %4041 = vmatpush.msra.mxu0 %v3953
    %4042 = vmatpush.msra.mxu0 %v3949
    %4043 = vmatpush.msra.mxu0 %v3945
    %4044 = vmatmul.f32.gmra.mxu0 %v3943
    %v4045 = vpop.f32.mrf.mxu0
    %v4046 = vadd.f32 0.0, %v4045
    %4047 = vdwg.mxu0
    %4048 = vmatpush.msra.mxu0 %v4006
    %4049 = vmatpush.msra.mxu0 %v4002
    %4050 = vmatpush.msra.mxu0 %v3998
    %4051 = vmatpush.msra.mxu0 %v3994
    %4052 = vmatpush.msra.mxu0 %v3990
    %4053 = vmatpush.msra.mxu0 %v3986
    %4054 = vmatpush.msra.mxu0 %v3982
    %4055 = vmatpush.msra.mxu0 %v3978
    %4056 = vmatpush.msra.mxu0 %v3974
    %4057 = vmatpush.msra.mxu0 %v3970
    %4058 = vmatpush.msra.mxu0 %v3966
    %4059 = vmatpush.msra.mxu0 %v3962
    %4060 = vmatpush.msra.mxu0 %v3958
    %4061 = vmatpush.msra.mxu0 %v3954
    %4062 = vmatpush.msra.mxu0 %v3950
    %4063 = vmatpush.msra.mxu0 %v3946
    %4064 = vmatmul.f32.gmra.mxu0 %v3943
    %v4065 = vpop.f32.mrf.mxu0
    %v4066 = vadd.f32 0.0, %v4065
    %4067 = vdwg.mxu0
    %4068 = vmatpush.msra.mxu0 %v4007
    %4069 = vmatpush.msra.mxu0 %v4003
    %4070 = vmatpush.msra.mxu0 %v3999
    %4071 = vmatpush.msra.mxu0 %v3995
    %4072 = vmatpush.msra.mxu0 %v3991
    %4073 = vmatpush.msra.mxu0 %v3987
    %4074 = vmatpush.msra.mxu0 %v3983
    %4075 = vmatpush.msra.mxu0 %v3979
    %4076 = vmatpush.msra.mxu0 %v3975
    %4077 = vmatpush.msra.mxu0 %v3971
    %4078 = vmatpush.msra.mxu0 %v3967
    %4079 = vmatpush.msra.mxu0 %v3963
    %4080 = vmatpush.msra.mxu0 %v3959
    %4081 = vmatpush.msra.mxu0 %v3955
    %4082 = vmatpush.msra.mxu0 %v3951
    %4083 = vmatpush.msra.mxu0 %v3947
    %4084 = vmatmul.f32.gmra.mxu0 %v3943
    %v4085 = vpop.f32.mrf.mxu0
    %v4086 = vadd.f32 0.0, %v4085
    %4087 = vdwg.mxu0
    %v4088 = vadd.f32 %v3939, %v4026
    %v4089 = vadd.f32 %v3940, %v4046
    %v4090 = vadd.f32 %v3941, %v4066
    %v4091 = vadd.f32 %v3942, %v4086
    %v4092 = vxor.u32 %v4088, 2147483648
    %v4093 = vmul.f32 %v4092, 1.442695
    %v4094 = vpow.pop %v4093
    %v4095 = vadd.f32 %v4094, 1.0
    %v4096 = vrcp.pop %v4095
    %v4097 = vmul.f32 %v4095, %v4096
    %v4098 = vsub.f32 1.0, %v4097
    %v4099 = vmul.f32 %v4096, %v4098
    %v4100 = vadd.f32 %v4096, %v4099
    %vm4101 = vweird.f32 %v4095
    %vm4102 = vweird.f32 %v4096
    %vm4103 = vmor %vm4101, %vm4102
    %v4104 = vsel %vm4103, %v4096, %v4100
    %v4105 = vand.u32 2147483647, %v4095
    %vm4106 = vcmp.eq.f32.partialorder %v4105, 8.507059e+37
    %v4107 = vand.u32 %v4095, 2147483648
    %v4108 = vor.u32 1.1754944e-38, %v4107
    %v4109 = vsel %vm4106, %v4108, %v4104
    %v4110 = vmul.f32 1.0, %v4109
    %v4111 = vxor.u32 %v4089, 2147483648
    %v4112 = vmul.f32 %v4111, 1.442695
    %v4113 = vpow.pop %v4112
    %v4114 = vadd.f32 %v4113, 1.0
    %v4115 = vrcp.pop %v4114
    %v4116 = vmul.f32 %v4114, %v4115
    %v4117 = vsub.f32 1.0, %v4116
    %v4118 = vmul.f32 %v4115, %v4117
    %v4119 = vadd.f32 %v4115, %v4118
    %vm4120 = vweird.f32 %v4114
    %vm4121 = vweird.f32 %v4115
    %vm4122 = vmor %vm4120, %vm4121
    %v4123 = vsel %vm4122, %v4115, %v4119
    %v4124 = vand.u32 2147483647, %v4114
    %vm4125 = vcmp.eq.f32.partialorder %v4124, 8.507059e+37
    %v4126 = vand.u32 %v4114, 2147483648
    %v4127 = vor.u32 1.1754944e-38, %v4126
    %v4128 = vsel %vm4125, %v4127, %v4123
    %v4129 = vmul.f32 1.0, %v4128
    %v4130 = vtanh.pop %v4090
    %v4131 = vxor.u32 %v4091, 2147483648
    %v4132 = vmul.f32 %v4131, 1.442695
    %v4133 = vpow.pop %v4132
    %v4134 = vadd.f32 %v4133, 1.0
    %v4135 = vrcp.pop %v4134
    %v4136 = vmul.f32 %v4134, %v4135
    %v4137 = vsub.f32 1.0, %v4136
    %v4138 = vmul.f32 %v4135, %v4137
    %v4139 = vadd.f32 %v4135, %v4138
    %vm4140 = vweird.f32 %v4134
    %vm4141 = vweird.f32 %v4135
    %vm4142 = vmor %vm4140, %vm4141
    %v4143 = vsel %vm4142, %v4135, %v4139
    %v4144 = vand.u32 2147483647, %v4134
    %vm4145 = vcmp.eq.f32.partialorder %v4144, 8.507059e+37
    %v4146 = vand.u32 %v4134, 2147483648
    %v4147 = vor.u32 1.1754944e-38, %v4146
    %v4148 = vsel %vm4145, %v4147, %v4143
    %v4149 = vmul.f32 1.0, %v4148
    %v4150 = vld [vmem:[#allocation5] sm:$0xff]
    %v4151 = vmul.f32 %v4129, %v4150
    %v4152 = vmul.f32 %v4110, %v4130
    %v4153 = vadd.f32 %v4151, %v4152
    %v4154 = vtanh.pop %v4153
    %v4155 = vmul.f32 %v4149, %v4154
    %4156 = vst [vmem:[#allocation5] sm:$0xff] %v4153
    %4157 = vst [vmem:[#allocation4] sm:$0xff] %v4155
    %4158 = vst [vmem:[%s2117] sm:$0xff] %v4155
    %v4159 = vld [vmem:[#allocation3] sm:$0xff]
    %v4160 = vld [vmem:[#allocation3 + $0x8] sm:$0xff]
    %v4161 = vld [vmem:[#allocation3 + $0x10] sm:$0xff]
    %v4162 = vld [vmem:[#allocation3 + $0x18] sm:$0xff]
    %v4163 = vld [vmem:[#allocation3 + $0x20] sm:$0xff]
    %v4164 = vld [vmem:[#allocation3 + $0x28] sm:$0xff]
    %v4165 = vld [vmem:[#allocation3 + $0x30] sm:$0xff]
    %v4166 = vld [vmem:[#allocation3 + $0x38] sm:$0xff]
    %v4167 = vld [vmem:[%s7] sm:$0xff]
    %v4168 = vld [vmem:[%s7 + $0x8] sm:$0xff]
    %v4169 = vld [vmem:[%s7 + $0x10] sm:$0xff]
    %v4170 = vld [vmem:[%s7 + $0x18] sm:$0xff]
    %v4171 = vld [vmem:[%s7 + $0x20] sm:$0xff]
    %v4172 = vld [vmem:[%s7 + $0x28] sm:$0xff]
    %v4173 = vld [vmem:[%s7 + $0x30] sm:$0xff]
    %v4174 = vld [vmem:[%s7 + $0x38] sm:$0xff]
    %v4175 = vld [vmem:[%s7 + $0x40] sm:$0xff]
    %v4176 = vld [vmem:[%s7 + $0x48] sm:$0xff]
    %v4177 = vld [vmem:[%s7 + $0x50] sm:$0xff]
    %v4178 = vld [vmem:[%s7 + $0x58] sm:$0xff]
    %v4179 = vld [vmem:[%s7 + $0x60] sm:$0xff]
    %v4180 = vld [vmem:[%s7 + $0x68] sm:$0xff]
    %v4181 = vld [vmem:[%s7 + $0x70] sm:$0xff]
    %v4182 = vld [vmem:[%s7 + $0x78] sm:$0xff]
    %v4183 = vld [vmem:[%s8] sm:$0x1]
    %v4185 = vperm.slane %v4183, 0
    %4187 = vmatpush.msra.mxu0 %v4182
    %4188 = vmatpush.msra.mxu0 %v4181
    %4189 = vmatpush.msra.mxu0 %v4180
    %4190 = vmatpush.msra.mxu0 %v4179
    %4191 = vmatpush.msra.mxu0 %v4178
    %4192 = vmatpush.msra.mxu0 %v4177
    %4193 = vmatpush.msra.mxu0 %v4176
    %4194 = vmatpush.msra.mxu0 %v4175
    %4195 = vmatpush.msra.mxu0 %v4174
    %4196 = vmatpush.msra.mxu0 %v4173
    %4197 = vmatpush.msra.mxu0 %v4172
    %4198 = vmatpush.msra.mxu0 %v4171
    %4199 = vmatpush.msra.mxu0 %v4170
    %4200 = vmatpush.msra.mxu0 %v4169
    %4201 = vmatpush.msra.mxu0 %v4168
    %4202 = vmatpush.msra.mxu0 %v4167
    %4203 = vmatmul.f32.gmra.mxu0 %v4159
    %v4204 = vpop.f32.mrf.mxu0
    %v4205 = vadd.f32 %v4185, %v4204
    %4206 = vmatmul.f32.gmra.mxu0 %v4160
    %v4207 = vpop.f32.mrf.mxu0
    %v4208 = vadd.f32 %v4185, %v4207
    %4209 = vmatmul.f32.gmra.mxu0 %v4161
    %v4210 = vpop.f32.mrf.mxu0
    %v4211 = vadd.f32 %v4185, %v4210
    %4212 = vmatmul.f32.gmra.mxu0 %v4162
    %v4213 = vpop.f32.mrf.mxu0
    %v4214 = vadd.f32 %v4185, %v4213
    %4215 = vmatmul.f32.gmra.mxu0 %v4163
    %v4216 = vpop.f32.mrf.mxu0
    %v4217 = vadd.f32 %v4185, %v4216
    %4218 = vmatmul.f32.gmra.mxu0 %v4164
    %v4219 = vpop.f32.mrf.mxu0
    %v4220 = vadd.f32 %v4185, %v4219
    %4221 = vmatmul.f32.gmra.mxu0 %v4165
    %v4222 = vpop.f32.mrf.mxu0
    %v4223 = vadd.f32 %v4185, %v4222
    %4224 = vmatmul.f32.gmra.mxu0 %v4166
    %v4225 = vpop.f32.mrf.mxu0
    %v4226 = vadd.f32 %v4185, %v4225
    %4227 = vdwg.mxu0
    %vm4228 = vcmask 31744
    %4229 = vst.msk [vmem:[%s9] sm:$0xff] %vm4228, %v4205
    %4230 = vst.msk [vmem:[%s9 + $0x8] sm:$0xff] %vm4228, %v4208
    %4231 = vst.msk [vmem:[%s9 + $0x10] sm:$0xff] %vm4228, %v4211
    %4232 = vst.msk [vmem:[%s9 + $0x18] sm:$0xff] %vm4228, %v4214
    %4233 = vst.msk [vmem:[%s9 + $0x20] sm:$0xff] %vm4228, %v4217
    %4234 = vst.msk [vmem:[%s9 + $0x28] sm:$0xff] %vm4228, %v4220
    %4235 = vst.msk [vmem:[%s9 + $0x30] sm:$0xff] %vm4228, %v4223
    %4236 = vst.msk [vmem:[%s9 + $0x38] sm:$0xff] %vm4228, %v4226
    // Predicated region
    $region50: #{lstm1_forward.1} parent=1 // pred_check
      _
    $region51: #{lstm1_forward.1} parent=1 // pred_check_branch
      %4238 = sbr.rel (0) target = $region53
    $region52: #{lstm1_forward.1} parent=1 // pred_region
      _
    $region53: #{lstm1_forward.1} parent=1 // pred_fallthru
      _
    // Predicated region
    $region54: #{lstm1_forward.1} parent=1 // pred_check
      _
    $region55: #{lstm1_forward.1} parent=1 // pred_check_branch
      %4240 = sbr.rel (0) target = $region57
    $region56: #{lstm1_forward.1} parent=1 // pred_region
      _
    $region57: #{lstm1_forward.1} parent=1 // pred_fallthru
      _
    %4241 = vsyncpa [#allocation7], 1
    %4242 = vsyncpa [#allocation9], 1

</llo_original>
